<compile_context>
chip_gen: v7x
topology: tpu7x:2x2x1
jax: 0.10.0
libtpu: 0.0.40
codegen_flags: <defaults>
</compile_context>

<pallas_src>
import math

import numpy as np

import jax
import jax.numpy as jnp
from jax.experimental import pallas as pl
from jax.experimental.pallas import tpu as pltpu


# ------------------------- model hyper-parameters --------------------------

CH0, CH3, CH4, CH5 = 64, 256, 480, 256
CHRES = 128
CH4_PAD = 512            # conv4 output / fc1 input padded 480 -> 512
K0 = 11 * 3 * 3          # conv0 flattened input size (99)
K0_PAD = 128             # padded to a full lane tile
ACT_DTYPE = jnp.bfloat16  # weights + inter-layer activations (f32 accumulation)


# --------------------------- the fused Pallas kernel -----------------------

def _fused_forward_kernel(x_ref,
                          w0, b0, w1, b1, w2, b2, w3, b3, w4, b4,
                          w5, b5, w6, b6,
                          o_ref):
    f32 = jnp.float32
    C = CH0  # 64

    x = x_ref[...].astype(ACT_DTYPE)                              # (BM, 128)

    # ---- conv0 (1x1) + ReLU: one dense matmul; output NHWC(3,3,64)-flat ----
    h0 = jnp.maximum(
        jnp.dot(x, w0[...], preferred_element_type=f32) + b0[...], 0.0)
    h0b = h0.astype(ACT_DTYPE)                                    # (BM, 576)

    bm = x.shape[0]
    # Zero-pad conv0 output spatially 3x3 -> 5x5 (conv1 has padding=1),
    # still NHWC-flat: (BM, 5*5*64) = (BM, 1600).
    z64 = jnp.zeros((bm, C), ACT_DTYPE)
    z320 = jnp.zeros((bm, 5 * C), ACT_DTYPE)
    rows = [z320]
    for r in range(3):
        rows.append(jnp.concatenate(
            [z64, h0b[:, r * 3 * C:(r + 1) * 3 * C], z64], axis=-1))
    rows.append(z320)
    hp = jnp.concatenate(rows, axis=-1)                           # (BM, 1600)

    # ---- conv1 (2x2, pad=1) + ReLU: 16 output positions, ONE shared raw-size
    #      (4*64, 128) im2col weight (no Toeplitz inflation). -----------------
    w1v, b1v = w1[...], b1[...]
    pieces = []
    for oi in range(4):
        for oj in range(4):
            lhs = jnp.concatenate(
                [hp[:, (oi * 5 + oj) * C:(oi * 5 + oj + 2) * C],
                 hp[:, ((oi + 1) * 5 + oj) * C:((oi + 1) * 5 + oj + 2) * C]],
                axis=-1)                                          # (BM, 256)
            acc = jnp.dot(lhs, w1v, preferred_element_type=f32) + b1v
            pieces.append(jnp.maximum(acc, 0.0).astype(ACT_DTYPE))
    h1 = jnp.concatenate(pieces, axis=-1)                         # (BM, 2048)

    # ---- conv2 (2x2, valid) + ReLU, then residual add of ReLU(conv0) -------
    #      (add happens AFTER the ReLU, matching the reference module). -------
    w2v, b2v = w2[...], b2[...]
    pieces = []
    for oi in range(3):
        for oj in range(3):
            lhs = jnp.concatenate(
                [h1[:, (oi * 4 + oj) * CHRES:(oi * 4 + oj + 2) * CHRES],
                 h1[:, ((oi + 1) * 4 + oj) * CHRES:
                     ((oi + 1) * 4 + oj + 2) * CHRES]],
                axis=-1)                                          # (BM, 512)
            acc = jnp.dot(lhs, w2v, preferred_element_type=f32) + b2v
            p = oi * 3 + oj
            res = jnp.maximum(acc, 0.0) + h0[:, p * C:(p + 1) * C]   # f32 add
            pieces.append(res.astype(ACT_DTYPE))
    h2 = jnp.concatenate(pieces, axis=-1)                         # (BM, 576)

    # ---- conv3 (2x2, valid) + ReLU: 4 positions, one shared (256,256) weight
    w3v, b3v = w3[...], b3[...]
    pieces = []
    for oi in range(2):
        for oj in range(2):
            lhs = jnp.concatenate(
                [h2[:, (oi * 3 + oj) * C:(oi * 3 + oj + 2) * C],
                 h2[:, ((oi + 1) * 3 + oj) * C:((oi + 1) * 3 + oj + 2) * C]],
                axis=-1)                                          # (BM, 256)
            acc = jnp.dot(lhs, w3v, preferred_element_type=f32) + b3v
            pieces.append(jnp.maximum(acc, 0.0).astype(ACT_DTYPE))
    h3 = jnp.concatenate(pieces, axis=-1)                         # (BM, 1024)

    # ---- conv4 (2x2 over the full 2x2 field) + ReLU: one raw-size matmul,
    #      output channels padded 480 -> 512 (whole lane tiles). --------------
    h4 = jnp.maximum(
        jnp.dot(h3, w4[...], preferred_element_type=f32) + b4[...], 0.0)
    h4 = h4.astype(ACT_DTYPE)                                     # (BM, 512)

    # ---- fc1 + ReLU ---------------------------------------------------------
    h5 = jnp.maximum(
        jnp.dot(h4, w5[...], preferred_element_type=f32) + b5[...], 0.0)

    # ---- fc2 (1 output): VPU multiply + lane reduce (no 1-column MXU pass) --
    out = jnp.sum(h5 * w6[...], axis=-1, keepdims=True) + b6[...]
    o_ref[...] = out.astype(o_ref.dtype)


# ------------------------------ the wrapper --------------------------------

def _round_up(n, m):
    return -(-n // m) * m


def forward(prepared, x, block_b=128):
    """x: anything reshapeable to (B, 11, 3, 3) — returns (B, 1) float32."""
    x2 = jnp.asarray(x, jnp.float32).reshape(-1, K0)
    b = x2.shape[0]
    bm = min(block_b, _round_up(b, 8))          # batch block (sublane multiple)
    b_pad = _round_up(b, bm)
    x2 = jnp.pad(x2, ((0, b_pad - b), (0, K0_PAD - K0)))     # K: 99 -> 128
    nb = b_pad // bm

    # Weights/biases: full-array blocks with a constant index_map -> DMA'd once
    # and kept VMEM-resident across the batch grid steps.
    w_specs = [pl.BlockSpec(p.shape, lambda i: (0, 0)) for p in prepared]

    out = pl.pallas_call(
        _fused_forward_kernel,
        out_shape=jax.ShapeDtypeStruct((b_pad, 1), jnp.float32),
        grid=(nb,),
        in_specs=[pl.BlockSpec((bm, K0_PAD), lambda i: (i, 0))] + w_specs,
        out_specs=pl.BlockSpec((bm, 1), lambda i: (i, 0)),
        compiler_params=pltpu.CompilerParams(
            dimension_semantics=("parallel",)),
    )(x2, *prepared)
    return out[:b]


# -------------------- one-time host-side weight preparation ----------------

def _im2col_weight(w):
    """(Cout, Cin, kh, kw) -> (kh*kw*Cin, Cout), rows tap-major / channel-minor,
    matching the NHWC-flat activation slices built inside the kernel."""
    w = np.asarray(w, np.float32)
    cout, cin, kh, kw = w.shape
    return w.transpose(2, 3, 1, 0).reshape(kh * kw * cin, cout)


def prepare_params(params, weight_dtype=ACT_DTYPE):
    w0, b0 = params["conv0"]
    w1, b1 = params["conv1"]
    w2, b2 = params["conv2"]
    w3, b3 = params["conv3"]
    w4, b4 = params["conv4"]
    wf1, bf1 = params["fc1"]
    wf2, bf2 = params["fc2"]

    # conv0 (1x1): block-diagonal dense matrix taking the NCHW-flat input
    # (index ci*9 + p) to an NHWC-flat output (index p*64 + co); contraction
    # dim zero-padded 99 -> 128.
    w0 = np.asarray(w0, np.float32).reshape(CH0, 11)
    d0 = np.zeros((K0_PAD, 9 * CH0), np.float32)
    for p in range(9):
        d0[p:K0:9, p * CH0:(p + 1) * CH0] = w0.T
    c0 = np.tile(np.asarray(b0, np.float32), 9)              # NHWC bias layout

    d1 = _im2col_weight(w1)                                  # (256, 128)
    c1 = np.asarray(b1, np.float32)
    d2 = _im2col_weight(w2)                                  # (512, 64)
    c2 = np.asarray(b2, np.float32)
    d3 = _im2col_weight(w3)                                  # (256, 256)
    c3 = np.asarray(b3, np.float32)
    d4 = _im2col_weight(w4)                                  # (1024, 480)
    d4 = np.pad(d4, ((0, 0), (0, CH4_PAD - CH4)))            # -> (1024, 512)
    c4 = np.pad(np.asarray(b4, np.float32), (0, CH4_PAD - CH4))

    d5 = np.asarray(wf1, np.float32).T                       # (480, 256)
    d5 = np.pad(d5, ((0, CH4_PAD - CH4), (0, 0)))            # -> (512, 256)
    c5 = np.asarray(bf1, np.float32)
    d6 = np.asarray(wf2, np.float32).reshape(1, CH5)         # (1, 256), f32
    c6 = np.asarray(bf2, np.float32).reshape(1, 1)

    def w_(m):
        return jnp.asarray(m, weight_dtype)

    def b_(v):
        return jnp.asarray(np.asarray(v, np.float32).reshape(1, -1))

    return (w_(d0), b_(c0), w_(d1), b_(c1), w_(d2), b_(c2),
            w_(d3), b_(c3), w_(d4), b_(c4),
            w_(d5), b_(c5), jnp.asarray(d6, jnp.float32), b_(c6))


# ------------------------------ parameter init -----------------------------

def init_params(key):
    """Deterministic PyTorch-like init: uniform(-1/sqrt(fan_in), +1/sqrt(fan_in))."""
    specs = {
        "conv0": (CH0, 11, 1, 1),
        "conv1": (CHRES, CH0, 2, 2),
        "conv2": (CH0, CHRES, 2, 2),
        "conv3": (CH3, CH0, 2, 2),
        "conv4": (CH4, CH3, 2, 2),
        "fc1": (CH5, CH4),
        "fc2": (1, CH5),
    }
    params = {}
    for name, shape in specs.items():
        key, kw_, kb_ = jax.random.split(key, 3)
        fan_in = math.prod(shape[1:])
        bound = 1.0 / math.sqrt(fan_in)
        w = jax.random.uniform(kw_, shape, jnp.float32, -bound, bound)
        b = jax.random.uniform(kb_, (shape[0],), jnp.float32, -bound, bound)
        params[name] = (w, b)
    return params


# ----------------------------------- main -----------------------------------

if __name__ == "__main__":
    key = jax.random.PRNGKey(0)
    pkey, xkey = jax.random.split(key)
    params = init_params(pkey)
    prepared = prepare_params(params)            # one-time host-side prep

    fwd = jax.jit(forward)

    # Small sanity shape (B=2), consistent with the module's expected input.
    x = jax.random.normal(xkey, (2, 11, 3, 3), jnp.float32)
    out = jax.block_until_ready(fwd(prepared, x))
    assert out.shape == (2, 1) and out.dtype == jnp.float32
    assert bool(jnp.all(jnp.isfinite(out)))

    # Exercise the batched / multi-block "parallel" grid path as well.
    xb = jax.random.normal(xkey, (136, 11, 3, 3), jnp.float32)
    outb = jax.block_until_ready(fwd(prepared, xb))
    assert outb.shape == (136, 1)
    assert bool(jnp.all(jnp.isfinite(outb)))

    print("KERNEL_OK")
</pallas_src>

<mosaic_0001>
module attributes {stable_mosaic.version = 11 : i64} {
  func.func @_fused_forward_kernel(%arg0: i32, %arg1: memref<8x128xf32, #tpu.memory_space<vmem>>, %arg2: memref<128x576xbf16, #tpu.memory_space<vmem>>, %arg3: memref<1x576xf32, #tpu.memory_space<vmem>>, %arg4: memref<256x128xbf16, #tpu.memory_space<vmem>>, %arg5: memref<1x128xf32, #tpu.memory_space<vmem>>, %arg6: memref<512x64xbf16, #tpu.memory_space<vmem>>, %arg7: memref<1x64xf32, #tpu.memory_space<vmem>>, %arg8: memref<256x256xbf16, #tpu.memory_space<vmem>>, %arg9: memref<1x256xf32, #tpu.memory_space<vmem>>, %arg10: memref<1024x512xbf16, #tpu.memory_space<vmem>>, %arg11: memref<1x512xf32, #tpu.memory_space<vmem>>, %arg12: memref<512x256xbf16, #tpu.memory_space<vmem>>, %arg13: memref<1x256xf32, #tpu.memory_space<vmem>>, %arg14: memref<1x256xf32, #tpu.memory_space<vmem>>, %arg15: memref<1x1xf32, #tpu.memory_space<vmem>>, %arg16: memref<8x1xf32, #tpu.memory_space<vmem>>) attributes {dimension_semantics = [#tpu.dimension_semantics<parallel>], iteration_bounds = array<i64: 1>, scalar_prefetch = 0 : i64, scratch_operands = 0 : i64, tpu.core_type = #tpu.core_type<tc>, window_params = [{transform_indices = @transform_0, window_bounds = array<i64: 8, 128>}, {pipeline_mode = #tpu.pipeline_mode<synchronous>, transform_indices = @transform_1, window_bounds = array<i64: 128, 576>}, {pipeline_mode = #tpu.pipeline_mode<synchronous>, transform_indices = @transform_2, window_bounds = array<i64: 1, 576>}, {pipeline_mode = #tpu.pipeline_mode<synchronous>, transform_indices = @transform_3, window_bounds = array<i64: 256, 128>}, {pipeline_mode = #tpu.pipeline_mode<synchronous>, transform_indices = @transform_4, window_bounds = array<i64: 1, 128>}, {pipeline_mode = #tpu.pipeline_mode<synchronous>, transform_indices = @transform_5, window_bounds = array<i64: 512, 64>}, {pipeline_mode = #tpu.pipeline_mode<synchronous>, transform_indices = @transform_6, window_bounds = array<i64: 1, 64>}, {pipeline_mode = #tpu.pipeline_mode<synchronous>, transform_indices = @transform_7, window_bounds = array<i64: 256, 256>}, {pipeline_mode = #tpu.pipeline_mode<synchronous>, transform_indices = @transform_8, window_bounds = array<i64: 1, 256>}, {pipeline_mode = #tpu.pipeline_mode<synchronous>, transform_indices = @transform_9, window_bounds = array<i64: 1024, 512>}, {pipeline_mode = #tpu.pipeline_mode<synchronous>, transform_indices = @transform_10, window_bounds = array<i64: 1, 512>}, {pipeline_mode = #tpu.pipeline_mode<synchronous>, transform_indices = @transform_11, window_bounds = array<i64: 512, 256>}, {pipeline_mode = #tpu.pipeline_mode<synchronous>, transform_indices = @transform_12, window_bounds = array<i64: 1, 256>}, {pipeline_mode = #tpu.pipeline_mode<synchronous>, transform_indices = @transform_13, window_bounds = array<i64: 1, 256>}, {pipeline_mode = #tpu.pipeline_mode<synchronous>, transform_indices = @transform_14, window_bounds = array<i64: 1, 1>}, {transform_indices = @transform_15, window_bounds = array<i64: 8, 1>}]} {
    %c0 = arith.constant 0 : index
    %c0_0 = arith.constant 0 : index
    %0 = vector.load %arg1[%c0, %c0_0] : memref<8x128xf32, #tpu.memory_space<vmem>>, vector<8x128xf32>
    %1 = arith.truncf %0 : vector<8x128xf32> to vector<8x128xbf16>
    %c0_1 = arith.constant 0 : index
    %c0_2 = arith.constant 0 : index
    %2 = vector.load %arg2[%c0_1, %c0_2] : memref<128x576xbf16, #tpu.memory_space<vmem>>, vector<128x576xbf16>
    %cst = arith.constant dense<0.000000e+00> : vector<8x576xf32>
    %3 = tpu.matmul %1, %2, %cst {dimension_numbers = #tpu.dot_dimension_numbers<[1], [0], [0], [1], [0, 0, 1, 1], [], []>} : vector<8x128xbf16>, vector<128x576xbf16>, vector<8x576xf32> -> vector<8x576xf32>
    %c0_3 = arith.constant 0 : index
    %c0_4 = arith.constant 0 : index
    %4 = vector.load %arg3[%c0_3, %c0_4] : memref<1x576xf32, #tpu.memory_space<vmem>>, vector<1x576xf32>
    %5 = vector.broadcast %4 : vector<1x576xf32> to vector<8x576xf32>
    %6 = arith.addf %3, %5 : vector<8x576xf32>
    %cst_5 = arith.constant 0.000000e+00 : f32
    %7 = vector.broadcast %cst_5 : f32 to vector<8x576xf32>
    %8 = arith.maximumf %6, %7 : vector<8x576xf32>
    %9 = arith.truncf %8 : vector<8x576xf32> to vector<8x576xbf16>
    %cst_6 = arith.constant 0.000000e+00 : bf16
    %10 = vector.broadcast %cst_6 : bf16 to vector<8x64xbf16>
    %cst_7 = arith.constant 0.000000e+00 : bf16
    %11 = vector.broadcast %cst_7 : bf16 to vector<8x320xbf16>
    %12 = vector.extract_strided_slice %9 {offsets = [0, 0], sizes = [8, 192], strides = [1, 1]} : vector<8x576xbf16> to vector<8x192xbf16>
    %13 = tpu.concatenate %10, %12, %10 in 1 : vector<8x64xbf16>, vector<8x192xbf16>, vector<8x64xbf16> -> vector<8x320xbf16>
    %14 = vector.extract_strided_slice %9 {offsets = [0, 192], sizes = [8, 192], strides = [1, 1]} : vector<8x576xbf16> to vector<8x192xbf16>
    %15 = tpu.concatenate %10, %14, %10 in 1 : vector<8x64xbf16>, vector<8x192xbf16>, vector<8x64xbf16> -> vector<8x320xbf16>
    %16 = vector.extract_strided_slice %9 {offsets = [0, 384], sizes = [8, 192], strides = [1, 1]} : vector<8x576xbf16> to vector<8x192xbf16>
    %17 = tpu.concatenate %10, %16, %10 in 1 : vector<8x64xbf16>, vector<8x192xbf16>, vector<8x64xbf16> -> vector<8x320xbf16>
    %18 = tpu.concatenate %11, %13, %15, %17, %11 in 1 : vector<8x320xbf16>, vector<8x320xbf16>, vector<8x320xbf16>, vector<8x320xbf16>, vector<8x320xbf16> -> vector<8x1600xbf16>
    %c0_8 = arith.constant 0 : index
    %c0_9 = arith.constant 0 : index
    %19 = vector.load %arg4[%c0_8, %c0_9] : memref<256x128xbf16, #tpu.memory_space<vmem>>, vector<256x128xbf16>
    %c0_10 = arith.constant 0 : index
    %c0_11 = arith.constant 0 : index
    %20 = vector.load %arg5[%c0_10, %c0_11] : memref<1x128xf32, #tpu.memory_space<vmem>>, vector<1x128xf32>
    %21 = vector.extract_strided_slice %18 {offsets = [0, 0], sizes = [8, 128], strides = [1, 1]} : vector<8x1600xbf16> to vector<8x128xbf16>
    %22 = vector.extract_strided_slice %18 {offsets = [0, 320], sizes = [8, 128], strides = [1, 1]} : vector<8x1600xbf16> to vector<8x128xbf16>
    %23 = tpu.concatenate %21, %22 in 1 : vector<8x128xbf16>, vector<8x128xbf16> -> vector<8x256xbf16>
    %cst_12 = arith.constant dense<0.000000e+00> : vector<8x128xf32>
    %24 = tpu.matmul %23, %19, %cst_12 {dimension_numbers = #tpu.dot_dimension_numbers<[1], [0], [0], [1], [0, 0, 1, 1], [], []>} : vector<8x256xbf16>, vector<256x128xbf16>, vector<8x128xf32> -> vector<8x128xf32>
    %25 = vector.broadcast %20 : vector<1x128xf32> to vector<8x128xf32>
    %26 = arith.addf %24, %25 : vector<8x128xf32>
    %cst_13 = arith.constant 0.000000e+00 : f32
    %27 = vector.broadcast %cst_13 : f32 to vector<8x128xf32>
    %28 = arith.maximumf %26, %27 : vector<8x128xf32>
    %29 = arith.truncf %28 : vector<8x128xf32> to vector<8x128xbf16>
    %30 = vector.extract_strided_slice %18 {offsets = [0, 64], sizes = [8, 128], strides = [1, 1]} : vector<8x1600xbf16> to vector<8x128xbf16>
    %31 = vector.extract_strided_slice %18 {offsets = [0, 384], sizes = [8, 128], strides = [1, 1]} : vector<8x1600xbf16> to vector<8x128xbf16>
    %32 = tpu.concatenate %30, %31 in 1 : vector<8x128xbf16>, vector<8x128xbf16> -> vector<8x256xbf16>
    %cst_14 = arith.constant dense<0.000000e+00> : vector<8x128xf32>
    %33 = tpu.matmul %32, %19, %cst_14 {dimension_numbers = #tpu.dot_dimension_numbers<[1], [0], [0], [1], [0, 0, 1, 1], [], []>} : vector<8x256xbf16>, vector<256x128xbf16>, vector<8x128xf32> -> vector<8x128xf32>
    %34 = vector.broadcast %20 : vector<1x128xf32> to vector<8x128xf32>
    %35 = arith.addf %33, %34 : vector<8x128xf32>
    %cst_15 = arith.constant 0.000000e+00 : f32
    %36 = vector.broadcast %cst_15 : f32 to vector<8x128xf32>
    %37 = arith.maximumf %35, %36 : vector<8x128xf32>
    %38 = arith.truncf %37 : vector<8x128xf32> to vector<8x128xbf16>
    %39 = vector.extract_strided_slice %18 {offsets = [0, 128], sizes = [8, 128], strides = [1, 1]} : vector<8x1600xbf16> to vector<8x128xbf16>
    %40 = vector.extract_strided_slice %18 {offsets = [0, 448], sizes = [8, 128], strides = [1, 1]} : vector<8x1600xbf16> to vector<8x128xbf16>
    %41 = tpu.concatenate %39, %40 in 1 : vector<8x128xbf16>, vector<8x128xbf16> -> vector<8x256xbf16>
    %cst_16 = arith.constant dense<0.000000e+00> : vector<8x128xf32>
    %42 = tpu.matmul %41, %19, %cst_16 {dimension_numbers = #tpu.dot_dimension_numbers<[1], [0], [0], [1], [0, 0, 1, 1], [], []>} : vector<8x256xbf16>, vector<256x128xbf16>, vector<8x128xf32> -> vector<8x128xf32>
    %43 = vector.broadcast %20 : vector<1x128xf32> to vector<8x128xf32>
    %44 = arith.addf %42, %43 : vector<8x128xf32>
    %cst_17 = arith.constant 0.000000e+00 : f32
    %45 = vector.broadcast %cst_17 : f32 to vector<8x128xf32>
    %46 = arith.maximumf %44, %45 : vector<8x128xf32>
    %47 = arith.truncf %46 : vector<8x128xf32> to vector<8x128xbf16>
    %48 = vector.extract_strided_slice %18 {offsets = [0, 192], sizes = [8, 128], strides = [1, 1]} : vector<8x1600xbf16> to vector<8x128xbf16>
    %49 = vector.extract_strided_slice %18 {offsets = [0, 512], sizes = [8, 128], strides = [1, 1]} : vector<8x1600xbf16> to vector<8x128xbf16>
    %50 = tpu.concatenate %48, %49 in 1 : vector<8x128xbf16>, vector<8x128xbf16> -> vector<8x256xbf16>
    %cst_18 = arith.constant dense<0.000000e+00> : vector<8x128xf32>
    %51 = tpu.matmul %50, %19, %cst_18 {dimension_numbers = #tpu.dot_dimension_numbers<[1], [0], [0], [1], [0, 0, 1, 1], [], []>} : vector<8x256xbf16>, vector<256x128xbf16>, vector<8x128xf32> -> vector<8x128xf32>
    %52 = vector.broadcast %20 : vector<1x128xf32> to vector<8x128xf32>
    %53 = arith.addf %51, %52 : vector<8x128xf32>
    %cst_19 = arith.constant 0.000000e+00 : f32
    %54 = vector.broadcast %cst_19 : f32 to vector<8x128xf32>
    %55 = arith.maximumf %53, %54 : vector<8x128xf32>
    %56 = arith.truncf %55 : vector<8x128xf32> to vector<8x128xbf16>
    %57 = vector.extract_strided_slice %18 {offsets = [0, 320], sizes = [8, 128], strides = [1, 1]} : vector<8x1600xbf16> to vector<8x128xbf16>
    %58 = vector.extract_strided_slice %18 {offsets = [0, 640], sizes = [8, 128], strides = [1, 1]} : vector<8x1600xbf16> to vector<8x128xbf16>
    %59 = tpu.concatenate %57, %58 in 1 : vector<8x128xbf16>, vector<8x128xbf16> -> vector<8x256xbf16>
    %cst_20 = arith.constant dense<0.000000e+00> : vector<8x128xf32>
    %60 = tpu.matmul %59, %19, %cst_20 {dimension_numbers = #tpu.dot_dimension_numbers<[1], [0], [0], [1], [0, 0, 1, 1], [], []>} : vector<8x256xbf16>, vector<256x128xbf16>, vector<8x128xf32> -> vector<8x128xf32>
    %61 = vector.broadcast %20 : vector<1x128xf32> to vector<8x128xf32>
    %62 = arith.addf %60, %61 : vector<8x128xf32>
    %cst_21 = arith.constant 0.000000e+00 : f32
    %63 = vector.broadcast %cst_21 : f32 to vector<8x128xf32>
    %64 = arith.maximumf %62, %63 : vector<8x128xf32>
    %65 = arith.truncf %64 : vector<8x128xf32> to vector<8x128xbf16>
    %66 = vector.extract_strided_slice %18 {offsets = [0, 384], sizes = [8, 128], strides = [1, 1]} : vector<8x1600xbf16> to vector<8x128xbf16>
    %67 = vector.extract_strided_slice %18 {offsets = [0, 704], sizes = [8, 128], strides = [1, 1]} : vector<8x1600xbf16> to vector<8x128xbf16>
    %68 = tpu.concatenate %66, %67 in 1 : vector<8x128xbf16>, vector<8x128xbf16> -> vector<8x256xbf16>
    %cst_22 = arith.constant dense<0.000000e+00> : vector<8x128xf32>
    %69 = tpu.matmul %68, %19, %cst_22 {dimension_numbers = #tpu.dot_dimension_numbers<[1], [0], [0], [1], [0, 0, 1, 1], [], []>} : vector<8x256xbf16>, vector<256x128xbf16>, vector<8x128xf32> -> vector<8x128xf32>
    %70 = vector.broadcast %20 : vector<1x128xf32> to vector<8x128xf32>
    %71 = arith.addf %69, %70 : vector<8x128xf32>
    %cst_23 = arith.constant 0.000000e+00 : f32
    %72 = vector.broadcast %cst_23 : f32 to vector<8x128xf32>
    %73 = arith.maximumf %71, %72 : vector<8x128xf32>
    %74 = arith.truncf %73 : vector<8x128xf32> to vector<8x128xbf16>
    %75 = vector.extract_strided_slice %18 {offsets = [0, 448], sizes = [8, 128], strides = [1, 1]} : vector<8x1600xbf16> to vector<8x128xbf16>
    %76 = vector.extract_strided_slice %18 {offsets = [0, 768], sizes = [8, 128], strides = [1, 1]} : vector<8x1600xbf16> to vector<8x128xbf16>
    %77 = tpu.concatenate %75, %76 in 1 : vector<8x128xbf16>, vector<8x128xbf16> -> vector<8x256xbf16>
    %cst_24 = arith.constant dense<0.000000e+00> : vector<8x128xf32>
    %78 = tpu.matmul %77, %19, %cst_24 {dimension_numbers = #tpu.dot_dimension_numbers<[1], [0], [0], [1], [0, 0, 1, 1], [], []>} : vector<8x256xbf16>, vector<256x128xbf16>, vector<8x128xf32> -> vector<8x128xf32>
    %79 = vector.broadcast %20 : vector<1x128xf32> to vector<8x128xf32>
    %80 = arith.addf %78, %79 : vector<8x128xf32>
    %cst_25 = arith.constant 0.000000e+00 : f32
    %81 = vector.broadcast %cst_25 : f32 to vector<8x128xf32>
    %82 = arith.maximumf %80, %81 : vector<8x128xf32>
    %83 = arith.truncf %82 : vector<8x128xf32> to vector<8x128xbf16>
    %84 = vector.extract_strided_slice %18 {offsets = [0, 512], sizes = [8, 128], strides = [1, 1]} : vector<8x1600xbf16> to vector<8x128xbf16>
    %85 = vector.extract_strided_slice %18 {offsets = [0, 832], sizes = [8, 128], strides = [1, 1]} : vector<8x1600xbf16> to vector<8x128xbf16>
    %86 = tpu.concatenate %84, %85 in 1 : vector<8x128xbf16>, vector<8x128xbf16> -> vector<8x256xbf16>
    %cst_26 = arith.constant dense<0.000000e+00> : vector<8x128xf32>
    %87 = tpu.matmul %86, %19, %cst_26 {dimension_numbers = #tpu.dot_dimension_numbers<[1], [0], [0], [1], [0, 0, 1, 1], [], []>} : vector<8x256xbf16>, vector<256x128xbf16>, vector<8x128xf32> -> vector<8x128xf32>
    %88 = vector.broadcast %20 : vector<1x128xf32> to vector<8x128xf32>
    %89 = arith.addf %87, %88 : vector<8x128xf32>
    %cst_27 = arith.constant 0.000000e+00 : f32
    %90 = vector.broadcast %cst_27 : f32 to vector<8x128xf32>
    %91 = arith.maximumf %89, %90 : vector<8x128xf32>
    %92 = arith.truncf %91 : vector<8x128xf32> to vector<8x128xbf16>
    %93 = vector.extract_strided_slice %18 {offsets = [0, 640], sizes = [8, 128], strides = [1, 1]} : vector<8x1600xbf16> to vector<8x128xbf16>
    %94 = vector.extract_strided_slice %18 {offsets = [0, 960], sizes = [8, 128], strides = [1, 1]} : vector<8x1600xbf16> to vector<8x128xbf16>
    %95 = tpu.concatenate %93, %94 in 1 : vector<8x128xbf16>, vector<8x128xbf16> -> vector<8x256xbf16>
    %cst_28 = arith.constant dense<0.000000e+00> : vector<8x128xf32>
    %96 = tpu.matmul %95, %19, %cst_28 {dimension_numbers = #tpu.dot_dimension_numbers<[1], [0], [0], [1], [0, 0, 1, 1], [], []>} : vector<8x256xbf16>, vector<256x128xbf16>, vector<8x128xf32> -> vector<8x128xf32>
    %97 = vector.broadcast %20 : vector<1x128xf32> to vector<8x128xf32>
    %98 = arith.addf %96, %97 : vector<8x128xf32>
    %cst_29 = arith.constant 0.000000e+00 : f32
    %99 = vector.broadcast %cst_29 : f32 to vector<8x128xf32>
    %100 = arith.maximumf %98, %99 : vector<8x128xf32>
    %101 = arith.truncf %100 : vector<8x128xf32> to vector<8x128xbf16>
    %102 = vector.extract_strided_slice %18 {offsets = [0, 704], sizes = [8, 128], strides = [1, 1]} : vector<8x1600xbf16> to vector<8x128xbf16>
    %103 = vector.extract_strided_slice %18 {offsets = [0, 1024], sizes = [8, 128], strides = [1, 1]} : vector<8x1600xbf16> to vector<8x128xbf16>
    %104 = tpu.concatenate %102, %103 in 1 : vector<8x128xbf16>, vector<8x128xbf16> -> vector<8x256xbf16>
    %cst_30 = arith.constant dense<0.000000e+00> : vector<8x128xf32>
    %105 = tpu.matmul %104, %19, %cst_30 {dimension_numbers = #tpu.dot_dimension_numbers<[1], [0], [0], [1], [0, 0, 1, 1], [], []>} : vector<8x256xbf16>, vector<256x128xbf16>, vector<8x128xf32> -> vector<8x128xf32>
    %106 = vector.broadcast %20 : vector<1x128xf32> to vector<8x128xf32>
    %107 = arith.addf %105, %106 : vector<8x128xf32>
    %cst_31 = arith.constant 0.000000e+00 : f32
    %108 = vector.broadcast %cst_31 : f32 to vector<8x128xf32>
    %109 = arith.maximumf %107, %108 : vector<8x128xf32>
    %110 = arith.truncf %109 : vector<8x128xf32> to vector<8x128xbf16>
    %111 = vector.extract_strided_slice %18 {offsets = [0, 768], sizes = [8, 128], strides = [1, 1]} : vector<8x1600xbf16> to vector<8x128xbf16>
    %112 = vector.extract_strided_slice %18 {offsets = [0, 1088], sizes = [8, 128], strides = [1, 1]} : vector<8x1600xbf16> to vector<8x128xbf16>
    %113 = tpu.concatenate %111, %112 in 1 : vector<8x128xbf16>, vector<8x128xbf16> -> vector<8x256xbf16>
    %cst_32 = arith.constant dense<0.000000e+00> : vector<8x128xf32>
    %114 = tpu.matmul %113, %19, %cst_32 {dimension_numbers = #tpu.dot_dimension_numbers<[1], [0], [0], [1], [0, 0, 1, 1], [], []>} : vector<8x256xbf16>, vector<256x128xbf16>, vector<8x128xf32> -> vector<8x128xf32>
    %115 = vector.broadcast %20 : vector<1x128xf32> to vector<8x128xf32>
    %116 = arith.addf %114, %115 : vector<8x128xf32>
    %cst_33 = arith.constant 0.000000e+00 : f32
    %117 = vector.broadcast %cst_33 : f32 to vector<8x128xf32>
    %118 = arith.maximumf %116, %117 : vector<8x128xf32>
    %119 = arith.truncf %118 : vector<8x128xf32> to vector<8x128xbf16>
    %120 = vector.extract_strided_slice %18 {offsets = [0, 832], sizes = [8, 128], strides = [1, 1]} : vector<8x1600xbf16> to vector<8x128xbf16>
    %121 = vector.extract_strided_slice %18 {offsets = [0, 1152], sizes = [8, 128], strides = [1, 1]} : vector<8x1600xbf16> to vector<8x128xbf16>
    %122 = tpu.concatenate %120, %121 in 1 : vector<8x128xbf16>, vector<8x128xbf16> -> vector<8x256xbf16>
    %cst_34 = arith.constant dense<0.000000e+00> : vector<8x128xf32>
    %123 = tpu.matmul %122, %19, %cst_34 {dimension_numbers = #tpu.dot_dimension_numbers<[1], [0], [0], [1], [0, 0, 1, 1], [], []>} : vector<8x256xbf16>, vector<256x128xbf16>, vector<8x128xf32> -> vector<8x128xf32>
    %124 = vector.broadcast %20 : vector<1x128xf32> to vector<8x128xf32>
    %125 = arith.addf %123, %124 : vector<8x128xf32>
    %cst_35 = arith.constant 0.000000e+00 : f32
    %126 = vector.broadcast %cst_35 : f32 to vector<8x128xf32>
    %127 = arith.maximumf %125, %126 : vector<8x128xf32>
    %128 = arith.truncf %127 : vector<8x128xf32> to vector<8x128xbf16>
    %129 = vector.extract_strided_slice %18 {offsets = [0, 960], sizes = [8, 128], strides = [1, 1]} : vector<8x1600xbf16> to vector<8x128xbf16>
    %130 = vector.extract_strided_slice %18 {offsets = [0, 1280], sizes = [8, 128], strides = [1, 1]} : vector<8x1600xbf16> to vector<8x128xbf16>
    %131 = tpu.concatenate %129, %130 in 1 : vector<8x128xbf16>, vector<8x128xbf16> -> vector<8x256xbf16>
    %cst_36 = arith.constant dense<0.000000e+00> : vector<8x128xf32>
    %132 = tpu.matmul %131, %19, %cst_36 {dimension_numbers = #tpu.dot_dimension_numbers<[1], [0], [0], [1], [0, 0, 1, 1], [], []>} : vector<8x256xbf16>, vector<256x128xbf16>, vector<8x128xf32> -> vector<8x128xf32>
    %133 = vector.broadcast %20 : vector<1x128xf32> to vector<8x128xf32>
    %134 = arith.addf %132, %133 : vector<8x128xf32>
    %cst_37 = arith.constant 0.000000e+00 : f32
    %135 = vector.broadcast %cst_37 : f32 to vector<8x128xf32>
    %136 = arith.maximumf %134, %135 : vector<8x128xf32>
    %137 = arith.truncf %136 : vector<8x128xf32> to vector<8x128xbf16>
    %138 = vector.extract_strided_slice %18 {offsets = [0, 1024], sizes = [8, 128], strides = [1, 1]} : vector<8x1600xbf16> to vector<8x128xbf16>
    %139 = vector.extract_strided_slice %18 {offsets = [0, 1344], sizes = [8, 128], strides = [1, 1]} : vector<8x1600xbf16> to vector<8x128xbf16>
    %140 = tpu.concatenate %138, %139 in 1 : vector<8x128xbf16>, vector<8x128xbf16> -> vector<8x256xbf16>
    %cst_38 = arith.constant dense<0.000000e+00> : vector<8x128xf32>
    %141 = tpu.matmul %140, %19, %cst_38 {dimension_numbers = #tpu.dot_dimension_numbers<[1], [0], [0], [1], [0, 0, 1, 1], [], []>} : vector<8x256xbf16>, vector<256x128xbf16>, vector<8x128xf32> -> vector<8x128xf32>
    %142 = vector.broadcast %20 : vector<1x128xf32> to vector<8x128xf32>
    %143 = arith.addf %141, %142 : vector<8x128xf32>
    %cst_39 = arith.constant 0.000000e+00 : f32
    %144 = vector.broadcast %cst_39 : f32 to vector<8x128xf32>
    %145 = arith.maximumf %143, %144 : vector<8x128xf32>
    %146 = arith.truncf %145 : vector<8x128xf32> to vector<8x128xbf16>
    %147 = vector.extract_strided_slice %18 {offsets = [0, 1088], sizes = [8, 128], strides = [1, 1]} : vector<8x1600xbf16> to vector<8x128xbf16>
    %148 = vector.extract_strided_slice %18 {offsets = [0, 1408], sizes = [8, 128], strides = [1, 1]} : vector<8x1600xbf16> to vector<8x128xbf16>
    %149 = tpu.concatenate %147, %148 in 1 : vector<8x128xbf16>, vector<8x128xbf16> -> vector<8x256xbf16>
    %cst_40 = arith.constant dense<0.000000e+00> : vector<8x128xf32>
    %150 = tpu.matmul %149, %19, %cst_40 {dimension_numbers = #tpu.dot_dimension_numbers<[1], [0], [0], [1], [0, 0, 1, 1], [], []>} : vector<8x256xbf16>, vector<256x128xbf16>, vector<8x128xf32> -> vector<8x128xf32>
    %151 = vector.broadcast %20 : vector<1x128xf32> to vector<8x128xf32>
    %152 = arith.addf %150, %151 : vector<8x128xf32>
    %cst_41 = arith.constant 0.000000e+00 : f32
    %153 = vector.broadcast %cst_41 : f32 to vector<8x128xf32>
    %154 = arith.maximumf %152, %153 : vector<8x128xf32>
    %155 = arith.truncf %154 : vector<8x128xf32> to vector<8x128xbf16>
    %156 = vector.extract_strided_slice %18 {offsets = [0, 1152], sizes = [8, 128], strides = [1, 1]} : vector<8x1600xbf16> to vector<8x128xbf16>
    %157 = vector.extract_strided_slice %18 {offsets = [0, 1472], sizes = [8, 128], strides = [1, 1]} : vector<8x1600xbf16> to vector<8x128xbf16>
    %158 = tpu.concatenate %156, %157 in 1 : vector<8x128xbf16>, vector<8x128xbf16> -> vector<8x256xbf16>
    %cst_42 = arith.constant dense<0.000000e+00> : vector<8x128xf32>
    %159 = tpu.matmul %158, %19, %cst_42 {dimension_numbers = #tpu.dot_dimension_numbers<[1], [0], [0], [1], [0, 0, 1, 1], [], []>} : vector<8x256xbf16>, vector<256x128xbf16>, vector<8x128xf32> -> vector<8x128xf32>
    %160 = vector.broadcast %20 : vector<1x128xf32> to vector<8x128xf32>
    %161 = arith.addf %159, %160 : vector<8x128xf32>
    %cst_43 = arith.constant 0.000000e+00 : f32
    %162 = vector.broadcast %cst_43 : f32 to vector<8x128xf32>
    %163 = arith.maximumf %161, %162 : vector<8x128xf32>
    %164 = arith.truncf %163 : vector<8x128xf32> to vector<8x128xbf16>
    %165 = tpu.concatenate %29, %38, %47, %56, %65, %74, %83, %92, %101, %110, %119, %128, %137, %146, %155, %164 in 1 : vector<8x128xbf16>, vector<8x128xbf16>, vector<8x128xbf16>, vector<8x128xbf16>, vector<8x128xbf16>, vector<8x128xbf16>, vector<8x128xbf16>, vector<8x128xbf16>, vector<8x128xbf16>, vector<8x128xbf16>, vector<8x128xbf16>, vector<8x128xbf16>, vector<8x128xbf16>, vector<8x128xbf16>, vector<8x128xbf16>, vector<8x128xbf16> -> vector<8x2048xbf16>
    %c0_44 = arith.constant 0 : index
    %c0_45 = arith.constant 0 : index
    %166 = vector.load %arg6[%c0_44, %c0_45] : memref<512x64xbf16, #tpu.memory_space<vmem>>, vector<512x64xbf16>
    %c0_46 = arith.constant 0 : index
    %c0_47 = arith.constant 0 : index
    %167 = vector.load %arg7[%c0_46, %c0_47] : memref<1x64xf32, #tpu.memory_space<vmem>>, vector<1x64xf32>
    %168 = vector.extract_strided_slice %165 {offsets = [0, 0], sizes = [8, 256], strides = [1, 1]} : vector<8x2048xbf16> to vector<8x256xbf16>
    %169 = vector.extract_strided_slice %165 {offsets = [0, 512], sizes = [8, 256], strides = [1, 1]} : vector<8x2048xbf16> to vector<8x256xbf16>
    %170 = tpu.concatenate %168, %169 in 1 : vector<8x256xbf16>, vector<8x256xbf16> -> vector<8x512xbf16>
    %cst_48 = arith.constant dense<0.000000e+00> : vector<8x64xf32>
    %171 = tpu.matmul %170, %166, %cst_48 {dimension_numbers = #tpu.dot_dimension_numbers<[1], [0], [0], [1], [0, 0, 1, 1], [], []>} : vector<8x512xbf16>, vector<512x64xbf16>, vector<8x64xf32> -> vector<8x64xf32>
    %172 = vector.broadcast %167 : vector<1x64xf32> to vector<8x64xf32>
    %173 = arith.addf %171, %172 : vector<8x64xf32>
    %cst_49 = arith.constant 0.000000e+00 : f32
    %174 = vector.broadcast %cst_49 : f32 to vector<8x64xf32>
    %175 = arith.maximumf %173, %174 : vector<8x64xf32>
    %176 = vector.extract_strided_slice %8 {offsets = [0, 0], sizes = [8, 64], strides = [1, 1]} : vector<8x576xf32> to vector<8x64xf32>
    %177 = arith.addf %175, %176 : vector<8x64xf32>
    %178 = arith.truncf %177 : vector<8x64xf32> to vector<8x64xbf16>
    %179 = vector.extract_strided_slice %165 {offsets = [0, 128], sizes = [8, 256], strides = [1, 1]} : vector<8x2048xbf16> to vector<8x256xbf16>
    %180 = vector.extract_strided_slice %165 {offsets = [0, 640], sizes = [8, 256], strides = [1, 1]} : vector<8x2048xbf16> to vector<8x256xbf16>
    %181 = tpu.concatenate %179, %180 in 1 : vector<8x256xbf16>, vector<8x256xbf16> -> vector<8x512xbf16>
    %cst_50 = arith.constant dense<0.000000e+00> : vector<8x64xf32>
    %182 = tpu.matmul %181, %166, %cst_50 {dimension_numbers = #tpu.dot_dimension_numbers<[1], [0], [0], [1], [0, 0, 1, 1], [], []>} : vector<8x512xbf16>, vector<512x64xbf16>, vector<8x64xf32> -> vector<8x64xf32>
    %183 = vector.broadcast %167 : vector<1x64xf32> to vector<8x64xf32>
    %184 = arith.addf %182, %183 : vector<8x64xf32>
    %cst_51 = arith.constant 0.000000e+00 : f32
    %185 = vector.broadcast %cst_51 : f32 to vector<8x64xf32>
    %186 = arith.maximumf %184, %185 : vector<8x64xf32>
    %187 = vector.extract_strided_slice %8 {offsets = [0, 64], sizes = [8, 64], strides = [1, 1]} : vector<8x576xf32> to vector<8x64xf32>
    %188 = arith.addf %186, %187 : vector<8x64xf32>
    %189 = arith.truncf %188 : vector<8x64xf32> to vector<8x64xbf16>
    %190 = vector.extract_strided_slice %165 {offsets = [0, 256], sizes = [8, 256], strides = [1, 1]} : vector<8x2048xbf16> to vector<8x256xbf16>
    %191 = vector.extract_strided_slice %165 {offsets = [0, 768], sizes = [8, 256], strides = [1, 1]} : vector<8x2048xbf16> to vector<8x256xbf16>
    %192 = tpu.concatenate %190, %191 in 1 : vector<8x256xbf16>, vector<8x256xbf16> -> vector<8x512xbf16>
    %cst_52 = arith.constant dense<0.000000e+00> : vector<8x64xf32>
    %193 = tpu.matmul %192, %166, %cst_52 {dimension_numbers = #tpu.dot_dimension_numbers<[1], [0], [0], [1], [0, 0, 1, 1], [], []>} : vector<8x512xbf16>, vector<512x64xbf16>, vector<8x64xf32> -> vector<8x64xf32>
    %194 = vector.broadcast %167 : vector<1x64xf32> to vector<8x64xf32>
    %195 = arith.addf %193, %194 : vector<8x64xf32>
    %cst_53 = arith.constant 0.000000e+00 : f32
    %196 = vector.broadcast %cst_53 : f32 to vector<8x64xf32>
    %197 = arith.maximumf %195, %196 : vector<8x64xf32>
    %198 = vector.extract_strided_slice %8 {offsets = [0, 128], sizes = [8, 64], strides = [1, 1]} : vector<8x576xf32> to vector<8x64xf32>
    %199 = arith.addf %197, %198 : vector<8x64xf32>
    %200 = arith.truncf %199 : vector<8x64xf32> to vector<8x64xbf16>
    %201 = vector.extract_strided_slice %165 {offsets = [0, 512], sizes = [8, 256], strides = [1, 1]} : vector<8x2048xbf16> to vector<8x256xbf16>
    %202 = vector.extract_strided_slice %165 {offsets = [0, 1024], sizes = [8, 256], strides = [1, 1]} : vector<8x2048xbf16> to vector<8x256xbf16>
    %203 = tpu.concatenate %201, %202 in 1 : vector<8x256xbf16>, vector<8x256xbf16> -> vector<8x512xbf16>
    %cst_54 = arith.constant dense<0.000000e+00> : vector<8x64xf32>
    %204 = tpu.matmul %203, %166, %cst_54 {dimension_numbers = #tpu.dot_dimension_numbers<[1], [0], [0], [1], [0, 0, 1, 1], [], []>} : vector<8x512xbf16>, vector<512x64xbf16>, vector<8x64xf32> -> vector<8x64xf32>
    %205 = vector.broadcast %167 : vector<1x64xf32> to vector<8x64xf32>
    %206 = arith.addf %204, %205 : vector<8x64xf32>
    %cst_55 = arith.constant 0.000000e+00 : f32
    %207 = vector.broadcast %cst_55 : f32 to vector<8x64xf32>
    %208 = arith.maximumf %206, %207 : vector<8x64xf32>
    %209 = vector.extract_strided_slice %8 {offsets = [0, 192], sizes = [8, 64], strides = [1, 1]} : vector<8x576xf32> to vector<8x64xf32>
    %210 = arith.addf %208, %209 : vector<8x64xf32>
    %211 = arith.truncf %210 : vector<8x64xf32> to vector<8x64xbf16>
    %212 = vector.extract_strided_slice %165 {offsets = [0, 640], sizes = [8, 256], strides = [1, 1]} : vector<8x2048xbf16> to vector<8x256xbf16>
    %213 = vector.extract_strided_slice %165 {offsets = [0, 1152], sizes = [8, 256], strides = [1, 1]} : vector<8x2048xbf16> to vector<8x256xbf16>
    %214 = tpu.concatenate %212, %213 in 1 : vector<8x256xbf16>, vector<8x256xbf16> -> vector<8x512xbf16>
    %cst_56 = arith.constant dense<0.000000e+00> : vector<8x64xf32>
    %215 = tpu.matmul %214, %166, %cst_56 {dimension_numbers = #tpu.dot_dimension_numbers<[1], [0], [0], [1], [0, 0, 1, 1], [], []>} : vector<8x512xbf16>, vector<512x64xbf16>, vector<8x64xf32> -> vector<8x64xf32>
    %216 = vector.broadcast %167 : vector<1x64xf32> to vector<8x64xf32>
    %217 = arith.addf %215, %216 : vector<8x64xf32>
    %cst_57 = arith.constant 0.000000e+00 : f32
    %218 = vector.broadcast %cst_57 : f32 to vector<8x64xf32>
    %219 = arith.maximumf %217, %218 : vector<8x64xf32>
    %220 = vector.extract_strided_slice %8 {offsets = [0, 256], sizes = [8, 64], strides = [1, 1]} : vector<8x576xf32> to vector<8x64xf32>
    %221 = arith.addf %219, %220 : vector<8x64xf32>
    %222 = arith.truncf %221 : vector<8x64xf32> to vector<8x64xbf16>
    %223 = vector.extract_strided_slice %165 {offsets = [0, 768], sizes = [8, 256], strides = [1, 1]} : vector<8x2048xbf16> to vector<8x256xbf16>
    %224 = vector.extract_strided_slice %165 {offsets = [0, 1280], sizes = [8, 256], strides = [1, 1]} : vector<8x2048xbf16> to vector<8x256xbf16>
    %225 = tpu.concatenate %223, %224 in 1 : vector<8x256xbf16>, vector<8x256xbf16> -> vector<8x512xbf16>
    %cst_58 = arith.constant dense<0.000000e+00> : vector<8x64xf32>
    %226 = tpu.matmul %225, %166, %cst_58 {dimension_numbers = #tpu.dot_dimension_numbers<[1], [0], [0], [1], [0, 0, 1, 1], [], []>} : vector<8x512xbf16>, vector<512x64xbf16>, vector<8x64xf32> -> vector<8x64xf32>
    %227 = vector.broadcast %167 : vector<1x64xf32> to vector<8x64xf32>
    %228 = arith.addf %226, %227 : vector<8x64xf32>
    %cst_59 = arith.constant 0.000000e+00 : f32
    %229 = vector.broadcast %cst_59 : f32 to vector<8x64xf32>
    %230 = arith.maximumf %228, %229 : vector<8x64xf32>
    %231 = vector.extract_strided_slice %8 {offsets = [0, 320], sizes = [8, 64], strides = [1, 1]} : vector<8x576xf32> to vector<8x64xf32>
    %232 = arith.addf %230, %231 : vector<8x64xf32>
    %233 = arith.truncf %232 : vector<8x64xf32> to vector<8x64xbf16>
    %234 = vector.extract_strided_slice %165 {offsets = [0, 1024], sizes = [8, 256], strides = [1, 1]} : vector<8x2048xbf16> to vector<8x256xbf16>
    %235 = vector.extract_strided_slice %165 {offsets = [0, 1536], sizes = [8, 256], strides = [1, 1]} : vector<8x2048xbf16> to vector<8x256xbf16>
    %236 = tpu.concatenate %234, %235 in 1 : vector<8x256xbf16>, vector<8x256xbf16> -> vector<8x512xbf16>
    %cst_60 = arith.constant dense<0.000000e+00> : vector<8x64xf32>
    %237 = tpu.matmul %236, %166, %cst_60 {dimension_numbers = #tpu.dot_dimension_numbers<[1], [0], [0], [1], [0, 0, 1, 1], [], []>} : vector<8x512xbf16>, vector<512x64xbf16>, vector<8x64xf32> -> vector<8x64xf32>
    %238 = vector.broadcast %167 : vector<1x64xf32> to vector<8x64xf32>
    %239 = arith.addf %237, %238 : vector<8x64xf32>
    %cst_61 = arith.constant 0.000000e+00 : f32
    %240 = vector.broadcast %cst_61 : f32 to vector<8x64xf32>
    %241 = arith.maximumf %239, %240 : vector<8x64xf32>
    %242 = vector.extract_strided_slice %8 {offsets = [0, 384], sizes = [8, 64], strides = [1, 1]} : vector<8x576xf32> to vector<8x64xf32>
    %243 = arith.addf %241, %242 : vector<8x64xf32>
    %244 = arith.truncf %243 : vector<8x64xf32> to vector<8x64xbf16>
    %245 = vector.extract_strided_slice %165 {offsets = [0, 1152], sizes = [8, 256], strides = [1, 1]} : vector<8x2048xbf16> to vector<8x256xbf16>
    %246 = vector.extract_strided_slice %165 {offsets = [0, 1664], sizes = [8, 256], strides = [1, 1]} : vector<8x2048xbf16> to vector<8x256xbf16>
    %247 = tpu.concatenate %245, %246 in 1 : vector<8x256xbf16>, vector<8x256xbf16> -> vector<8x512xbf16>
    %cst_62 = arith.constant dense<0.000000e+00> : vector<8x64xf32>
    %248 = tpu.matmul %247, %166, %cst_62 {dimension_numbers = #tpu.dot_dimension_numbers<[1], [0], [0], [1], [0, 0, 1, 1], [], []>} : vector<8x512xbf16>, vector<512x64xbf16>, vector<8x64xf32> -> vector<8x64xf32>
    %249 = vector.broadcast %167 : vector<1x64xf32> to vector<8x64xf32>
    %250 = arith.addf %248, %249 : vector<8x64xf32>
    %cst_63 = arith.constant 0.000000e+00 : f32
    %251 = vector.broadcast %cst_63 : f32 to vector<8x64xf32>
    %252 = arith.maximumf %250, %251 : vector<8x64xf32>
    %253 = vector.extract_strided_slice %8 {offsets = [0, 448], sizes = [8, 64], strides = [1, 1]} : vector<8x576xf32> to vector<8x64xf32>
    %254 = arith.addf %252, %253 : vector<8x64xf32>
    %255 = arith.truncf %254 : vector<8x64xf32> to vector<8x64xbf16>
    %256 = vector.extract_strided_slice %165 {offsets = [0, 1280], sizes = [8, 256], strides = [1, 1]} : vector<8x2048xbf16> to vector<8x256xbf16>
    %257 = vector.extract_strided_slice %165 {offsets = [0, 1792], sizes = [8, 256], strides = [1, 1]} : vector<8x2048xbf16> to vector<8x256xbf16>
    %258 = tpu.concatenate %256, %257 in 1 : vector<8x256xbf16>, vector<8x256xbf16> -> vector<8x512xbf16>
    %cst_64 = arith.constant dense<0.000000e+00> : vector<8x64xf32>
    %259 = tpu.matmul %258, %166, %cst_64 {dimension_numbers = #tpu.dot_dimension_numbers<[1], [0], [0], [1], [0, 0, 1, 1], [], []>} : vector<8x512xbf16>, vector<512x64xbf16>, vector<8x64xf32> -> vector<8x64xf32>
    %260 = vector.broadcast %167 : vector<1x64xf32> to vector<8x64xf32>
    %261 = arith.addf %259, %260 : vector<8x64xf32>
    %cst_65 = arith.constant 0.000000e+00 : f32
    %262 = vector.broadcast %cst_65 : f32 to vector<8x64xf32>
    %263 = arith.maximumf %261, %262 : vector<8x64xf32>
    %264 = vector.extract_strided_slice %8 {offsets = [0, 512], sizes = [8, 64], strides = [1, 1]} : vector<8x576xf32> to vector<8x64xf32>
    %265 = arith.addf %263, %264 : vector<8x64xf32>
    %266 = arith.truncf %265 : vector<8x64xf32> to vector<8x64xbf16>
    %267 = tpu.concatenate %178, %189, %200, %211, %222, %233, %244, %255, %266 in 1 : vector<8x64xbf16>, vector<8x64xbf16>, vector<8x64xbf16>, vector<8x64xbf16>, vector<8x64xbf16>, vector<8x64xbf16>, vector<8x64xbf16>, vector<8x64xbf16>, vector<8x64xbf16> -> vector<8x576xbf16>
    %c0_66 = arith.constant 0 : index
    %c0_67 = arith.constant 0 : index
    %268 = vector.load %arg8[%c0_66, %c0_67] : memref<256x256xbf16, #tpu.memory_space<vmem>>, vector<256x256xbf16>
    %c0_68 = arith.constant 0 : index
    %c0_69 = arith.constant 0 : index
    %269 = vector.load %arg9[%c0_68, %c0_69] : memref<1x256xf32, #tpu.memory_space<vmem>>, vector<1x256xf32>
    %270 = vector.extract_strided_slice %267 {offsets = [0, 0], sizes = [8, 128], strides = [1, 1]} : vector<8x576xbf16> to vector<8x128xbf16>
    %271 = vector.extract_strided_slice %267 {offsets = [0, 192], sizes = [8, 128], strides = [1, 1]} : vector<8x576xbf16> to vector<8x128xbf16>
    %272 = tpu.concatenate %270, %271 in 1 : vector<8x128xbf16>, vector<8x128xbf16> -> vector<8x256xbf16>
    %cst_70 = arith.constant dense<0.000000e+00> : vector<8x256xf32>
    %273 = tpu.matmul %272, %268, %cst_70 {dimension_numbers = #tpu.dot_dimension_numbers<[1], [0], [0], [1], [0, 0, 1, 1], [], []>} : vector<8x256xbf16>, vector<256x256xbf16>, vector<8x256xf32> -> vector<8x256xf32>
    %274 = vector.broadcast %269 : vector<1x256xf32> to vector<8x256xf32>
    %275 = arith.addf %273, %274 : vector<8x256xf32>
    %cst_71 = arith.constant 0.000000e+00 : f32
    %276 = vector.broadcast %cst_71 : f32 to vector<8x256xf32>
    %277 = arith.maximumf %275, %276 : vector<8x256xf32>
    %278 = arith.truncf %277 : vector<8x256xf32> to vector<8x256xbf16>
    %279 = vector.extract_strided_slice %267 {offsets = [0, 64], sizes = [8, 128], strides = [1, 1]} : vector<8x576xbf16> to vector<8x128xbf16>
    %280 = vector.extract_strided_slice %267 {offsets = [0, 256], sizes = [8, 128], strides = [1, 1]} : vector<8x576xbf16> to vector<8x128xbf16>
    %281 = tpu.concatenate %279, %280 in 1 : vector<8x128xbf16>, vector<8x128xbf16> -> vector<8x256xbf16>
    %cst_72 = arith.constant dense<0.000000e+00> : vector<8x256xf32>
    %282 = tpu.matmul %281, %268, %cst_72 {dimension_numbers = #tpu.dot_dimension_numbers<[1], [0], [0], [1], [0, 0, 1, 1], [], []>} : vector<8x256xbf16>, vector<256x256xbf16>, vector<8x256xf32> -> vector<8x256xf32>
    %283 = vector.broadcast %269 : vector<1x256xf32> to vector<8x256xf32>
    %284 = arith.addf %282, %283 : vector<8x256xf32>
    %cst_73 = arith.constant 0.000000e+00 : f32
    %285 = vector.broadcast %cst_73 : f32 to vector<8x256xf32>
    %286 = arith.maximumf %284, %285 : vector<8x256xf32>
    %287 = arith.truncf %286 : vector<8x256xf32> to vector<8x256xbf16>
    %288 = vector.extract_strided_slice %267 {offsets = [0, 192], sizes = [8, 128], strides = [1, 1]} : vector<8x576xbf16> to vector<8x128xbf16>
    %289 = vector.extract_strided_slice %267 {offsets = [0, 384], sizes = [8, 128], strides = [1, 1]} : vector<8x576xbf16> to vector<8x128xbf16>
    %290 = tpu.concatenate %288, %289 in 1 : vector<8x128xbf16>, vector<8x128xbf16> -> vector<8x256xbf16>
    %cst_74 = arith.constant dense<0.000000e+00> : vector<8x256xf32>
    %291 = tpu.matmul %290, %268, %cst_74 {dimension_numbers = #tpu.dot_dimension_numbers<[1], [0], [0], [1], [0, 0, 1, 1], [], []>} : vector<8x256xbf16>, vector<256x256xbf16>, vector<8x256xf32> -> vector<8x256xf32>
    %292 = vector.broadcast %269 : vector<1x256xf32> to vector<8x256xf32>
    %293 = arith.addf %291, %292 : vector<8x256xf32>
    %cst_75 = arith.constant 0.000000e+00 : f32
    %294 = vector.broadcast %cst_75 : f32 to vector<8x256xf32>
    %295 = arith.maximumf %293, %294 : vector<8x256xf32>
    %296 = arith.truncf %295 : vector<8x256xf32> to vector<8x256xbf16>
    %297 = vector.extract_strided_slice %267 {offsets = [0, 256], sizes = [8, 128], strides = [1, 1]} : vector<8x576xbf16> to vector<8x128xbf16>
    %298 = vector.extract_strided_slice %267 {offsets = [0, 448], sizes = [8, 128], strides = [1, 1]} : vector<8x576xbf16> to vector<8x128xbf16>
    %299 = tpu.concatenate %297, %298 in 1 : vector<8x128xbf16>, vector<8x128xbf16> -> vector<8x256xbf16>
    %cst_76 = arith.constant dense<0.000000e+00> : vector<8x256xf32>
    %300 = tpu.matmul %299, %268, %cst_76 {dimension_numbers = #tpu.dot_dimension_numbers<[1], [0], [0], [1], [0, 0, 1, 1], [], []>} : vector<8x256xbf16>, vector<256x256xbf16>, vector<8x256xf32> -> vector<8x256xf32>
    %301 = vector.broadcast %269 : vector<1x256xf32> to vector<8x256xf32>
    %302 = arith.addf %300, %301 : vector<8x256xf32>
    %cst_77 = arith.constant 0.000000e+00 : f32
    %303 = vector.broadcast %cst_77 : f32 to vector<8x256xf32>
    %304 = arith.maximumf %302, %303 : vector<8x256xf32>
    %305 = arith.truncf %304 : vector<8x256xf32> to vector<8x256xbf16>
    %306 = tpu.concatenate %278, %287, %296, %305 in 1 : vector<8x256xbf16>, vector<8x256xbf16>, vector<8x256xbf16>, vector<8x256xbf16> -> vector<8x1024xbf16>
    %c0_78 = arith.constant 0 : index
    %c0_79 = arith.constant 0 : index
    %307 = vector.load %arg10[%c0_78, %c0_79] : memref<1024x512xbf16, #tpu.memory_space<vmem>>, vector<1024x512xbf16>
    %cst_80 = arith.constant dense<0.000000e+00> : vector<8x512xf32>
    %308 = tpu.matmul %306, %307, %cst_80 {dimension_numbers = #tpu.dot_dimension_numbers<[1], [0], [0], [1], [0, 0, 1, 1], [], []>} : vector<8x1024xbf16>, vector<1024x512xbf16>, vector<8x512xf32> -> vector<8x512xf32>
    %c0_81 = arith.constant 0 : index
    %c0_82 = arith.constant 0 : index
    %309 = vector.load %arg11[%c0_81, %c0_82] : memref<1x512xf32, #tpu.memory_space<vmem>>, vector<1x512xf32>
    %310 = vector.broadcast %309 : vector<1x512xf32> to vector<8x512xf32>
    %311 = arith.addf %308, %310 : vector<8x512xf32>
    %cst_83 = arith.constant 0.000000e+00 : f32
    %312 = vector.broadcast %cst_83 : f32 to vector<8x512xf32>
    %313 = arith.maximumf %311, %312 : vector<8x512xf32>
    %314 = arith.truncf %313 : vector<8x512xf32> to vector<8x512xbf16>
    %c0_84 = arith.constant 0 : index
    %c0_85 = arith.constant 0 : index
    %315 = vector.load %arg12[%c0_84, %c0_85] : memref<512x256xbf16, #tpu.memory_space<vmem>>, vector<512x256xbf16>
    %cst_86 = arith.constant dense<0.000000e+00> : vector<8x256xf32>
    %316 = tpu.matmul %314, %315, %cst_86 {dimension_numbers = #tpu.dot_dimension_numbers<[1], [0], [0], [1], [0, 0, 1, 1], [], []>} : vector<8x512xbf16>, vector<512x256xbf16>, vector<8x256xf32> -> vector<8x256xf32>
    %c0_87 = arith.constant 0 : index
    %c0_88 = arith.constant 0 : index
    %317 = vector.load %arg13[%c0_87, %c0_88] : memref<1x256xf32, #tpu.memory_space<vmem>>, vector<1x256xf32>
    %318 = vector.broadcast %317 : vector<1x256xf32> to vector<8x256xf32>
    %319 = arith.addf %316, %318 : vector<8x256xf32>
    %cst_89 = arith.constant 0.000000e+00 : f32
    %320 = vector.broadcast %cst_89 : f32 to vector<8x256xf32>
    %321 = arith.maximumf %319, %320 : vector<8x256xf32>
    %c0_90 = arith.constant 0 : index
    %c0_91 = arith.constant 0 : index
    %322 = vector.load %arg14[%c0_90, %c0_91] : memref<1x256xf32, #tpu.memory_space<vmem>>, vector<1x256xf32>
    %323 = vector.broadcast %322 : vector<1x256xf32> to vector<8x256xf32>
    %324 = arith.mulf %321, %323 : vector<8x256xf32>
    %cst_92 = arith.constant dense<0.000000e+00> : vector<8xf32>
    %325 = vector.multi_reduction <add>, %324, %cst_92 [1] : vector<8x256xf32> to vector<8xf32>
    %326 = vector.shape_cast %325 : vector<8xf32> to vector<8x1xf32>
    %c0_93 = arith.constant 0 : index
    %c0_94 = arith.constant 0 : index
    %327 = vector.load %arg15[%c0_93, %c0_94] : memref<1x1xf32, #tpu.memory_space<vmem>>, vector<1x1xf32>
    %328 = vector.broadcast %327 : vector<1x1xf32> to vector<8x1xf32>
    %329 = arith.addf %326, %328 : vector<8x1xf32>
    %c0_95 = arith.constant 0 : index
    %c0_96 = arith.constant 0 : index
    %330 = vector.load %arg16[%c0_95, %c0_96] : memref<8x1xf32, #tpu.memory_space<vmem>>, vector<8x1xf32>
    tpu.vector_store %arg16[%c0_95, %c0_96], %329 {strides = array<i32>} : memref<8x1xf32, #tpu.memory_space<vmem>>, vector<8x1xf32>,
    return
  }
  func.func @transform_0(%arg0: i32) -> (i32, i32) {
    %c0_i32 = arith.constant 0 : i32
    %c0_i32_0 = arith.constant 0 : i32
    return %arg0, %c0_i32 : i32, i32
  }
  func.func @transform_1(%arg0: i32) -> (i32, i32) {
    %c0_i32 = arith.constant 0 : i32
    %c0_i32_0 = arith.constant 0 : i32
    %c0_i32_1 = arith.constant 0 : i32
    return %c0_i32, %c0_i32_0 : i32, i32
  }
  func.func @transform_2(%arg0: i32) -> (i32, i32) {
    %c0_i32 = arith.constant 0 : i32
    %c0_i32_0 = arith.constant 0 : i32
    %c0_i32_1 = arith.constant 0 : i32
    return %c0_i32, %c0_i32_0 : i32, i32
  }
  func.func @transform_3(%arg0: i32) -> (i32, i32) {
    %c0_i32 = arith.constant 0 : i32
    %c0_i32_0 = arith.constant 0 : i32
    %c0_i32_1 = arith.constant 0 : i32
    return %c0_i32, %c0_i32_0 : i32, i32
  }
  func.func @transform_4(%arg0: i32) -> (i32, i32) {
    %c0_i32 = arith.constant 0 : i32
    %c0_i32_0 = arith.constant 0 : i32
    %c0_i32_1 = arith.constant 0 : i32
    return %c0_i32, %c0_i32_0 : i32, i32
  }
  func.func @transform_5(%arg0: i32) -> (i32, i32) {
    %c0_i32 = arith.constant 0 : i32
    %c0_i32_0 = arith.constant 0 : i32
    %c0_i32_1 = arith.constant 0 : i32
    return %c0_i32, %c0_i32_0 : i32, i32
  }
  func.func @transform_6(%arg0: i32) -> (i32, i32) {
    %c0_i32 = arith.constant 0 : i32
    %c0_i32_0 = arith.constant 0 : i32
    %c0_i32_1 = arith.constant 0 : i32
    return %c0_i32, %c0_i32_0 : i32, i32
  }
  func.func @transform_7(%arg0: i32) -> (i32, i32) {
    %c0_i32 = arith.constant 0 : i32
    %c0_i32_0 = arith.constant 0 : i32
    %c0_i32_1 = arith.constant 0 : i32
    return %c0_i32, %c0_i32_0 : i32, i32
  }
  func.func @transform_8(%arg0: i32) -> (i32, i32) {
    %c0_i32 = arith.constant 0 : i32
    %c0_i32_0 = arith.constant 0 : i32
    %c0_i32_1 = arith.constant 0 : i32
    return %c0_i32, %c0_i32_0 : i32, i32
  }
  func.func @transform_9(%arg0: i32) -> (i32, i32) {
    %c0_i32 = arith.constant 0 : i32
    %c0_i32_0 = arith.constant 0 : i32
    %c0_i32_1 = arith.constant 0 : i32
    return %c0_i32, %c0_i32_0 : i32, i32
  }
  func.func @transform_10(%arg0: i32) -> (i32, i32) {
    %c0_i32 = arith.constant 0 : i32
    %c0_i32_0 = arith.constant 0 : i32
    %c0_i32_1 = arith.constant 0 : i32
    return %c0_i32, %c0_i32_0 : i32, i32
  }
  func.func @transform_11(%arg0: i32) -> (i32, i32) {
    %c0_i32 = arith.constant 0 : i32
    %c0_i32_0 = arith.constant 0 : i32
    %c0_i32_1 = arith.constant 0 : i32
    return %c0_i32, %c0_i32_0 : i32, i32
  }
  func.func @transform_12(%arg0: i32) -> (i32, i32) {
    %c0_i32 = arith.constant 0 : i32
    %c0_i32_0 = arith.constant 0 : i32
    %c0_i32_1 = arith.constant 0 : i32
    return %c0_i32, %c0_i32_0 : i32, i32
  }
  func.func @transform_13(%arg0: i32) -> (i32, i32) {
    %c0_i32 = arith.constant 0 : i32
    %c0_i32_0 = arith.constant 0 : i32
    %c0_i32_1 = arith.constant 0 : i32
    return %c0_i32, %c0_i32_0 : i32, i32
  }
  func.func @transform_14(%arg0: i32) -> (i32, i32) {
    %c0_i32 = arith.constant 0 : i32
    %c0_i32_0 = arith.constant 0 : i32
    %c0_i32_1 = arith.constant 0 : i32
    return %c0_i32, %c0_i32_0 : i32, i32
  }
  func.func @transform_15(%arg0: i32) -> (i32, i32) {
    %c0_i32 = arith.constant 0 : i32
    %c0_i32_0 = arith.constant 0 : i32
    return %arg0, %c0_i32 : i32, i32
  }
}

</mosaic_0001>

<llo_original>
// kernel: forward.1
$region0: #{forward.1}
  #allocation0 [shape = 'u32[]', space=smem, size = 0x4, offset = 0x4, fixed_abs, tag = 'smem constant byte address 0x4 - core index']
  #allocation1 [shape = 'u32[144,128]{1,0:T(1,128)}', space=vmem, size = 0x12000, scoped, tag = 'internal scratch']
  #allocation2 [shape = 'f32[1,1]{1,0:T(1,128)S(1)}', space=vmem, size = 0x200, scoped, tag = 'scoped memory for forward.1']
  %s0 = inlined_call_operand.vmem [shape: f32[8,128], index: 0, kind: input, shape index: {}]
  %s1 = inlined_call_operand.vmem [shape: bf16[128,576], index: 1, kind: input, shape index: {}]
  %s2 = inlined_call_operand.vmem [shape: f32[1,576], index: 2, kind: input, shape index: {}]
  %s3 = inlined_call_operand.hbm [shape: bf16[256,128], index: 3, kind: input, shape index: {}]
  %s4 = inlined_call_operand.vmem [shape: f32[1,128], index: 4, kind: input, shape index: {}]
  %s5 = inlined_call_operand.vmem [shape: bf16[512,64], index: 5, kind: input, shape index: {}]
  %s6 = inlined_call_operand.vmem [shape: f32[1,64], index: 6, kind: input, shape index: {}]
  %s7 = inlined_call_operand.vmem [shape: bf16[256,256], index: 7, kind: input, shape index: {}]
  %s8 = inlined_call_operand.vmem [shape: f32[1,256], index: 8, kind: input, shape index: {}]
  %s9 = inlined_call_operand.hbm [shape: bf16[1024,512], index: 9, kind: input, shape index: {}]
  %s10 = inlined_call_operand.vmem [shape: f32[1,512], index: 10, kind: input, shape index: {}]
  %s11 = inlined_call_operand.vmem [shape: bf16[512,256], index: 11, kind: input, shape index: {}]
  %s12 = inlined_call_operand.vmem [shape: f32[1,256], index: 12, kind: input, shape index: {}]
  %s13 = inlined_call_operand.vmem [shape: f32[1,256], index: 13, kind: input, shape index: {}]
  %s14 = inlined_call_operand.<no memory space> [shape: f32[1,1], index: 14, kind: input, shape index: {}]
  %s15 = inlined_call_operand.vmem [shape: f32[8,1], index: 15, kind: output, shape index: {}]
  %s16 = sld [smem:[#allocation0]]
  $region78: #{forward.1} parent=0
    _
  %s18 = ssub.s32 1, %s16
  %s19 = scalar_select 0, %s18, %s16
  %v20 = vstv %s14
  %21 = vst [vmem:[#allocation2] sm:$0x1] %v20
  $region1: #{forward.1} parent=0
    #allocation3 [shape = 'u8[65536]{0}', space=vmem, size = 0x10000, scoped, tag = 'input window, operand 3, single buffered']
    #allocation4 [shape = 's32[1]{0}', space=sflag, size = 0x4, scoped, tag = 'scoped memory for forward.1']
    #allocation5 [shape = 'u8[1048576]{0}', space=vmem, size = 0x100000, scoped, tag = 'input window, operand 9, single buffered']
    #allocation6 [shape = 's32[1]{0}', space=sflag, size = 0x4, scoped, tag = 'scoped memory for forward.1']
    %22 = vsyncpa [#allocation4], 0
    %23 = vsyncpa [#allocation6], 0
    // Predicated region
    $region2: #{forward.1} parent=1 // pred_check
      _
    $region3: #{forward.1} parent=1 // pred_check_branch
      %25 = sbr.rel (0) target = $region5
    $region4: #{forward.1} parent=1 // pred_region
      _
    $region5: #{forward.1} parent=1 // pred_fallthru
      _
    // Predicated region
    $region6: #{forward.1} parent=1 // pred_check
      _
    $region7: #{forward.1} parent=1 // pred_check_branch
      %27 = sbr.rel (0) target = $region9
    $region8: #{forward.1} parent=1 // pred_region
      _
    $region9: #{forward.1} parent=1 // pred_fallthru
      _
    // Predicated region
    $region10: #{forward.1} parent=1 // pred_check
      _
    $region11: #{forward.1} parent=1 // pred_check_branch
      %29 = sbr.rel (0) target = $region13
    $region12: #{forward.1} parent=1 // pred_region
      _
    $region13: #{forward.1} parent=1 // pred_fallthru
      _
    // Predicated region
    $region14: #{forward.1} parent=1 // pred_check
      _
    $region15: #{forward.1} parent=1 // pred_check_branch
      %31 = sbr.rel (0) target = $region17
    $region16: #{forward.1} parent=1 // pred_region
      %s33 = ssub.s32 2048, 2048
      %34 = vsyncadd [#allocation4], %s33
      %s35 = sshll.u32 [#allocation3], 4
      %s36 = int_to_ptr.vmem [resolvable:$true] %s35
      %41 = dma.hbm_to_vmem [thread:$0]  %s3, 2048, %s36, [#allocation4], 64, 64, 4
    $region17: #{forward.1} parent=1 // pred_fallthru
      _
    // Predicated region
    $region18: #{forward.1} parent=1 // pred_check
      _
    $region19: #{forward.1} parent=1 // pred_check_branch
      %43 = sbr.rel (0) target = $region21
    $region20: #{forward.1} parent=1 // pred_region
      _
    $region21: #{forward.1} parent=1 // pred_fallthru
      _
    // Predicated region
    $region22: #{forward.1} parent=1 // pred_check
      _
    $region23: #{forward.1} parent=1 // pred_check_branch
      %45 = sbr.rel (0) target = $region25
    $region24: #{forward.1} parent=1 // pred_region
      _
    $region25: #{forward.1} parent=1 // pred_fallthru
      _
    // Predicated region
    $region26: #{forward.1} parent=1 // pred_check
      _
    $region27: #{forward.1} parent=1 // pred_check_branch
      %47 = sbr.rel (0) target = $region29
    $region28: #{forward.1} parent=1 // pred_region
      _
    $region29: #{forward.1} parent=1 // pred_fallthru
      _
    // Predicated region
    $region30: #{forward.1} parent=1 // pred_check
      _
    $region31: #{forward.1} parent=1 // pred_check_branch
      %49 = sbr.rel (0) target = $region33
    $region32: #{forward.1} parent=1 // pred_region
      _
    $region33: #{forward.1} parent=1 // pred_fallthru
      _
    // Predicated region
    $region34: #{forward.1} parent=1 // pred_check
      _
    $region35: #{forward.1} parent=1 // pred_check_branch
      %51 = sbr.rel (0) target = $region37
    $region36: #{forward.1} parent=1 // pred_region
      _
    $region37: #{forward.1} parent=1 // pred_fallthru
      _
    // Predicated region
    $region38: #{forward.1} parent=1 // pred_check
      _
    $region39: #{forward.1} parent=1 // pred_check_branch
      %53 = sbr.rel (0) target = $region41
    $region40: #{forward.1} parent=1 // pred_region
      %s55 = ssub.s32 32768, 32768
      %56 = vsyncadd [#allocation6], %s55
      %s57 = sshll.u32 [#allocation5], 4
      %s58 = int_to_ptr.vmem [resolvable:$true] %s57
      %63 = dma.hbm_to_vmem [thread:$0]  %s9, 32768, %s58, [#allocation6], 256, 256, 16
    $region41: #{forward.1} parent=1 // pred_fallthru
      _
    // Predicated region
    $region42: #{forward.1} parent=1 // pred_check
      _
    $region43: #{forward.1} parent=1 // pred_check_branch
      %65 = sbr.rel (0) target = $region45
    $region44: #{forward.1} parent=1 // pred_region
      _
    $region45: #{forward.1} parent=1 // pred_fallthru
      _
    // Predicated region
    $region46: #{forward.1} parent=1 // pred_check
      _
    $region47: #{forward.1} parent=1 // pred_check_branch
      %67 = sbr.rel (0) target = $region49
    $region48: #{forward.1} parent=1 // pred_region
      _
    $region49: #{forward.1} parent=1 // pred_fallthru
      _
    // Predicated region
    $region50: #{forward.1} parent=1 // pred_check
      _
    $region51: #{forward.1} parent=1 // pred_check_branch
      %69 = sbr.rel (0) target = $region53
    $region52: #{forward.1} parent=1 // pred_region
      _
    $region53: #{forward.1} parent=1 // pred_fallthru
      _
    // Predicated region
    $region54: #{forward.1} parent=1 // pred_check
      _
    $region55: #{forward.1} parent=1 // pred_check_branch
      %71 = sbr.rel (0) target = $region57
    $region56: #{forward.1} parent=1 // pred_region
      _
    $region57: #{forward.1} parent=1 // pred_fallthru
      _
    // Predicated region
    $region58: #{forward.1} parent=1 // pred_check
      _
    $region59: #{forward.1} parent=1 // pred_check_branch
      %73 = sbr.rel (0) target = $region61
    $region60: #{forward.1} parent=1 // pred_region
      _
    $region61: #{forward.1} parent=1 // pred_fallthru
      _
    // Predicated region
    $region62: #{forward.1} parent=1 // pred_check
      _
    $region63: #{forward.1} parent=1 // pred_check_branch
      %75 = sbr.rel (0) target = $region65
    $region64: #{forward.1} parent=1 // pred_region
      %76 = dma.done [#allocation4], 2048
    $region65: #{forward.1} parent=1 // pred_fallthru
      _
    // Predicated region
    $region66: #{forward.1} parent=1 // pred_check
      _
    $region67: #{forward.1} parent=1 // pred_check_branch
      %78 = sbr.rel (0) target = $region69
    $region68: #{forward.1} parent=1 // pred_region
      %79 = dma.done [#allocation6], 32768
    $region69: #{forward.1} parent=1 // pred_fallthru
      _
    %v81 = vld [vmem:[%s0] sm:$0xff]
    %v82 = vpack.c.bf16 %v81, %v81
    %v83 = vld [vmem:[%s1] sm:$0xff]
    %v84 = vld [vmem:[%s1 + $0x8] sm:$0xff]
    %v85 = vld [vmem:[%s1 + $0x10] sm:$0xf]
    %v86 = vld [vmem:[%s1 + $0x14] sm:$0xff]
    %v87 = vld [vmem:[%s1 + $0x1c] sm:$0xff]
    %v88 = vld [vmem:[%s1 + $0x24] sm:$0xf]
    %v89 = vld [vmem:[%s1 + $0x28] sm:$0xff]
    %v90 = vld [vmem:[%s1 + $0x30] sm:$0xff]
    %v91 = vld [vmem:[%s1 + $0x38] sm:$0xf]
    %v92 = vld [vmem:[%s1 + $0x3c] sm:$0xff]
    %v93 = vld [vmem:[%s1 + $0x44] sm:$0xff]
    %v94 = vld [vmem:[%s1 + $0x4c] sm:$0xf]
    %v95 = vld [vmem:[%s1 + $0x50] sm:$0xff]
    %v96 = vld [vmem:[%s1 + $0x58] sm:$0xff]
    %v97 = vld [vmem:[%s1 + $0x60] sm:$0xf]
    %v98 = vld [vmem:[%s1 + $0x64] sm:$0xff]
    %v99 = vld [vmem:[%s1 + $0x6c] sm:$0xff]
    %v100 = vld [vmem:[%s1 + $0x74] sm:$0xf]
    %v101 = vld [vmem:[%s1 + $0x78] sm:$0xff]
    %v102 = vld [vmem:[%s1 + $0x80] sm:$0xff]
    %v103 = vld [vmem:[%s1 + $0x88] sm:$0xf]
    %v104 = vld [vmem:[%s1 + $0x8c] sm:$0xff]
    %v105 = vld [vmem:[%s1 + $0x94] sm:$0xff]
    %v106 = vld [vmem:[%s1 + $0x9c] sm:$0xf]
    %v107 = vld [vmem:[%s1 + $0xa0] sm:$0xff]
    %v108 = vld [vmem:[%s1 + $0xa8] sm:$0xff]
    %v109 = vld [vmem:[%s1 + $0xb0] sm:$0xf]
    %v110 = vld [vmem:[%s1 + $0xb4] sm:$0xff]
    %v111 = vld [vmem:[%s1 + $0xbc] sm:$0xff]
    %v112 = vld [vmem:[%s1 + $0xc4] sm:$0xf]
    %v113 = vld [vmem:[%s1 + $0xc8] sm:$0xff]
    %v114 = vld [vmem:[%s1 + $0xd0] sm:$0xff]
    %v115 = vld [vmem:[%s1 + $0xd8] sm:$0xf]
    %v116 = vld [vmem:[%s1 + $0xdc] sm:$0xff]
    %v117 = vld [vmem:[%s1 + $0xe4] sm:$0xff]
    %v118 = vld [vmem:[%s1 + $0xec] sm:$0xf]
    %v119 = vld [vmem:[%s1 + $0xf0] sm:$0xff]
    %v120 = vld [vmem:[%s1 + $0xf8] sm:$0xff]
    %v121 = vld [vmem:[%s1 + $0x100] sm:$0xf]
    %v122 = vld [vmem:[%s1 + $0x104] sm:$0xff]
    %v123 = vld [vmem:[%s1 + $0x10c] sm:$0xff]
    %v124 = vld [vmem:[%s1 + $0x114] sm:$0xf]
    %v125 = vld [vmem:[%s1 + $0x118] sm:$0xff]
    %v126 = vld [vmem:[%s1 + $0x120] sm:$0xff]
    %v127 = vld [vmem:[%s1 + $0x128] sm:$0xf]
    %v128 = vld [vmem:[%s1 + $0x12c] sm:$0xff]
    %v129 = vld [vmem:[%s1 + $0x134] sm:$0xff]
    %v130 = vld [vmem:[%s1 + $0x13c] sm:$0xf]
    %v131 = vld [vmem:[%s2] sm:$0x1f]
    %v133 = vlaneseq
    %v134 = vshrl.u32 %v133, 7
    %v135 = vsub.s32 0, %v134
    %v136 = vrot.slane %v131, %v135
    %v137 = vlaneseq
    %v138 = vshrl.u32 %v137, 7
    %v139 = vsub.s32 1, %v138
    %v140 = vrot.slane %v131, %v139
    %v141 = vlaneseq
    %v142 = vshrl.u32 %v141, 7
    %v143 = vsub.s32 2, %v142
    %v144 = vrot.slane %v131, %v143
    %v145 = vlaneseq
    %v146 = vshrl.u32 %v145, 7
    %v147 = vsub.s32 3, %v146
    %v148 = vrot.slane %v131, %v147
    %v149 = vlaneseq
    %v150 = vshrl.u32 %v149, 7
    %v151 = vsub.s32 4, %v150
    %v152 = vrot.slane %v131, %v151
    %v206 = vunpack.c.l.b16 %v83
    %v207 = vunpack.c.h.b16 %v83
    %v208 = vunpack.c.l.b16 %v84
    %v209 = vunpack.c.h.b16 %v84
    %v210 = vunpack.c.l.b16 %v85
    %v211 = vunpack.c.l.b16 %v86
    %v212 = vunpack.c.h.b16 %v86
    %v213 = vunpack.c.l.b16 %v87
    %v214 = vunpack.c.h.b16 %v87
    %v215 = vunpack.c.l.b16 %v88
    %v216 = vunpack.c.l.b16 %v89
    %v217 = vunpack.c.h.b16 %v89
    %v218 = vunpack.c.l.b16 %v90
    %v219 = vunpack.c.h.b16 %v90
    %v220 = vunpack.c.l.b16 %v91
    %v221 = vunpack.c.l.b16 %v92
    %v222 = vunpack.c.h.b16 %v92
    %v223 = vunpack.c.l.b16 %v93
    %v224 = vunpack.c.h.b16 %v93
    %v225 = vunpack.c.l.b16 %v94
    %v226 = vunpack.c.l.b16 %v95
    %v227 = vunpack.c.h.b16 %v95
    %v228 = vunpack.c.l.b16 %v96
    %v229 = vunpack.c.h.b16 %v96
    %v230 = vunpack.c.l.b16 %v97
    %v231 = vunpack.c.l.b16 %v98
    %v232 = vunpack.c.h.b16 %v98
    %v233 = vunpack.c.l.b16 %v99
    %v234 = vunpack.c.h.b16 %v99
    %v235 = vunpack.c.l.b16 %v100
    %v236 = vunpack.c.l.b16 %v101
    %v237 = vunpack.c.h.b16 %v101
    %v238 = vunpack.c.l.b16 %v102
    %v239 = vunpack.c.h.b16 %v102
    %v240 = vunpack.c.l.b16 %v103
    %v241 = vunpack.c.l.b16 %v104
    %v242 = vunpack.c.h.b16 %v104
    %v243 = vunpack.c.l.b16 %v105
    %v244 = vunpack.c.h.b16 %v105
    %v245 = vunpack.c.l.b16 %v106
    %v246 = vunpack.c.l.b16 %v107
    %v247 = vunpack.c.h.b16 %v107
    %v248 = vunpack.c.l.b16 %v108
    %v249 = vunpack.c.h.b16 %v108
    %v250 = vunpack.c.l.b16 %v109
    %v251 = vunpack.c.l.b16 %v110
    %v252 = vunpack.c.h.b16 %v110
    %v253 = vunpack.c.l.b16 %v111
    %v254 = vunpack.c.h.b16 %v111
    %v255 = vunpack.c.l.b16 %v112
    %v256 = vunpack.c.l.b16 %v113
    %v257 = vunpack.c.h.b16 %v113
    %v258 = vunpack.c.l.b16 %v114
    %v259 = vunpack.c.h.b16 %v114
    %v260 = vunpack.c.l.b16 %v115
    %v261 = vunpack.c.l.b16 %v116
    %v262 = vunpack.c.h.b16 %v116
    %v263 = vunpack.c.l.b16 %v117
    %v264 = vunpack.c.h.b16 %v117
    %v265 = vunpack.c.l.b16 %v118
    %v266 = vunpack.c.l.b16 %v119
    %v267 = vunpack.c.h.b16 %v119
    %v268 = vunpack.c.l.b16 %v120
    %v269 = vunpack.c.h.b16 %v120
    %v270 = vunpack.c.l.b16 %v121
    %v271 = vunpack.c.l.b16 %v122
    %v272 = vunpack.c.h.b16 %v122
    %v273 = vunpack.c.l.b16 %v123
    %v274 = vunpack.c.h.b16 %v123
    %v275 = vunpack.c.l.b16 %v124
    %v276 = vunpack.c.l.b16 %v125
    %v277 = vunpack.c.h.b16 %v125
    %v278 = vunpack.c.l.b16 %v126
    %v279 = vunpack.c.h.b16 %v126
    %v280 = vunpack.c.l.b16 %v127
    %v281 = vunpack.c.l.b16 %v128
    %v282 = vunpack.c.h.b16 %v128
    %v283 = vunpack.c.l.b16 %v129
    %v284 = vunpack.c.h.b16 %v129
    %v285 = vunpack.c.l.b16 %v130
    %v286 = vpack.c.b16 %v211, %v206
    %v287 = vpack.c.b16 %v212, %v207
    %v288 = vpack.c.b16 %v213, %v208
    %v289 = vpack.c.b16 %v214, %v209
    %v290 = vpack.c.b16 %v215, %v210
    %v291 = vpack.c.b16 %v221, %v216
    %v292 = vpack.c.b16 %v222, %v217
    %v293 = vpack.c.b16 %v223, %v218
    %v294 = vpack.c.b16 %v224, %v219
    %v295 = vpack.c.b16 %v225, %v220
    %v296 = vpack.c.b16 %v231, %v226
    %v297 = vpack.c.b16 %v232, %v227
    %v298 = vpack.c.b16 %v233, %v228
    %v299 = vpack.c.b16 %v234, %v229
    %v300 = vpack.c.b16 %v235, %v230
    %v301 = vpack.c.b16 %v241, %v236
    %v302 = vpack.c.b16 %v242, %v237
    %v303 = vpack.c.b16 %v243, %v238
    %v304 = vpack.c.b16 %v244, %v239
    %v305 = vpack.c.b16 %v245, %v240
    %v306 = vpack.c.b16 %v251, %v246
    %v307 = vpack.c.b16 %v252, %v247
    %v308 = vpack.c.b16 %v253, %v248
    %v309 = vpack.c.b16 %v254, %v249
    %v310 = vpack.c.b16 %v255, %v250
    %v311 = vpack.c.b16 %v261, %v256
    %v312 = vpack.c.b16 %v262, %v257
    %v313 = vpack.c.b16 %v263, %v258
    %v314 = vpack.c.b16 %v264, %v259
    %v315 = vpack.c.b16 %v265, %v260
    %v316 = vpack.c.b16 %v271, %v266
    %v317 = vpack.c.b16 %v272, %v267
    %v318 = vpack.c.b16 %v273, %v268
    %v319 = vpack.c.b16 %v274, %v269
    %v320 = vpack.c.b16 %v275, %v270
    %v321 = vpack.c.b16 %v281, %v276
    %v322 = vpack.c.b16 %v282, %v277
    %v323 = vpack.c.b16 %v283, %v278
    %v324 = vpack.c.b16 %v284, %v279
    %v325 = vpack.c.b16 %v285, %v280
    %366 = vmatprep.subr.bf16.mxu0 %v287
    %367 = vmatpush1.bf16.msra.mxu0 %v286
    %368 = vmatprep.subr.bf16.mxu0 %v292
    %369 = vmatpush1.bf16.msra.mxu0 %v291
    %370 = vmatprep.subr.bf16.mxu0 %v297
    %371 = vmatpush1.bf16.msra.mxu0 %v296
    %372 = vmatprep.subr.bf16.mxu0 %v302
    %373 = vmatpush1.bf16.msra.mxu0 %v301
    %374 = vmatprep.subr.bf16.mxu0 %v307
    %375 = vmatpush1.bf16.msra.mxu0 %v306
    %376 = vmatprep.subr.bf16.mxu0 %v312
    %377 = vmatpush1.bf16.msra.mxu0 %v311
    %378 = vmatprep.subr.bf16.mxu0 %v317
    %379 = vmatpush1.bf16.msra.mxu0 %v316
    %380 = vmatprep.subr.bf16.mxu0 %v322
    %381 = vmatpush1.bf16.msra.mxu0 %v321
    %382 = vmatprep.subr.bf16.mxu0 0
    %383 = vmatpush1.bf16.msra.mxu0 0
    %384 = vmatprep.subr.bf16.mxu0 0
    %385 = vmatpush1.bf16.msra.mxu0 0
    %386 = vmatprep.subr.bf16.mxu0 0
    %387 = vmatpush1.bf16.msra.mxu0 0
    %388 = vmatprep.subr.bf16.mxu0 0
    %389 = vmatpush1.bf16.msra.mxu0 0
    %390 = vmatprep.subr.bf16.mxu0 0
    %391 = vmatpush1.bf16.msra.mxu0 0
    %392 = vmatprep.subr.bf16.mxu0 0
    %393 = vmatpush1.bf16.msra.mxu0 0
    %394 = vmatprep.subr.bf16.mxu0 0
    %395 = vmatpush1.bf16.msra.mxu0 0
    %396 = vmatprep.subr.bf16.mxu0 0
    %397 = vmatpush1.bf16.msra.mxu0 0
    %398 = vmatprep.mubr.bf16.mxu0 0
    %399 = vmatmul.mubr.bf16.gmra.mrb[0].mxu0 %v82
    %v400 = vpop.f32.mrb[0].mxu0
    %v401 = vadd.f32 %v136, %v400
    %v402 = vpop.f32.mrb[0].mxu0
    %v403 = vadd.f32 %v140, %v402
    %v404 = vpop.f32.mrb[0].mxu0
    %v405 = vpop.f32.mrb[0].mxu0
    %406 = vdwg.mxu0
    %407 = vmatprep.subr.bf16.mxu0 %v289
    %408 = vmatpush1.bf16.msra.mxu0 %v288
    %409 = vmatprep.subr.bf16.mxu0 %v294
    %410 = vmatpush1.bf16.msra.mxu0 %v293
    %411 = vmatprep.subr.bf16.mxu0 %v299
    %412 = vmatpush1.bf16.msra.mxu0 %v298
    %413 = vmatprep.subr.bf16.mxu0 %v304
    %414 = vmatpush1.bf16.msra.mxu0 %v303
    %415 = vmatprep.subr.bf16.mxu0 %v309
    %416 = vmatpush1.bf16.msra.mxu0 %v308
    %417 = vmatprep.subr.bf16.mxu0 %v314
    %418 = vmatpush1.bf16.msra.mxu0 %v313
    %419 = vmatprep.subr.bf16.mxu0 %v319
    %420 = vmatpush1.bf16.msra.mxu0 %v318
    %421 = vmatprep.subr.bf16.mxu0 %v324
    %422 = vmatpush1.bf16.msra.mxu0 %v323
    %423 = vmatprep.subr.bf16.mxu0 0
    %424 = vmatpush1.bf16.msra.mxu0 0
    %425 = vmatprep.subr.bf16.mxu0 0
    %426 = vmatpush1.bf16.msra.mxu0 0
    %427 = vmatprep.subr.bf16.mxu0 0
    %428 = vmatpush1.bf16.msra.mxu0 0
    %429 = vmatprep.subr.bf16.mxu0 0
    %430 = vmatpush1.bf16.msra.mxu0 0
    %431 = vmatprep.subr.bf16.mxu0 0
    %432 = vmatpush1.bf16.msra.mxu0 0
    %433 = vmatprep.subr.bf16.mxu0 0
    %434 = vmatpush1.bf16.msra.mxu0 0
    %435 = vmatprep.subr.bf16.mxu0 0
    %436 = vmatpush1.bf16.msra.mxu0 0
    %437 = vmatprep.subr.bf16.mxu0 0
    %438 = vmatpush1.bf16.msra.mxu0 0
    %439 = vmatprep.mubr.bf16.mxu0 0
    %440 = vmatmul.mubr.bf16.gmra.mrb[0].mxu0 %v82
    %v441 = vpop.f32.mrb[0].mxu0
    %v442 = vadd.f32 %v144, %v441
    %v443 = vpop.f32.mrb[0].mxu0
    %v444 = vadd.f32 %v148, %v443
    %v445 = vpop.f32.mrb[0].mxu0
    %v446 = vpop.f32.mrb[0].mxu0
    %447 = vdwg.mxu0
    %448 = vmatprep.subr.bf16.mxu0 0
    %449 = vmatpush1.bf16.msra.mxu0 %v290
    %450 = vmatprep.subr.bf16.mxu0 0
    %451 = vmatpush1.bf16.msra.mxu0 %v295
    %452 = vmatprep.subr.bf16.mxu0 0
    %453 = vmatpush1.bf16.msra.mxu0 %v300
    %454 = vmatprep.subr.bf16.mxu0 0
    %455 = vmatpush1.bf16.msra.mxu0 %v305
    %456 = vmatprep.subr.bf16.mxu0 0
    %457 = vmatpush1.bf16.msra.mxu0 %v310
    %458 = vmatprep.subr.bf16.mxu0 0
    %459 = vmatpush1.bf16.msra.mxu0 %v315
    %460 = vmatprep.subr.bf16.mxu0 0
    %461 = vmatpush1.bf16.msra.mxu0 %v320
    %462 = vmatprep.subr.bf16.mxu0 0
    %463 = vmatpush1.bf16.msra.mxu0 %v325
    %464 = vmatprep.subr.bf16.mxu0 0
    %465 = vmatpush1.bf16.msra.mxu0 0
    %466 = vmatprep.subr.bf16.mxu0 0
    %467 = vmatpush1.bf16.msra.mxu0 0
    %468 = vmatprep.subr.bf16.mxu0 0
    %469 = vmatpush1.bf16.msra.mxu0 0
    %470 = vmatprep.subr.bf16.mxu0 0
    %471 = vmatpush1.bf16.msra.mxu0 0
    %472 = vmatprep.subr.bf16.mxu0 0
    %473 = vmatpush1.bf16.msra.mxu0 0
    %474 = vmatprep.subr.bf16.mxu0 0
    %475 = vmatpush1.bf16.msra.mxu0 0
    %476 = vmatprep.subr.bf16.mxu0 0
    %477 = vmatpush1.bf16.msra.mxu0 0
    %478 = vmatprep.subr.bf16.mxu0 0
    %479 = vmatpush1.bf16.msra.mxu0 0
    %480 = vmatprep.mubr.bf16.mxu0 0
    %481 = vmatmul.mubr.bf16.gmra.mrb[0].mxu0 %v82
    %v482 = vpop.f32.mrb[0].mxu0
    %v483 = vadd.f32 %v152, %v482
    %v484 = vpop.f32.mrb[0].mxu0
    %v485 = vpop.f32.mrb[0].mxu0
    %v486 = vpop.f32.mrb[0].mxu0
    %487 = vdwg.mxu0
    %v488 = vmax.f32 %v401, 0.0
    %v489 = vmax.f32 %v403, 0.0
    %v490 = vmax.f32 %v442, 0.0
    %v491 = vmax.f32 %v444, 0.0
    %v492 = vmax.f32 %v483, 0.0
    %v493 = vpack.c.bf16 %v488, %v488
    %v494 = vpack.c.bf16 %v489, %v489
    %v495 = vpack.c.bf16 %v490, %v490
    %v496 = vpack.c.bf16 %v491, %v491
    %v497 = vpack.c.bf16 %v492, %v492
    %500 = vrot.lane.b32.xlu0 %v493, 64
    %v501 = vpop.permute.xlu0 %500
    %502 = vrot.lane.b32.xlu0 %v494, 64
    %v503 = vpop.permute.xlu0 %502
    %vm504 = vcmask 523264
    %v505 = vsel %vm504, %v501, %v503
    %vm506 = vcmask 523264
    %v509 = vsel %vm506, 0, %v501
    %v511 = vsel %vm506, 0, %v494
    %515 = vrot.lane.b32.xlu0 %v496, 64
    %v516 = vpop.permute.xlu0 %515
    %517 = vrot.lane.b32.xlu0 %v497, 64
    %v518 = vpop.permute.xlu0 %517
    %v519 = vsel %vm504, %v516, %v518
    %v521 = vsel %vm506, 0, %v516
    %524 = vrot.lane.b32.xlu0 %v509, 64
    %v525 = vpop.permute.xlu0 %524
    %526 = vrot.lane.b32.xlu0 %v505, 64
    %v527 = vpop.permute.xlu0 %526
    %528 = vrot.lane.b32.xlu0 0, 64
    %v529 = vpop.permute.xlu0 %528
    %v530 = vsel %vm504, %v525, %v527
    %v531 = vsel %vm504, %v527, %v529
    %535 = vrot.lane.b32.xlu0 %v521, 64
    %v536 = vpop.permute.xlu0 %535
    %537 = vrot.lane.b32.xlu0 %v519, 64
    %v538 = vpop.permute.xlu0 %537
    %v539 = vsel %vm504, %v536, %v538
    %v540 = vsel %vm504, %v538, %v529
    %v544 = vsel %vm506, 0, %v525
    %v546 = vsel %vm506, 0, %v536
    %v547 = vld [vmem:[#allocation3] sm:$0xf]
    %v548 = vld [vmem:[#allocation3 + $0x4] sm:$0xf]
    %v549 = vld [vmem:[#allocation3 + $0x8] sm:$0xf]
    %v550 = vld [vmem:[#allocation3 + $0xc] sm:$0xf]
    %v551 = vld [vmem:[#allocation3 + $0x10] sm:$0xf]
    %v552 = vld [vmem:[#allocation3 + $0x14] sm:$0xf]
    %v553 = vld [vmem:[#allocation3 + $0x18] sm:$0xf]
    %v554 = vld [vmem:[#allocation3 + $0x1c] sm:$0xf]
    %v555 = vld [vmem:[#allocation3 + $0x20] sm:$0xf]
    %v556 = vld [vmem:[#allocation3 + $0x24] sm:$0xf]
    %v557 = vld [vmem:[#allocation3 + $0x28] sm:$0xf]
    %v558 = vld [vmem:[#allocation3 + $0x2c] sm:$0xf]
    %v559 = vld [vmem:[#allocation3 + $0x30] sm:$0xf]
    %v560 = vld [vmem:[#allocation3 + $0x34] sm:$0xf]
    %v561 = vld [vmem:[#allocation3 + $0x38] sm:$0xf]
    %v562 = vld [vmem:[#allocation3 + $0x3c] sm:$0xf]
    %v563 = vld [vmem:[#allocation3 + $0x40] sm:$0xf]
    %v564 = vld [vmem:[#allocation3 + $0x44] sm:$0xf]
    %v565 = vld [vmem:[#allocation3 + $0x48] sm:$0xf]
    %v566 = vld [vmem:[#allocation3 + $0x4c] sm:$0xf]
    %v567 = vld [vmem:[#allocation3 + $0x50] sm:$0xf]
    %v568 = vld [vmem:[#allocation3 + $0x54] sm:$0xf]
    %v569 = vld [vmem:[#allocation3 + $0x58] sm:$0xf]
    %v570 = vld [vmem:[#allocation3 + $0x5c] sm:$0xf]
    %v571 = vld [vmem:[#allocation3 + $0x60] sm:$0xf]
    %v572 = vld [vmem:[#allocation3 + $0x64] sm:$0xf]
    %v573 = vld [vmem:[#allocation3 + $0x68] sm:$0xf]
    %v574 = vld [vmem:[#allocation3 + $0x6c] sm:$0xf]
    %v575 = vld [vmem:[#allocation3 + $0x70] sm:$0xf]
    %v576 = vld [vmem:[#allocation3 + $0x74] sm:$0xf]
    %v577 = vld [vmem:[#allocation3 + $0x78] sm:$0xf]
    %v578 = vld [vmem:[#allocation3 + $0x7c] sm:$0xf]
    %v579 = vld [vmem:[%s4] sm:$0x1]
    %581 = vrot.lane.b32.xlu0 %v544, 64
    %v582 = vpop.permute.xlu0 %581
    %583 = vrot.lane.b32.xlu0 %v530, 64
    %v584 = vpop.permute.xlu0 %583
    %v585 = vsel %vm504, %v582, %v584
    %v588 = vlaneseq
    %v589 = vshrl.u32 %v588, 7
    %v590 = vsub.s32 0, %v589
    %v591 = vrot.slane %v579, %v590
    %v625 = vunpack.c.l.b16 %v547
    %v626 = vunpack.c.l.b16 %v548
    %v627 = vunpack.c.l.b16 %v549
    %v628 = vunpack.c.l.b16 %v550
    %v629 = vunpack.c.l.b16 %v551
    %v630 = vunpack.c.l.b16 %v552
    %v631 = vunpack.c.l.b16 %v553
    %v632 = vunpack.c.l.b16 %v554
    %v633 = vunpack.c.l.b16 %v555
    %v634 = vunpack.c.l.b16 %v556
    %v635 = vunpack.c.l.b16 %v557
    %v636 = vunpack.c.l.b16 %v558
    %v637 = vunpack.c.l.b16 %v559
    %v638 = vunpack.c.l.b16 %v560
    %v639 = vunpack.c.l.b16 %v561
    %v640 = vunpack.c.l.b16 %v562
    %v641 = vunpack.c.l.b16 %v563
    %v642 = vunpack.c.l.b16 %v564
    %v643 = vunpack.c.l.b16 %v565
    %v644 = vunpack.c.l.b16 %v566
    %v645 = vunpack.c.l.b16 %v567
    %v646 = vunpack.c.l.b16 %v568
    %v647 = vunpack.c.l.b16 %v569
    %v648 = vunpack.c.l.b16 %v570
    %v649 = vunpack.c.l.b16 %v571
    %v650 = vunpack.c.l.b16 %v572
    %v651 = vunpack.c.l.b16 %v573
    %v652 = vunpack.c.l.b16 %v574
    %v653 = vunpack.c.l.b16 %v575
    %v654 = vunpack.c.l.b16 %v576
    %v655 = vunpack.c.l.b16 %v577
    %v656 = vunpack.c.l.b16 %v578
    %v657 = vpack.c.b16 %v626, %v625
    %v658 = vpack.c.b16 %v628, %v627
    %v659 = vpack.c.b16 %v630, %v629
    %v660 = vpack.c.b16 %v632, %v631
    %v661 = vpack.c.b16 %v634, %v633
    %v662 = vpack.c.b16 %v636, %v635
    %v663 = vpack.c.b16 %v638, %v637
    %v664 = vpack.c.b16 %v640, %v639
    %v665 = vpack.c.b16 %v642, %v641
    %v666 = vpack.c.b16 %v644, %v643
    %v667 = vpack.c.b16 %v646, %v645
    %v668 = vpack.c.b16 %v648, %v647
    %v669 = vpack.c.b16 %v650, %v649
    %v670 = vpack.c.b16 %v652, %v651
    %v671 = vpack.c.b16 %v654, %v653
    %v672 = vpack.c.b16 %v656, %v655
    %689 = vmatprep.subr.bf16.mxu0 0
    %690 = vmatpush1.bf16.msra.mxu0 %v657
    %691 = vmatprep.subr.bf16.mxu0 0
    %692 = vmatpush1.bf16.msra.mxu0 %v658
    %693 = vmatprep.subr.bf16.mxu0 0
    %694 = vmatpush1.bf16.msra.mxu0 %v659
    %695 = vmatprep.subr.bf16.mxu0 0
    %696 = vmatpush1.bf16.msra.mxu0 %v660
    %697 = vmatprep.subr.bf16.mxu0 0
    %698 = vmatpush1.bf16.msra.mxu0 %v661
    %699 = vmatprep.subr.bf16.mxu0 0
    %700 = vmatpush1.bf16.msra.mxu0 %v662
    %701 = vmatprep.subr.bf16.mxu0 0
    %702 = vmatpush1.bf16.msra.mxu0 %v663
    %703 = vmatprep.subr.bf16.mxu0 0
    %704 = vmatpush1.bf16.msra.mxu0 %v664
    %705 = vmatprep.subr.bf16.mxu0 0
    %706 = vmatpush1.bf16.msra.mxu0 %v665
    %707 = vmatprep.subr.bf16.mxu0 0
    %708 = vmatpush1.bf16.msra.mxu0 %v666
    %709 = vmatprep.subr.bf16.mxu0 0
    %710 = vmatpush1.bf16.msra.mxu0 %v667
    %711 = vmatprep.subr.bf16.mxu0 0
    %712 = vmatpush1.bf16.msra.mxu0 %v668
    %713 = vmatprep.subr.bf16.mxu0 0
    %714 = vmatpush1.bf16.msra.mxu0 %v669
    %715 = vmatprep.subr.bf16.mxu0 0
    %716 = vmatpush1.bf16.msra.mxu0 %v670
    %717 = vmatprep.subr.bf16.mxu0 0
    %718 = vmatpush1.bf16.msra.mxu0 %v671
    %719 = vmatprep.subr.bf16.mxu0 0
    %720 = vmatpush1.bf16.msra.mxu0 %v672
    %721 = vmatprep.mubr.bf16.mxu0 %v585
    %722 = vmatmul.mubr.bf16.gmra.mrb[0].mxu0 0
    %v723 = vpop.f32.mrb[0].mxu0
    %v724 = vadd.f32 %v591, %v723
    %v725 = vpop.f32.mrb[0].mxu0
    %v726 = vpop.f32.mrb[0].mxu0
    %v727 = vpop.f32.mrb[0].mxu0
    %728 = vdwg.mxu0
    %v729 = vmax.f32 %v724, 0.0
    %v730 = vpack.c.bf16 %v729, %v729
    %732 = vmatprep.subr.bf16.mxu0 0
    %733 = vmatpush1.bf16.msra.mxu0 %v657
    %734 = vmatprep.subr.bf16.mxu0 0
    %735 = vmatpush1.bf16.msra.mxu0 %v658
    %736 = vmatprep.subr.bf16.mxu0 0
    %737 = vmatpush1.bf16.msra.mxu0 %v659
    %738 = vmatprep.subr.bf16.mxu0 0
    %739 = vmatpush1.bf16.msra.mxu0 %v660
    %740 = vmatprep.subr.bf16.mxu0 0
    %741 = vmatpush1.bf16.msra.mxu0 %v661
    %742 = vmatprep.subr.bf16.mxu0 0
    %743 = vmatpush1.bf16.msra.mxu0 %v662
    %744 = vmatprep.subr.bf16.mxu0 0
    %745 = vmatpush1.bf16.msra.mxu0 %v663
    %746 = vmatprep.subr.bf16.mxu0 0
    %747 = vmatpush1.bf16.msra.mxu0 %v664
    %748 = vmatprep.subr.bf16.mxu0 0
    %749 = vmatpush1.bf16.msra.mxu0 %v665
    %750 = vmatprep.subr.bf16.mxu0 0
    %751 = vmatpush1.bf16.msra.mxu0 %v666
    %752 = vmatprep.subr.bf16.mxu0 0
    %753 = vmatpush1.bf16.msra.mxu0 %v667
    %754 = vmatprep.subr.bf16.mxu0 0
    %755 = vmatpush1.bf16.msra.mxu0 %v668
    %756 = vmatprep.subr.bf16.mxu0 0
    %757 = vmatpush1.bf16.msra.mxu0 %v669
    %758 = vmatprep.subr.bf16.mxu0 0
    %759 = vmatpush1.bf16.msra.mxu0 %v670
    %760 = vmatprep.subr.bf16.mxu0 0
    %761 = vmatpush1.bf16.msra.mxu0 %v671
    %762 = vmatprep.subr.bf16.mxu0 0
    %763 = vmatpush1.bf16.msra.mxu0 %v672
    %764 = vmatprep.mubr.bf16.mxu0 %v530
    %765 = vmatmul.mubr.bf16.gmra.mrb[0].mxu0 %v529
    %v766 = vpop.f32.mrb[0].mxu0
    %v767 = vadd.f32 %v591, %v766
    %v768 = vpop.f32.mrb[0].mxu0
    %v769 = vpop.f32.mrb[0].mxu0
    %v770 = vpop.f32.mrb[0].mxu0
    %771 = vdwg.mxu0
    %v772 = vmax.f32 %v767, 0.0
    %v773 = vpack.c.bf16 %v772, %v772
    %774 = vrot.lane.b32.xlu0 %v531, 64
    %v775 = vpop.permute.xlu0 %774
    %v776 = vsel %vm504, %v584, %v775
    %778 = vmatprep.subr.bf16.mxu0 0
    %779 = vmatpush1.bf16.msra.mxu0 %v657
    %780 = vmatprep.subr.bf16.mxu0 0
    %781 = vmatpush1.bf16.msra.mxu0 %v658
    %782 = vmatprep.subr.bf16.mxu0 0
    %783 = vmatpush1.bf16.msra.mxu0 %v659
    %784 = vmatprep.subr.bf16.mxu0 0
    %785 = vmatpush1.bf16.msra.mxu0 %v660
    %786 = vmatprep.subr.bf16.mxu0 0
    %787 = vmatpush1.bf16.msra.mxu0 %v661
    %788 = vmatprep.subr.bf16.mxu0 0
    %789 = vmatpush1.bf16.msra.mxu0 %v662
    %790 = vmatprep.subr.bf16.mxu0 0
    %791 = vmatpush1.bf16.msra.mxu0 %v663
    %792 = vmatprep.subr.bf16.mxu0 0
    %793 = vmatpush1.bf16.msra.mxu0 %v664
    %794 = vmatprep.subr.bf16.mxu0 0
    %795 = vmatpush1.bf16.msra.mxu0 %v665
    %796 = vmatprep.subr.bf16.mxu0 0
    %797 = vmatpush1.bf16.msra.mxu0 %v666
    %798 = vmatprep.subr.bf16.mxu0 0
    %799 = vmatpush1.bf16.msra.mxu0 %v667
    %800 = vmatprep.subr.bf16.mxu0 0
    %801 = vmatpush1.bf16.msra.mxu0 %v668
    %802 = vmatprep.subr.bf16.mxu0 0
    %803 = vmatpush1.bf16.msra.mxu0 %v669
    %804 = vmatprep.subr.bf16.mxu0 0
    %805 = vmatpush1.bf16.msra.mxu0 %v670
    %806 = vmatprep.subr.bf16.mxu0 0
    %807 = vmatpush1.bf16.msra.mxu0 %v671
    %808 = vmatprep.subr.bf16.mxu0 0
    %809 = vmatpush1.bf16.msra.mxu0 %v672
    %810 = vmatprep.mubr.bf16.mxu0 %v776
    %811 = vmatmul.mubr.bf16.gmra.mrb[0].mxu0 0
    %v812 = vpop.f32.mrb[0].mxu0
    %v813 = vadd.f32 %v591, %v812
    %v814 = vpop.f32.mrb[0].mxu0
    %v815 = vpop.f32.mrb[0].mxu0
    %v816 = vpop.f32.mrb[0].mxu0
    %817 = vdwg.mxu0
    %v818 = vmax.f32 %v813, 0.0
    %v819 = vpack.c.bf16 %v818, %v818
    %v820 = vsel %vm504, %v529, %v582
    %822 = vmatprep.subr.bf16.mxu0 0
    %823 = vmatpush1.bf16.msra.mxu0 %v657
    %824 = vmatprep.subr.bf16.mxu0 0
    %825 = vmatpush1.bf16.msra.mxu0 %v658
    %826 = vmatprep.subr.bf16.mxu0 0
    %827 = vmatpush1.bf16.msra.mxu0 %v659
    %828 = vmatprep.subr.bf16.mxu0 0
    %829 = vmatpush1.bf16.msra.mxu0 %v660
    %830 = vmatprep.subr.bf16.mxu0 0
    %831 = vmatpush1.bf16.msra.mxu0 %v661
    %832 = vmatprep.subr.bf16.mxu0 0
    %833 = vmatpush1.bf16.msra.mxu0 %v662
    %834 = vmatprep.subr.bf16.mxu0 0
    %835 = vmatpush1.bf16.msra.mxu0 %v663
    %836 = vmatprep.subr.bf16.mxu0 0
    %837 = vmatpush1.bf16.msra.mxu0 %v664
    %838 = vmatprep.subr.bf16.mxu0 0
    %839 = vmatpush1.bf16.msra.mxu0 %v665
    %840 = vmatprep.subr.bf16.mxu0 0
    %841 = vmatpush1.bf16.msra.mxu0 %v666
    %842 = vmatprep.subr.bf16.mxu0 0
    %843 = vmatpush1.bf16.msra.mxu0 %v667
    %844 = vmatprep.subr.bf16.mxu0 0
    %845 = vmatpush1.bf16.msra.mxu0 %v668
    %846 = vmatprep.subr.bf16.mxu0 0
    %847 = vmatpush1.bf16.msra.mxu0 %v669
    %848 = vmatprep.subr.bf16.mxu0 0
    %849 = vmatpush1.bf16.msra.mxu0 %v670
    %850 = vmatprep.subr.bf16.mxu0 0
    %851 = vmatpush1.bf16.msra.mxu0 %v671
    %852 = vmatprep.subr.bf16.mxu0 0
    %853 = vmatpush1.bf16.msra.mxu0 %v672
    %854 = vmatprep.mubr.bf16.mxu0 %v531
    %855 = vmatmul.mubr.bf16.gmra.mrb[0].mxu0 %v820
    %v856 = vpop.f32.mrb[0].mxu0
    %v857 = vadd.f32 %v591, %v856
    %v858 = vpop.f32.mrb[0].mxu0
    %v859 = vpop.f32.mrb[0].mxu0
    %v860 = vpop.f32.mrb[0].mxu0
    %861 = vdwg.mxu0
    %v862 = vmax.f32 %v857, 0.0
    %v863 = vpack.c.bf16 %v862, %v862
    %864 = vmatprep.subr.bf16.mxu0 0
    %865 = vmatpush1.bf16.msra.mxu0 %v657
    %866 = vmatprep.subr.bf16.mxu0 0
    %867 = vmatpush1.bf16.msra.mxu0 %v658
    %868 = vmatprep.subr.bf16.mxu0 0
    %869 = vmatpush1.bf16.msra.mxu0 %v659
    %870 = vmatprep.subr.bf16.mxu0 0
    %871 = vmatpush1.bf16.msra.mxu0 %v660
    %872 = vmatprep.subr.bf16.mxu0 0
    %873 = vmatpush1.bf16.msra.mxu0 %v661
    %874 = vmatprep.subr.bf16.mxu0 0
    %875 = vmatpush1.bf16.msra.mxu0 %v662
    %876 = vmatprep.subr.bf16.mxu0 0
    %877 = vmatpush1.bf16.msra.mxu0 %v663
    %878 = vmatprep.subr.bf16.mxu0 0
    %879 = vmatpush1.bf16.msra.mxu0 %v664
    %880 = vmatprep.subr.bf16.mxu0 0
    %881 = vmatpush1.bf16.msra.mxu0 %v665
    %882 = vmatprep.subr.bf16.mxu0 0
    %883 = vmatpush1.bf16.msra.mxu0 %v666
    %884 = vmatprep.subr.bf16.mxu0 0
    %885 = vmatpush1.bf16.msra.mxu0 %v667
    %886 = vmatprep.subr.bf16.mxu0 0
    %887 = vmatpush1.bf16.msra.mxu0 %v668
    %888 = vmatprep.subr.bf16.mxu0 0
    %889 = vmatpush1.bf16.msra.mxu0 %v669
    %890 = vmatprep.subr.bf16.mxu0 0
    %891 = vmatpush1.bf16.msra.mxu0 %v670
    %892 = vmatprep.subr.bf16.mxu0 0
    %893 = vmatpush1.bf16.msra.mxu0 %v671
    %894 = vmatprep.subr.bf16.mxu0 0
    %895 = vmatpush1.bf16.msra.mxu0 %v672
    %896 = vmatprep.mubr.bf16.mxu0 %v511
    %897 = vmatmul.mubr.bf16.gmra.mrb[0].mxu0 %v585
    %v898 = vpop.f32.mrb[0].mxu0
    %v899 = vadd.f32 %v591, %v898
    %v900 = vpop.f32.mrb[0].mxu0
    %v901 = vpop.f32.mrb[0].mxu0
    %v902 = vpop.f32.mrb[0].mxu0
    %903 = vdwg.mxu0
    %v904 = vmax.f32 %v899, 0.0
    %v905 = vpack.c.bf16 %v904, %v904
    %908 = vrot.lane.b32.xlu0 %v511, 64
    %v909 = vpop.permute.xlu0 %908
    %910 = vrot.lane.b32.xlu0 %v495, 64
    %v911 = vpop.permute.xlu0 %910
    %v912 = vsel %vm504, %v909, %v911
    %914 = vmatprep.subr.bf16.mxu0 0
    %915 = vmatpush1.bf16.msra.mxu0 %v657
    %916 = vmatprep.subr.bf16.mxu0 0
    %917 = vmatpush1.bf16.msra.mxu0 %v658
    %918 = vmatprep.subr.bf16.mxu0 0
    %919 = vmatpush1.bf16.msra.mxu0 %v659
    %920 = vmatprep.subr.bf16.mxu0 0
    %921 = vmatpush1.bf16.msra.mxu0 %v660
    %922 = vmatprep.subr.bf16.mxu0 0
    %923 = vmatpush1.bf16.msra.mxu0 %v661
    %924 = vmatprep.subr.bf16.mxu0 0
    %925 = vmatpush1.bf16.msra.mxu0 %v662
    %926 = vmatprep.subr.bf16.mxu0 0
    %927 = vmatpush1.bf16.msra.mxu0 %v663
    %928 = vmatprep.subr.bf16.mxu0 0
    %929 = vmatpush1.bf16.msra.mxu0 %v664
    %930 = vmatprep.subr.bf16.mxu0 0
    %931 = vmatpush1.bf16.msra.mxu0 %v665
    %932 = vmatprep.subr.bf16.mxu0 0
    %933 = vmatpush1.bf16.msra.mxu0 %v666
    %934 = vmatprep.subr.bf16.mxu0 0
    %935 = vmatpush1.bf16.msra.mxu0 %v667
    %936 = vmatprep.subr.bf16.mxu0 0
    %937 = vmatpush1.bf16.msra.mxu0 %v668
    %938 = vmatprep.subr.bf16.mxu0 0
    %939 = vmatpush1.bf16.msra.mxu0 %v669
    %940 = vmatprep.subr.bf16.mxu0 0
    %941 = vmatpush1.bf16.msra.mxu0 %v670
    %942 = vmatprep.subr.bf16.mxu0 0
    %943 = vmatpush1.bf16.msra.mxu0 %v671
    %944 = vmatprep.subr.bf16.mxu0 0
    %945 = vmatpush1.bf16.msra.mxu0 %v672
    %946 = vmatprep.mubr.bf16.mxu0 %v912
    %947 = vmatmul.mubr.bf16.gmra.mrb[0].mxu0 %v530
    %v948 = vpop.f32.mrb[0].mxu0
    %v949 = vadd.f32 %v591, %v948
    %v950 = vpop.f32.mrb[0].mxu0
    %v951 = vpop.f32.mrb[0].mxu0
    %v952 = vpop.f32.mrb[0].mxu0
    %953 = vdwg.mxu0
    %v954 = vmax.f32 %v949, 0.0
    %v955 = vpack.c.bf16 %v954, %v954
    %956 = vmatprep.subr.bf16.mxu0 0
    %957 = vmatpush1.bf16.msra.mxu0 %v657
    %958 = vmatprep.subr.bf16.mxu0 0
    %959 = vmatpush1.bf16.msra.mxu0 %v658
    %960 = vmatprep.subr.bf16.mxu0 0
    %961 = vmatpush1.bf16.msra.mxu0 %v659
    %962 = vmatprep.subr.bf16.mxu0 0
    %963 = vmatpush1.bf16.msra.mxu0 %v660
    %964 = vmatprep.subr.bf16.mxu0 0
    %965 = vmatpush1.bf16.msra.mxu0 %v661
    %966 = vmatprep.subr.bf16.mxu0 0
    %967 = vmatpush1.bf16.msra.mxu0 %v662
    %968 = vmatprep.subr.bf16.mxu0 0
    %969 = vmatpush1.bf16.msra.mxu0 %v663
    %970 = vmatprep.subr.bf16.mxu0 0
    %971 = vmatpush1.bf16.msra.mxu0 %v664
    %972 = vmatprep.subr.bf16.mxu0 0
    %973 = vmatpush1.bf16.msra.mxu0 %v665
    %974 = vmatprep.subr.bf16.mxu0 0
    %975 = vmatpush1.bf16.msra.mxu0 %v666
    %976 = vmatprep.subr.bf16.mxu0 0
    %977 = vmatpush1.bf16.msra.mxu0 %v667
    %978 = vmatprep.subr.bf16.mxu0 0
    %979 = vmatpush1.bf16.msra.mxu0 %v668
    %980 = vmatprep.subr.bf16.mxu0 0
    %981 = vmatpush1.bf16.msra.mxu0 %v669
    %982 = vmatprep.subr.bf16.mxu0 0
    %983 = vmatpush1.bf16.msra.mxu0 %v670
    %984 = vmatprep.subr.bf16.mxu0 0
    %985 = vmatpush1.bf16.msra.mxu0 %v671
    %986 = vmatprep.subr.bf16.mxu0 0
    %987 = vmatpush1.bf16.msra.mxu0 %v672
    %988 = vmatprep.mubr.bf16.mxu0 %v495
    %989 = vmatmul.mubr.bf16.gmra.mrb[0].mxu0 %v776
    %v990 = vpop.f32.mrb[0].mxu0
    %v991 = vadd.f32 %v591, %v990
    %v992 = vpop.f32.mrb[0].mxu0
    %v993 = vpop.f32.mrb[0].mxu0
    %v994 = vpop.f32.mrb[0].mxu0
    %995 = vdwg.mxu0
    %v996 = vmax.f32 %v991, 0.0
    %v997 = vpack.c.bf16 %v996, %v996
    %999 = vrot.lane.b32.xlu0 %v546, 64
    %v1000 = vpop.permute.xlu0 %999
    %v1001 = vsel %vm504, %v911, %v1000
    %1003 = vmatprep.subr.bf16.mxu0 0
    %1004 = vmatpush1.bf16.msra.mxu0 %v657
    %1005 = vmatprep.subr.bf16.mxu0 0
    %1006 = vmatpush1.bf16.msra.mxu0 %v658
    %1007 = vmatprep.subr.bf16.mxu0 0
    %1008 = vmatpush1.bf16.msra.mxu0 %v659
    %1009 = vmatprep.subr.bf16.mxu0 0
    %1010 = vmatpush1.bf16.msra.mxu0 %v660
    %1011 = vmatprep.subr.bf16.mxu0 0
    %1012 = vmatpush1.bf16.msra.mxu0 %v661
    %1013 = vmatprep.subr.bf16.mxu0 0
    %1014 = vmatpush1.bf16.msra.mxu0 %v662
    %1015 = vmatprep.subr.bf16.mxu0 0
    %1016 = vmatpush1.bf16.msra.mxu0 %v663
    %1017 = vmatprep.subr.bf16.mxu0 0
    %1018 = vmatpush1.bf16.msra.mxu0 %v664
    %1019 = vmatprep.subr.bf16.mxu0 0
    %1020 = vmatpush1.bf16.msra.mxu0 %v665
    %1021 = vmatprep.subr.bf16.mxu0 0
    %1022 = vmatpush1.bf16.msra.mxu0 %v666
    %1023 = vmatprep.subr.bf16.mxu0 0
    %1024 = vmatpush1.bf16.msra.mxu0 %v667
    %1025 = vmatprep.subr.bf16.mxu0 0
    %1026 = vmatpush1.bf16.msra.mxu0 %v668
    %1027 = vmatprep.subr.bf16.mxu0 0
    %1028 = vmatpush1.bf16.msra.mxu0 %v669
    %1029 = vmatprep.subr.bf16.mxu0 0
    %1030 = vmatpush1.bf16.msra.mxu0 %v670
    %1031 = vmatprep.subr.bf16.mxu0 0
    %1032 = vmatpush1.bf16.msra.mxu0 %v671
    %1033 = vmatprep.subr.bf16.mxu0 0
    %1034 = vmatpush1.bf16.msra.mxu0 %v672
    %1035 = vmatprep.mubr.bf16.mxu0 %v1001
    %1036 = vmatmul.mubr.bf16.gmra.mrb[0].mxu0 %v531
    %v1037 = vpop.f32.mrb[0].mxu0
    %v1038 = vadd.f32 %v591, %v1037
    %v1039 = vpop.f32.mrb[0].mxu0
    %v1040 = vpop.f32.mrb[0].mxu0
    %v1041 = vpop.f32.mrb[0].mxu0
    %1042 = vdwg.mxu0
    %v1043 = vmax.f32 %v1038, 0.0
    %v1044 = vpack.c.bf16 %v1043, %v1043
    %1045 = vrot.lane.b32.xlu0 %v539, 64
    %v1046 = vpop.permute.xlu0 %1045
    %v1047 = vsel %vm504, %v1000, %v1046
    %1049 = vmatprep.subr.bf16.mxu0 0
    %1050 = vmatpush1.bf16.msra.mxu0 %v657
    %1051 = vmatprep.subr.bf16.mxu0 0
    %1052 = vmatpush1.bf16.msra.mxu0 %v658
    %1053 = vmatprep.subr.bf16.mxu0 0
    %1054 = vmatpush1.bf16.msra.mxu0 %v659
    %1055 = vmatprep.subr.bf16.mxu0 0
    %1056 = vmatpush1.bf16.msra.mxu0 %v660
    %1057 = vmatprep.subr.bf16.mxu0 0
    %1058 = vmatpush1.bf16.msra.mxu0 %v661
    %1059 = vmatprep.subr.bf16.mxu0 0
    %1060 = vmatpush1.bf16.msra.mxu0 %v662
    %1061 = vmatprep.subr.bf16.mxu0 0
    %1062 = vmatpush1.bf16.msra.mxu0 %v663
    %1063 = vmatprep.subr.bf16.mxu0 0
    %1064 = vmatpush1.bf16.msra.mxu0 %v664
    %1065 = vmatprep.subr.bf16.mxu0 0
    %1066 = vmatpush1.bf16.msra.mxu0 %v665
    %1067 = vmatprep.subr.bf16.mxu0 0
    %1068 = vmatpush1.bf16.msra.mxu0 %v666
    %1069 = vmatprep.subr.bf16.mxu0 0
    %1070 = vmatpush1.bf16.msra.mxu0 %v667
    %1071 = vmatprep.subr.bf16.mxu0 0
    %1072 = vmatpush1.bf16.msra.mxu0 %v668
    %1073 = vmatprep.subr.bf16.mxu0 0
    %1074 = vmatpush1.bf16.msra.mxu0 %v669
    %1075 = vmatprep.subr.bf16.mxu0 0
    %1076 = vmatpush1.bf16.msra.mxu0 %v670
    %1077 = vmatprep.subr.bf16.mxu0 0
    %1078 = vmatpush1.bf16.msra.mxu0 %v671
    %1079 = vmatprep.subr.bf16.mxu0 0
    %1080 = vmatpush1.bf16.msra.mxu0 %v672
    %1081 = vmatprep.mubr.bf16.mxu0 %v1047
    %1082 = vmatmul.mubr.bf16.gmra.mrb[0].mxu0 %v511
    %v1083 = vpop.f32.mrb[0].mxu0
    %v1084 = vadd.f32 %v591, %v1083
    %v1085 = vpop.f32.mrb[0].mxu0
    %v1086 = vpop.f32.mrb[0].mxu0
    %v1087 = vpop.f32.mrb[0].mxu0
    %1088 = vdwg.mxu0
    %v1089 = vmax.f32 %v1084, 0.0
    %v1090 = vpack.c.bf16 %v1089, %v1089
    %1091 = vmatprep.subr.bf16.mxu0 0
    %1092 = vmatpush1.bf16.msra.mxu0 %v657
    %1093 = vmatprep.subr.bf16.mxu0 0
    %1094 = vmatpush1.bf16.msra.mxu0 %v658
    %1095 = vmatprep.subr.bf16.mxu0 0
    %1096 = vmatpush1.bf16.msra.mxu0 %v659
    %1097 = vmatprep.subr.bf16.mxu0 0
    %1098 = vmatpush1.bf16.msra.mxu0 %v660
    %1099 = vmatprep.subr.bf16.mxu0 0
    %1100 = vmatpush1.bf16.msra.mxu0 %v661
    %1101 = vmatprep.subr.bf16.mxu0 0
    %1102 = vmatpush1.bf16.msra.mxu0 %v662
    %1103 = vmatprep.subr.bf16.mxu0 0
    %1104 = vmatpush1.bf16.msra.mxu0 %v663
    %1105 = vmatprep.subr.bf16.mxu0 0
    %1106 = vmatpush1.bf16.msra.mxu0 %v664
    %1107 = vmatprep.subr.bf16.mxu0 0
    %1108 = vmatpush1.bf16.msra.mxu0 %v665
    %1109 = vmatprep.subr.bf16.mxu0 0
    %1110 = vmatpush1.bf16.msra.mxu0 %v666
    %1111 = vmatprep.subr.bf16.mxu0 0
    %1112 = vmatpush1.bf16.msra.mxu0 %v667
    %1113 = vmatprep.subr.bf16.mxu0 0
    %1114 = vmatpush1.bf16.msra.mxu0 %v668
    %1115 = vmatprep.subr.bf16.mxu0 0
    %1116 = vmatpush1.bf16.msra.mxu0 %v669
    %1117 = vmatprep.subr.bf16.mxu0 0
    %1118 = vmatpush1.bf16.msra.mxu0 %v670
    %1119 = vmatprep.subr.bf16.mxu0 0
    %1120 = vmatpush1.bf16.msra.mxu0 %v671
    %1121 = vmatprep.subr.bf16.mxu0 0
    %1122 = vmatpush1.bf16.msra.mxu0 %v672
    %1123 = vmatprep.mubr.bf16.mxu0 %v539
    %1124 = vmatmul.mubr.bf16.gmra.mrb[0].mxu0 %v912
    %v1125 = vpop.f32.mrb[0].mxu0
    %v1126 = vadd.f32 %v591, %v1125
    %v1127 = vpop.f32.mrb[0].mxu0
    %v1128 = vpop.f32.mrb[0].mxu0
    %v1129 = vpop.f32.mrb[0].mxu0
    %1130 = vdwg.mxu0
    %v1131 = vmax.f32 %v1126, 0.0
    %v1132 = vpack.c.bf16 %v1131, %v1131
    %1133 = vrot.lane.b32.xlu0 %v540, 64
    %v1134 = vpop.permute.xlu0 %1133
    %v1135 = vsel %vm504, %v1046, %v1134
    %1137 = vmatprep.subr.bf16.mxu0 0
    %1138 = vmatpush1.bf16.msra.mxu0 %v657
    %1139 = vmatprep.subr.bf16.mxu0 0
    %1140 = vmatpush1.bf16.msra.mxu0 %v658
    %1141 = vmatprep.subr.bf16.mxu0 0
    %1142 = vmatpush1.bf16.msra.mxu0 %v659
    %1143 = vmatprep.subr.bf16.mxu0 0
    %1144 = vmatpush1.bf16.msra.mxu0 %v660
    %1145 = vmatprep.subr.bf16.mxu0 0
    %1146 = vmatpush1.bf16.msra.mxu0 %v661
    %1147 = vmatprep.subr.bf16.mxu0 0
    %1148 = vmatpush1.bf16.msra.mxu0 %v662
    %1149 = vmatprep.subr.bf16.mxu0 0
    %1150 = vmatpush1.bf16.msra.mxu0 %v663
    %1151 = vmatprep.subr.bf16.mxu0 0
    %1152 = vmatpush1.bf16.msra.mxu0 %v664
    %1153 = vmatprep.subr.bf16.mxu0 0
    %1154 = vmatpush1.bf16.msra.mxu0 %v665
    %1155 = vmatprep.subr.bf16.mxu0 0
    %1156 = vmatpush1.bf16.msra.mxu0 %v666
    %1157 = vmatprep.subr.bf16.mxu0 0
    %1158 = vmatpush1.bf16.msra.mxu0 %v667
    %1159 = vmatprep.subr.bf16.mxu0 0
    %1160 = vmatpush1.bf16.msra.mxu0 %v668
    %1161 = vmatprep.subr.bf16.mxu0 0
    %1162 = vmatpush1.bf16.msra.mxu0 %v669
    %1163 = vmatprep.subr.bf16.mxu0 0
    %1164 = vmatpush1.bf16.msra.mxu0 %v670
    %1165 = vmatprep.subr.bf16.mxu0 0
    %1166 = vmatpush1.bf16.msra.mxu0 %v671
    %1167 = vmatprep.subr.bf16.mxu0 0
    %1168 = vmatpush1.bf16.msra.mxu0 %v672
    %1169 = vmatprep.mubr.bf16.mxu0 %v1135
    %1170 = vmatmul.mubr.bf16.gmra.mrb[0].mxu0 %v495
    %v1171 = vpop.f32.mrb[0].mxu0
    %v1172 = vadd.f32 %v591, %v1171
    %v1173 = vpop.f32.mrb[0].mxu0
    %v1174 = vpop.f32.mrb[0].mxu0
    %v1175 = vpop.f32.mrb[0].mxu0
    %1176 = vdwg.mxu0
    %v1177 = vmax.f32 %v1172, 0.0
    %v1178 = vpack.c.bf16 %v1177, %v1177
    %1179 = vmatprep.subr.bf16.mxu0 0
    %1180 = vmatpush1.bf16.msra.mxu0 %v657
    %1181 = vmatprep.subr.bf16.mxu0 0
    %1182 = vmatpush1.bf16.msra.mxu0 %v658
    %1183 = vmatprep.subr.bf16.mxu0 0
    %1184 = vmatpush1.bf16.msra.mxu0 %v659
    %1185 = vmatprep.subr.bf16.mxu0 0
    %1186 = vmatpush1.bf16.msra.mxu0 %v660
    %1187 = vmatprep.subr.bf16.mxu0 0
    %1188 = vmatpush1.bf16.msra.mxu0 %v661
    %1189 = vmatprep.subr.bf16.mxu0 0
    %1190 = vmatpush1.bf16.msra.mxu0 %v662
    %1191 = vmatprep.subr.bf16.mxu0 0
    %1192 = vmatpush1.bf16.msra.mxu0 %v663
    %1193 = vmatprep.subr.bf16.mxu0 0
    %1194 = vmatpush1.bf16.msra.mxu0 %v664
    %1195 = vmatprep.subr.bf16.mxu0 0
    %1196 = vmatpush1.bf16.msra.mxu0 %v665
    %1197 = vmatprep.subr.bf16.mxu0 0
    %1198 = vmatpush1.bf16.msra.mxu0 %v666
    %1199 = vmatprep.subr.bf16.mxu0 0
    %1200 = vmatpush1.bf16.msra.mxu0 %v667
    %1201 = vmatprep.subr.bf16.mxu0 0
    %1202 = vmatpush1.bf16.msra.mxu0 %v668
    %1203 = vmatprep.subr.bf16.mxu0 0
    %1204 = vmatpush1.bf16.msra.mxu0 %v669
    %1205 = vmatprep.subr.bf16.mxu0 0
    %1206 = vmatpush1.bf16.msra.mxu0 %v670
    %1207 = vmatprep.subr.bf16.mxu0 0
    %1208 = vmatpush1.bf16.msra.mxu0 %v671
    %1209 = vmatprep.subr.bf16.mxu0 0
    %1210 = vmatpush1.bf16.msra.mxu0 %v672
    %1211 = vmatprep.mubr.bf16.mxu0 %v540
    %1212 = vmatmul.mubr.bf16.gmra.mrb[0].mxu0 %v1001
    %v1213 = vpop.f32.mrb[0].mxu0
    %v1214 = vadd.f32 %v591, %v1213
    %v1215 = vpop.f32.mrb[0].mxu0
    %v1216 = vpop.f32.mrb[0].mxu0
    %v1217 = vpop.f32.mrb[0].mxu0
    %1218 = vdwg.mxu0
    %v1219 = vmax.f32 %v1214, 0.0
    %v1220 = vpack.c.bf16 %v1219, %v1219
    %1221 = vmatprep.subr.bf16.mxu0 0
    %1222 = vmatpush1.bf16.msra.mxu0 %v657
    %1223 = vmatprep.subr.bf16.mxu0 0
    %1224 = vmatpush1.bf16.msra.mxu0 %v658
    %1225 = vmatprep.subr.bf16.mxu0 0
    %1226 = vmatpush1.bf16.msra.mxu0 %v659
    %1227 = vmatprep.subr.bf16.mxu0 0
    %1228 = vmatpush1.bf16.msra.mxu0 %v660
    %1229 = vmatprep.subr.bf16.mxu0 0
    %1230 = vmatpush1.bf16.msra.mxu0 %v661
    %1231 = vmatprep.subr.bf16.mxu0 0
    %1232 = vmatpush1.bf16.msra.mxu0 %v662
    %1233 = vmatprep.subr.bf16.mxu0 0
    %1234 = vmatpush1.bf16.msra.mxu0 %v663
    %1235 = vmatprep.subr.bf16.mxu0 0
    %1236 = vmatpush1.bf16.msra.mxu0 %v664
    %1237 = vmatprep.subr.bf16.mxu0 0
    %1238 = vmatpush1.bf16.msra.mxu0 %v665
    %1239 = vmatprep.subr.bf16.mxu0 0
    %1240 = vmatpush1.bf16.msra.mxu0 %v666
    %1241 = vmatprep.subr.bf16.mxu0 0
    %1242 = vmatpush1.bf16.msra.mxu0 %v667
    %1243 = vmatprep.subr.bf16.mxu0 0
    %1244 = vmatpush1.bf16.msra.mxu0 %v668
    %1245 = vmatprep.subr.bf16.mxu0 0
    %1246 = vmatpush1.bf16.msra.mxu0 %v669
    %1247 = vmatprep.subr.bf16.mxu0 0
    %1248 = vmatpush1.bf16.msra.mxu0 %v670
    %1249 = vmatprep.subr.bf16.mxu0 0
    %1250 = vmatpush1.bf16.msra.mxu0 %v671
    %1251 = vmatprep.subr.bf16.mxu0 0
    %1252 = vmatpush1.bf16.msra.mxu0 %v672
    %1253 = vmatprep.mubr.bf16.mxu0 0
    %1254 = vmatmul.mubr.bf16.gmra.mrb[0].mxu0 %v1047
    %v1255 = vpop.f32.mrb[0].mxu0
    %v1256 = vadd.f32 %v591, %v1255
    %v1257 = vpop.f32.mrb[0].mxu0
    %v1258 = vpop.f32.mrb[0].mxu0
    %v1259 = vpop.f32.mrb[0].mxu0
    %1260 = vdwg.mxu0
    %v1261 = vmax.f32 %v1256, 0.0
    %v1262 = vpack.c.bf16 %v1261, %v1261
    %1263 = vmatprep.subr.bf16.mxu0 0
    %1264 = vmatpush1.bf16.msra.mxu0 %v657
    %1265 = vmatprep.subr.bf16.mxu0 0
    %1266 = vmatpush1.bf16.msra.mxu0 %v658
    %1267 = vmatprep.subr.bf16.mxu0 0
    %1268 = vmatpush1.bf16.msra.mxu0 %v659
    %1269 = vmatprep.subr.bf16.mxu0 0
    %1270 = vmatpush1.bf16.msra.mxu0 %v660
    %1271 = vmatprep.subr.bf16.mxu0 0
    %1272 = vmatpush1.bf16.msra.mxu0 %v661
    %1273 = vmatprep.subr.bf16.mxu0 0
    %1274 = vmatpush1.bf16.msra.mxu0 %v662
    %1275 = vmatprep.subr.bf16.mxu0 0
    %1276 = vmatpush1.bf16.msra.mxu0 %v663
    %1277 = vmatprep.subr.bf16.mxu0 0
    %1278 = vmatpush1.bf16.msra.mxu0 %v664
    %1279 = vmatprep.subr.bf16.mxu0 0
    %1280 = vmatpush1.bf16.msra.mxu0 %v665
    %1281 = vmatprep.subr.bf16.mxu0 0
    %1282 = vmatpush1.bf16.msra.mxu0 %v666
    %1283 = vmatprep.subr.bf16.mxu0 0
    %1284 = vmatpush1.bf16.msra.mxu0 %v667
    %1285 = vmatprep.subr.bf16.mxu0 0
    %1286 = vmatpush1.bf16.msra.mxu0 %v668
    %1287 = vmatprep.subr.bf16.mxu0 0
    %1288 = vmatpush1.bf16.msra.mxu0 %v669
    %1289 = vmatprep.subr.bf16.mxu0 0
    %1290 = vmatpush1.bf16.msra.mxu0 %v670
    %1291 = vmatprep.subr.bf16.mxu0 0
    %1292 = vmatpush1.bf16.msra.mxu0 %v671
    %1293 = vmatprep.subr.bf16.mxu0 0
    %1294 = vmatpush1.bf16.msra.mxu0 %v672
    %1295 = vmatprep.mubr.bf16.mxu0 %v529
    %1296 = vmatmul.mubr.bf16.gmra.mrb[0].mxu0 %v539
    %v1297 = vpop.f32.mrb[0].mxu0
    %v1298 = vadd.f32 %v591, %v1297
    %v1299 = vpop.f32.mrb[0].mxu0
    %v1300 = vpop.f32.mrb[0].mxu0
    %v1301 = vpop.f32.mrb[0].mxu0
    %1302 = vdwg.mxu0
    %v1303 = vmax.f32 %v1298, 0.0
    %v1304 = vpack.c.bf16 %v1303, %v1303
    %1305 = vmatprep.subr.bf16.mxu0 0
    %1306 = vmatpush1.bf16.msra.mxu0 %v657
    %1307 = vmatprep.subr.bf16.mxu0 0
    %1308 = vmatpush1.bf16.msra.mxu0 %v658
    %1309 = vmatprep.subr.bf16.mxu0 0
    %1310 = vmatpush1.bf16.msra.mxu0 %v659
    %1311 = vmatprep.subr.bf16.mxu0 0
    %1312 = vmatpush1.bf16.msra.mxu0 %v660
    %1313 = vmatprep.subr.bf16.mxu0 0
    %1314 = vmatpush1.bf16.msra.mxu0 %v661
    %1315 = vmatprep.subr.bf16.mxu0 0
    %1316 = vmatpush1.bf16.msra.mxu0 %v662
    %1317 = vmatprep.subr.bf16.mxu0 0
    %1318 = vmatpush1.bf16.msra.mxu0 %v663
    %1319 = vmatprep.subr.bf16.mxu0 0
    %1320 = vmatpush1.bf16.msra.mxu0 %v664
    %1321 = vmatprep.subr.bf16.mxu0 0
    %1322 = vmatpush1.bf16.msra.mxu0 %v665
    %1323 = vmatprep.subr.bf16.mxu0 0
    %1324 = vmatpush1.bf16.msra.mxu0 %v666
    %1325 = vmatprep.subr.bf16.mxu0 0
    %1326 = vmatpush1.bf16.msra.mxu0 %v667
    %1327 = vmatprep.subr.bf16.mxu0 0
    %1328 = vmatpush1.bf16.msra.mxu0 %v668
    %1329 = vmatprep.subr.bf16.mxu0 0
    %1330 = vmatpush1.bf16.msra.mxu0 %v669
    %1331 = vmatprep.subr.bf16.mxu0 0
    %1332 = vmatpush1.bf16.msra.mxu0 %v670
    %1333 = vmatprep.subr.bf16.mxu0 0
    %1334 = vmatpush1.bf16.msra.mxu0 %v671
    %1335 = vmatprep.subr.bf16.mxu0 0
    %1336 = vmatpush1.bf16.msra.mxu0 %v672
    %1337 = vmatprep.mubr.bf16.mxu0 0
    %1338 = vmatmul.mubr.bf16.gmra.mrb[0].mxu0 %v1135
    %v1339 = vpop.f32.mrb[0].mxu0
    %v1340 = vadd.f32 %v591, %v1339
    %v1341 = vpop.f32.mrb[0].mxu0
    %v1342 = vpop.f32.mrb[0].mxu0
    %v1343 = vpop.f32.mrb[0].mxu0
    %1344 = vdwg.mxu0
    %v1345 = vmax.f32 %v1340, 0.0
    %v1346 = vpack.c.bf16 %v1345, %v1345
    %1347 = vmatprep.subr.bf16.mxu0 0
    %1348 = vmatpush1.bf16.msra.mxu0 %v657
    %1349 = vmatprep.subr.bf16.mxu0 0
    %1350 = vmatpush1.bf16.msra.mxu0 %v658
    %1351 = vmatprep.subr.bf16.mxu0 0
    %1352 = vmatpush1.bf16.msra.mxu0 %v659
    %1353 = vmatprep.subr.bf16.mxu0 0
    %1354 = vmatpush1.bf16.msra.mxu0 %v660
    %1355 = vmatprep.subr.bf16.mxu0 0
    %1356 = vmatpush1.bf16.msra.mxu0 %v661
    %1357 = vmatprep.subr.bf16.mxu0 0
    %1358 = vmatpush1.bf16.msra.mxu0 %v662
    %1359 = vmatprep.subr.bf16.mxu0 0
    %1360 = vmatpush1.bf16.msra.mxu0 %v663
    %1361 = vmatprep.subr.bf16.mxu0 0
    %1362 = vmatpush1.bf16.msra.mxu0 %v664
    %1363 = vmatprep.subr.bf16.mxu0 0
    %1364 = vmatpush1.bf16.msra.mxu0 %v665
    %1365 = vmatprep.subr.bf16.mxu0 0
    %1366 = vmatpush1.bf16.msra.mxu0 %v666
    %1367 = vmatprep.subr.bf16.mxu0 0
    %1368 = vmatpush1.bf16.msra.mxu0 %v667
    %1369 = vmatprep.subr.bf16.mxu0 0
    %1370 = vmatpush1.bf16.msra.mxu0 %v668
    %1371 = vmatprep.subr.bf16.mxu0 0
    %1372 = vmatpush1.bf16.msra.mxu0 %v669
    %1373 = vmatprep.subr.bf16.mxu0 0
    %1374 = vmatpush1.bf16.msra.mxu0 %v670
    %1375 = vmatprep.subr.bf16.mxu0 0
    %1376 = vmatpush1.bf16.msra.mxu0 %v671
    %1377 = vmatprep.subr.bf16.mxu0 0
    %1378 = vmatpush1.bf16.msra.mxu0 %v672
    %1379 = vmatprep.mubr.bf16.mxu0 %v529
    %1380 = vmatmul.mubr.bf16.gmra.mrb[0].mxu0 %v540
    %v1381 = vpop.f32.mrb[0].mxu0
    %v1382 = vadd.f32 %v591, %v1381
    %v1383 = vpop.f32.mrb[0].mxu0
    %v1384 = vpop.f32.mrb[0].mxu0
    %v1385 = vpop.f32.mrb[0].mxu0
    %1386 = vdwg.mxu0
    %v1387 = vmax.f32 %v1382, 0.0
    %v1388 = vpack.c.bf16 %v1387, %v1387
    %v1389 = vld [vmem:[%s5] sm:$0xf]
    %v1390 = vld [vmem:[%s5 + $0x4] sm:$0xf]
    %v1391 = vld [vmem:[%s5 + $0x8] sm:$0xf]
    %v1392 = vld [vmem:[%s5 + $0xc] sm:$0xf]
    %v1393 = vld [vmem:[%s5 + $0x10] sm:$0xf]
    %v1394 = vld [vmem:[%s5 + $0x14] sm:$0xf]
    %v1395 = vld [vmem:[%s5 + $0x18] sm:$0xf]
    %v1396 = vld [vmem:[%s5 + $0x1c] sm:$0xf]
    %v1397 = vld [vmem:[%s5 + $0x20] sm:$0xf]
    %v1398 = vld [vmem:[%s5 + $0x24] sm:$0xf]
    %v1399 = vld [vmem:[%s5 + $0x28] sm:$0xf]
    %v1400 = vld [vmem:[%s5 + $0x2c] sm:$0xf]
    %v1401 = vld [vmem:[%s5 + $0x30] sm:$0xf]
    %v1402 = vld [vmem:[%s5 + $0x34] sm:$0xf]
    %v1403 = vld [vmem:[%s5 + $0x38] sm:$0xf]
    %v1404 = vld [vmem:[%s5 + $0x3c] sm:$0xf]
    %v1405 = vld [vmem:[%s5 + $0x40] sm:$0xf]
    %v1406 = vld [vmem:[%s5 + $0x44] sm:$0xf]
    %v1407 = vld [vmem:[%s5 + $0x48] sm:$0xf]
    %v1408 = vld [vmem:[%s5 + $0x4c] sm:$0xf]
    %v1409 = vld [vmem:[%s5 + $0x50] sm:$0xf]
    %v1410 = vld [vmem:[%s5 + $0x54] sm:$0xf]
    %v1411 = vld [vmem:[%s5 + $0x58] sm:$0xf]
    %v1412 = vld [vmem:[%s5 + $0x5c] sm:$0xf]
    %v1413 = vld [vmem:[%s5 + $0x60] sm:$0xf]
    %v1414 = vld [vmem:[%s5 + $0x64] sm:$0xf]
    %v1415 = vld [vmem:[%s5 + $0x68] sm:$0xf]
    %v1416 = vld [vmem:[%s5 + $0x6c] sm:$0xf]
    %v1417 = vld [vmem:[%s5 + $0x70] sm:$0xf]
    %v1418 = vld [vmem:[%s5 + $0x74] sm:$0xf]
    %v1419 = vld [vmem:[%s5 + $0x78] sm:$0xf]
    %v1420 = vld [vmem:[%s5 + $0x7c] sm:$0xf]
    %v1421 = vld [vmem:[%s5 + $0x80] sm:$0xf]
    %v1422 = vld [vmem:[%s5 + $0x84] sm:$0xf]
    %v1423 = vld [vmem:[%s5 + $0x88] sm:$0xf]
    %v1424 = vld [vmem:[%s5 + $0x8c] sm:$0xf]
    %v1425 = vld [vmem:[%s5 + $0x90] sm:$0xf]
    %v1426 = vld [vmem:[%s5 + $0x94] sm:$0xf]
    %v1427 = vld [vmem:[%s5 + $0x98] sm:$0xf]
    %v1428 = vld [vmem:[%s5 + $0x9c] sm:$0xf]
    %v1429 = vld [vmem:[%s5 + $0xa0] sm:$0xf]
    %v1430 = vld [vmem:[%s5 + $0xa4] sm:$0xf]
    %v1431 = vld [vmem:[%s5 + $0xa8] sm:$0xf]
    %v1432 = vld [vmem:[%s5 + $0xac] sm:$0xf]
    %v1433 = vld [vmem:[%s5 + $0xb0] sm:$0xf]
    %v1434 = vld [vmem:[%s5 + $0xb4] sm:$0xf]
    %v1435 = vld [vmem:[%s5 + $0xb8] sm:$0xf]
    %v1436 = vld [vmem:[%s5 + $0xbc] sm:$0xf]
    %v1437 = vld [vmem:[%s5 + $0xc0] sm:$0xf]
    %v1438 = vld [vmem:[%s5 + $0xc4] sm:$0xf]
    %v1439 = vld [vmem:[%s5 + $0xc8] sm:$0xf]
    %v1440 = vld [vmem:[%s5 + $0xcc] sm:$0xf]
    %v1441 = vld [vmem:[%s5 + $0xd0] sm:$0xf]
    %v1442 = vld [vmem:[%s5 + $0xd4] sm:$0xf]
    %v1443 = vld [vmem:[%s5 + $0xd8] sm:$0xf]
    %v1444 = vld [vmem:[%s5 + $0xdc] sm:$0xf]
    %v1445 = vld [vmem:[%s5 + $0xe0] sm:$0xf]
    %v1446 = vld [vmem:[%s5 + $0xe4] sm:$0xf]
    %v1447 = vld [vmem:[%s5 + $0xe8] sm:$0xf]
    %v1448 = vld [vmem:[%s5 + $0xec] sm:$0xf]
    %v1449 = vld [vmem:[%s5 + $0xf0] sm:$0xf]
    %v1450 = vld [vmem:[%s5 + $0xf4] sm:$0xf]
    %v1451 = vld [vmem:[%s5 + $0xf8] sm:$0xf]
    %v1452 = vld [vmem:[%s5 + $0xfc] sm:$0xf]
    %v1453 = vld [vmem:[%s6] sm:$0x1]
    %v1455 = vlaneseq
    %v1456 = vshrl.u32 %v1455, 7
    %v1457 = vsub.s32 0, %v1456
    %v1458 = vrot.slane %v1453, %v1457
    %v1524 = vunpack.c.l.b16 %v1389
    %v1525 = vunpack.c.l.b16 %v1390
    %v1526 = vunpack.c.l.b16 %v1391
    %v1527 = vunpack.c.l.b16 %v1392
    %v1528 = vunpack.c.l.b16 %v1393
    %v1529 = vunpack.c.l.b16 %v1394
    %v1530 = vunpack.c.l.b16 %v1395
    %v1531 = vunpack.c.l.b16 %v1396
    %v1532 = vunpack.c.l.b16 %v1397
    %v1533 = vunpack.c.l.b16 %v1398
    %v1534 = vunpack.c.l.b16 %v1399
    %v1535 = vunpack.c.l.b16 %v1400
    %v1536 = vunpack.c.l.b16 %v1401
    %v1537 = vunpack.c.l.b16 %v1402
    %v1538 = vunpack.c.l.b16 %v1403
    %v1539 = vunpack.c.l.b16 %v1404
    %v1540 = vunpack.c.l.b16 %v1405
    %v1541 = vunpack.c.l.b16 %v1406
    %v1542 = vunpack.c.l.b16 %v1407
    %v1543 = vunpack.c.l.b16 %v1408
    %v1544 = vunpack.c.l.b16 %v1409
    %v1545 = vunpack.c.l.b16 %v1410
    %v1546 = vunpack.c.l.b16 %v1411
    %v1547 = vunpack.c.l.b16 %v1412
    %v1548 = vunpack.c.l.b16 %v1413
    %v1549 = vunpack.c.l.b16 %v1414
    %v1550 = vunpack.c.l.b16 %v1415
    %v1551 = vunpack.c.l.b16 %v1416
    %v1552 = vunpack.c.l.b16 %v1417
    %v1553 = vunpack.c.l.b16 %v1418
    %v1554 = vunpack.c.l.b16 %v1419
    %v1555 = vunpack.c.l.b16 %v1420
    %v1556 = vunpack.c.l.b16 %v1421
    %v1557 = vunpack.c.l.b16 %v1422
    %v1558 = vunpack.c.l.b16 %v1423
    %v1559 = vunpack.c.l.b16 %v1424
    %v1560 = vunpack.c.l.b16 %v1425
    %v1561 = vunpack.c.l.b16 %v1426
    %v1562 = vunpack.c.l.b16 %v1427
    %v1563 = vunpack.c.l.b16 %v1428
    %v1564 = vunpack.c.l.b16 %v1429
    %v1565 = vunpack.c.l.b16 %v1430
    %v1566 = vunpack.c.l.b16 %v1431
    %v1567 = vunpack.c.l.b16 %v1432
    %v1568 = vunpack.c.l.b16 %v1433
    %v1569 = vunpack.c.l.b16 %v1434
    %v1570 = vunpack.c.l.b16 %v1435
    %v1571 = vunpack.c.l.b16 %v1436
    %v1572 = vunpack.c.l.b16 %v1437
    %v1573 = vunpack.c.l.b16 %v1438
    %v1574 = vunpack.c.l.b16 %v1439
    %v1575 = vunpack.c.l.b16 %v1440
    %v1576 = vunpack.c.l.b16 %v1441
    %v1577 = vunpack.c.l.b16 %v1442
    %v1578 = vunpack.c.l.b16 %v1443
    %v1579 = vunpack.c.l.b16 %v1444
    %v1580 = vunpack.c.l.b16 %v1445
    %v1581 = vunpack.c.l.b16 %v1446
    %v1582 = vunpack.c.l.b16 %v1447
    %v1583 = vunpack.c.l.b16 %v1448
    %v1584 = vunpack.c.l.b16 %v1449
    %v1585 = vunpack.c.l.b16 %v1450
    %v1586 = vunpack.c.l.b16 %v1451
    %v1587 = vunpack.c.l.b16 %v1452
    %v1588 = vpack.c.b16 %v1525, %v1524
    %v1589 = vpack.c.b16 %v1527, %v1526
    %v1590 = vpack.c.b16 %v1529, %v1528
    %v1591 = vpack.c.b16 %v1531, %v1530
    %v1592 = vpack.c.b16 %v1533, %v1532
    %v1593 = vpack.c.b16 %v1535, %v1534
    %v1594 = vpack.c.b16 %v1537, %v1536
    %v1595 = vpack.c.b16 %v1539, %v1538
    %v1596 = vpack.c.b16 %v1541, %v1540
    %v1597 = vpack.c.b16 %v1543, %v1542
    %v1598 = vpack.c.b16 %v1545, %v1544
    %v1599 = vpack.c.b16 %v1547, %v1546
    %v1600 = vpack.c.b16 %v1549, %v1548
    %v1601 = vpack.c.b16 %v1551, %v1550
    %v1602 = vpack.c.b16 %v1553, %v1552
    %v1603 = vpack.c.b16 %v1555, %v1554
    %v1604 = vpack.c.b16 %v1557, %v1556
    %v1605 = vpack.c.b16 %v1559, %v1558
    %v1606 = vpack.c.b16 %v1561, %v1560
    %v1607 = vpack.c.b16 %v1563, %v1562
    %v1608 = vpack.c.b16 %v1565, %v1564
    %v1609 = vpack.c.b16 %v1567, %v1566
    %v1610 = vpack.c.b16 %v1569, %v1568
    %v1611 = vpack.c.b16 %v1571, %v1570
    %v1612 = vpack.c.b16 %v1573, %v1572
    %v1613 = vpack.c.b16 %v1575, %v1574
    %v1614 = vpack.c.b16 %v1577, %v1576
    %v1615 = vpack.c.b16 %v1579, %v1578
    %v1616 = vpack.c.b16 %v1581, %v1580
    %v1617 = vpack.c.b16 %v1583, %v1582
    %v1618 = vpack.c.b16 %v1585, %v1584
    %v1619 = vpack.c.b16 %v1587, %v1586
    %1652 = vmatprep.subr.bf16.mxu0 0
    %1653 = vmatpush1.bf16.msra.mxu0 %v1588
    %1654 = vmatprep.subr.bf16.mxu0 0
    %1655 = vmatpush1.bf16.msra.mxu0 %v1589
    %1656 = vmatprep.subr.bf16.mxu0 0
    %1657 = vmatpush1.bf16.msra.mxu0 %v1590
    %1658 = vmatprep.subr.bf16.mxu0 0
    %1659 = vmatpush1.bf16.msra.mxu0 %v1591
    %1660 = vmatprep.subr.bf16.mxu0 0
    %1661 = vmatpush1.bf16.msra.mxu0 %v1592
    %1662 = vmatprep.subr.bf16.mxu0 0
    %1663 = vmatpush1.bf16.msra.mxu0 %v1593
    %1664 = vmatprep.subr.bf16.mxu0 0
    %1665 = vmatpush1.bf16.msra.mxu0 %v1594
    %1666 = vmatprep.subr.bf16.mxu0 0
    %1667 = vmatpush1.bf16.msra.mxu0 %v1595
    %1668 = vmatprep.subr.bf16.mxu0 0
    %1669 = vmatpush1.bf16.msra.mxu0 %v1596
    %1670 = vmatprep.subr.bf16.mxu0 0
    %1671 = vmatpush1.bf16.msra.mxu0 %v1597
    %1672 = vmatprep.subr.bf16.mxu0 0
    %1673 = vmatpush1.bf16.msra.mxu0 %v1598
    %1674 = vmatprep.subr.bf16.mxu0 0
    %1675 = vmatpush1.bf16.msra.mxu0 %v1599
    %1676 = vmatprep.subr.bf16.mxu0 0
    %1677 = vmatpush1.bf16.msra.mxu0 %v1600
    %1678 = vmatprep.subr.bf16.mxu0 0
    %1679 = vmatpush1.bf16.msra.mxu0 %v1601
    %1680 = vmatprep.subr.bf16.mxu0 0
    %1681 = vmatpush1.bf16.msra.mxu0 %v1602
    %1682 = vmatprep.subr.bf16.mxu0 0
    %1683 = vmatpush1.bf16.msra.mxu0 %v1603
    %1684 = vmatprep.mubr.bf16.mxu0 %v773
    %1685 = vmatmul.mubr.bf16.gmra.mrb[0].mxu0 %v730
    %v1686 = vpop.f32.mrb[0].mxu0
    %v1687 = vadd.f32 %v1458, %v1686
    %v1688 = vpop.f32.mrb[0].mxu0
    %v1689 = vpop.f32.mrb[0].mxu0
    %v1690 = vpop.f32.mrb[0].mxu0
    %1691 = vdwg.mxu0
    %1692 = vmatprep.subr.bf16.mxu0 0
    %1693 = vmatpush1.bf16.msra.mxu0 %v1604
    %1694 = vmatprep.subr.bf16.mxu0 0
    %1695 = vmatpush1.bf16.msra.mxu0 %v1605
    %1696 = vmatprep.subr.bf16.mxu0 0
    %1697 = vmatpush1.bf16.msra.mxu0 %v1606
    %1698 = vmatprep.subr.bf16.mxu0 0
    %1699 = vmatpush1.bf16.msra.mxu0 %v1607
    %1700 = vmatprep.subr.bf16.mxu0 0
    %1701 = vmatpush1.bf16.msra.mxu0 %v1608
    %1702 = vmatprep.subr.bf16.mxu0 0
    %1703 = vmatpush1.bf16.msra.mxu0 %v1609
    %1704 = vmatprep.subr.bf16.mxu0 0
    %1705 = vmatpush1.bf16.msra.mxu0 %v1610
    %1706 = vmatprep.subr.bf16.mxu0 0
    %1707 = vmatpush1.bf16.msra.mxu0 %v1611
    %1708 = vmatprep.subr.bf16.mxu0 0
    %1709 = vmatpush1.bf16.msra.mxu0 %v1612
    %1710 = vmatprep.subr.bf16.mxu0 0
    %1711 = vmatpush1.bf16.msra.mxu0 %v1613
    %1712 = vmatprep.subr.bf16.mxu0 0
    %1713 = vmatpush1.bf16.msra.mxu0 %v1614
    %1714 = vmatprep.subr.bf16.mxu0 0
    %1715 = vmatpush1.bf16.msra.mxu0 %v1615
    %1716 = vmatprep.subr.bf16.mxu0 0
    %1717 = vmatpush1.bf16.msra.mxu0 %v1616
    %1718 = vmatprep.subr.bf16.mxu0 0
    %1719 = vmatpush1.bf16.msra.mxu0 %v1617
    %1720 = vmatprep.subr.bf16.mxu0 0
    %1721 = vmatpush1.bf16.msra.mxu0 %v1618
    %1722 = vmatprep.subr.bf16.mxu0 0
    %1723 = vmatpush1.bf16.msra.mxu0 %v1619
    %1724 = vmatprep.mubr.bf16.mxu0 %v955
    %1725 = vmatmul.mubr.bf16.gmra.mrb[0].mxu0 %v905
    %v1726 = vpop.f32.mrb[0].mxu0
    %v1727 = vadd.f32 %v1687, %v1726
    %v1728 = vpop.f32.mrb[0].mxu0
    %v1729 = vpop.f32.mrb[0].mxu0
    %v1730 = vpop.f32.mrb[0].mxu0
    %1731 = vdwg.mxu0
    %v1732 = vmax.f32 %v1727, 0.0
    %v1733 = vadd.f32 %v1732, %v488
    %v1734 = vpack.c.bf16 %v1733, %v1733
    %1735 = vmatprep.subr.bf16.mxu0 0
    %1736 = vmatpush1.bf16.msra.mxu0 %v1588
    %1737 = vmatprep.subr.bf16.mxu0 0
    %1738 = vmatpush1.bf16.msra.mxu0 %v1589
    %1739 = vmatprep.subr.bf16.mxu0 0
    %1740 = vmatpush1.bf16.msra.mxu0 %v1590
    %1741 = vmatprep.subr.bf16.mxu0 0
    %1742 = vmatpush1.bf16.msra.mxu0 %v1591
    %1743 = vmatprep.subr.bf16.mxu0 0
    %1744 = vmatpush1.bf16.msra.mxu0 %v1592
    %1745 = vmatprep.subr.bf16.mxu0 0
    %1746 = vmatpush1.bf16.msra.mxu0 %v1593
    %1747 = vmatprep.subr.bf16.mxu0 0
    %1748 = vmatpush1.bf16.msra.mxu0 %v1594
    %1749 = vmatprep.subr.bf16.mxu0 0
    %1750 = vmatpush1.bf16.msra.mxu0 %v1595
    %1751 = vmatprep.subr.bf16.mxu0 0
    %1752 = vmatpush1.bf16.msra.mxu0 %v1596
    %1753 = vmatprep.subr.bf16.mxu0 0
    %1754 = vmatpush1.bf16.msra.mxu0 %v1597
    %1755 = vmatprep.subr.bf16.mxu0 0
    %1756 = vmatpush1.bf16.msra.mxu0 %v1598
    %1757 = vmatprep.subr.bf16.mxu0 0
    %1758 = vmatpush1.bf16.msra.mxu0 %v1599
    %1759 = vmatprep.subr.bf16.mxu0 0
    %1760 = vmatpush1.bf16.msra.mxu0 %v1600
    %1761 = vmatprep.subr.bf16.mxu0 0
    %1762 = vmatpush1.bf16.msra.mxu0 %v1601
    %1763 = vmatprep.subr.bf16.mxu0 0
    %1764 = vmatpush1.bf16.msra.mxu0 %v1602
    %1765 = vmatprep.subr.bf16.mxu0 0
    %1766 = vmatpush1.bf16.msra.mxu0 %v1603
    %1767 = vmatprep.mubr.bf16.mxu0 %v819
    %1768 = vmatmul.mubr.bf16.gmra.mrb[0].mxu0 %v773
    %v1769 = vpop.f32.mrb[0].mxu0
    %v1770 = vadd.f32 %v1458, %v1769
    %v1771 = vpop.f32.mrb[0].mxu0
    %v1772 = vpop.f32.mrb[0].mxu0
    %v1773 = vpop.f32.mrb[0].mxu0
    %1774 = vdwg.mxu0
    %1775 = vmatprep.subr.bf16.mxu0 0
    %1776 = vmatpush1.bf16.msra.mxu0 %v1604
    %1777 = vmatprep.subr.bf16.mxu0 0
    %1778 = vmatpush1.bf16.msra.mxu0 %v1605
    %1779 = vmatprep.subr.bf16.mxu0 0
    %1780 = vmatpush1.bf16.msra.mxu0 %v1606
    %1781 = vmatprep.subr.bf16.mxu0 0
    %1782 = vmatpush1.bf16.msra.mxu0 %v1607
    %1783 = vmatprep.subr.bf16.mxu0 0
    %1784 = vmatpush1.bf16.msra.mxu0 %v1608
    %1785 = vmatprep.subr.bf16.mxu0 0
    %1786 = vmatpush1.bf16.msra.mxu0 %v1609
    %1787 = vmatprep.subr.bf16.mxu0 0
    %1788 = vmatpush1.bf16.msra.mxu0 %v1610
    %1789 = vmatprep.subr.bf16.mxu0 0
    %1790 = vmatpush1.bf16.msra.mxu0 %v1611
    %1791 = vmatprep.subr.bf16.mxu0 0
    %1792 = vmatpush1.bf16.msra.mxu0 %v1612
    %1793 = vmatprep.subr.bf16.mxu0 0
    %1794 = vmatpush1.bf16.msra.mxu0 %v1613
    %1795 = vmatprep.subr.bf16.mxu0 0
    %1796 = vmatpush1.bf16.msra.mxu0 %v1614
    %1797 = vmatprep.subr.bf16.mxu0 0
    %1798 = vmatpush1.bf16.msra.mxu0 %v1615
    %1799 = vmatprep.subr.bf16.mxu0 0
    %1800 = vmatpush1.bf16.msra.mxu0 %v1616
    %1801 = vmatprep.subr.bf16.mxu0 0
    %1802 = vmatpush1.bf16.msra.mxu0 %v1617
    %1803 = vmatprep.subr.bf16.mxu0 0
    %1804 = vmatpush1.bf16.msra.mxu0 %v1618
    %1805 = vmatprep.subr.bf16.mxu0 0
    %1806 = vmatpush1.bf16.msra.mxu0 %v1619
    %1807 = vmatprep.mubr.bf16.mxu0 %v997
    %1808 = vmatmul.mubr.bf16.gmra.mrb[0].mxu0 %v955
    %v1809 = vpop.f32.mrb[0].mxu0
    %v1810 = vadd.f32 %v1770, %v1809
    %v1811 = vpop.f32.mrb[0].mxu0
    %v1812 = vpop.f32.mrb[0].mxu0
    %v1813 = vpop.f32.mrb[0].mxu0
    %1814 = vdwg.mxu0
    %v1815 = vmax.f32 %v1810, 0.0
    %1817 = vrot.lane.b32.xlu0 %v488, 64
    %v1818 = vpop.permute.xlu0 %1817
    %v1820 = vadd.f32 %v1815, %v1818
    %v1821 = vpack.c.bf16 %v1820, %v1820
    %1822 = vmatprep.subr.bf16.mxu0 0
    %1823 = vmatpush1.bf16.msra.mxu0 %v1588
    %1824 = vmatprep.subr.bf16.mxu0 0
    %1825 = vmatpush1.bf16.msra.mxu0 %v1589
    %1826 = vmatprep.subr.bf16.mxu0 0
    %1827 = vmatpush1.bf16.msra.mxu0 %v1590
    %1828 = vmatprep.subr.bf16.mxu0 0
    %1829 = vmatpush1.bf16.msra.mxu0 %v1591
    %1830 = vmatprep.subr.bf16.mxu0 0
    %1831 = vmatpush1.bf16.msra.mxu0 %v1592
    %1832 = vmatprep.subr.bf16.mxu0 0
    %1833 = vmatpush1.bf16.msra.mxu0 %v1593
    %1834 = vmatprep.subr.bf16.mxu0 0
    %1835 = vmatpush1.bf16.msra.mxu0 %v1594
    %1836 = vmatprep.subr.bf16.mxu0 0
    %1837 = vmatpush1.bf16.msra.mxu0 %v1595
    %1838 = vmatprep.subr.bf16.mxu0 0
    %1839 = vmatpush1.bf16.msra.mxu0 %v1596
    %1840 = vmatprep.subr.bf16.mxu0 0
    %1841 = vmatpush1.bf16.msra.mxu0 %v1597
    %1842 = vmatprep.subr.bf16.mxu0 0
    %1843 = vmatpush1.bf16.msra.mxu0 %v1598
    %1844 = vmatprep.subr.bf16.mxu0 0
    %1845 = vmatpush1.bf16.msra.mxu0 %v1599
    %1846 = vmatprep.subr.bf16.mxu0 0
    %1847 = vmatpush1.bf16.msra.mxu0 %v1600
    %1848 = vmatprep.subr.bf16.mxu0 0
    %1849 = vmatpush1.bf16.msra.mxu0 %v1601
    %1850 = vmatprep.subr.bf16.mxu0 0
    %1851 = vmatpush1.bf16.msra.mxu0 %v1602
    %1852 = vmatprep.subr.bf16.mxu0 0
    %1853 = vmatpush1.bf16.msra.mxu0 %v1603
    %1854 = vmatprep.mubr.bf16.mxu0 %v863
    %1855 = vmatmul.mubr.bf16.gmra.mrb[0].mxu0 %v819
    %v1856 = vpop.f32.mrb[0].mxu0
    %v1857 = vadd.f32 %v1458, %v1856
    %v1858 = vpop.f32.mrb[0].mxu0
    %v1859 = vpop.f32.mrb[0].mxu0
    %v1860 = vpop.f32.mrb[0].mxu0
    %1861 = vdwg.mxu0
    %1862 = vmatprep.subr.bf16.mxu0 0
    %1863 = vmatpush1.bf16.msra.mxu0 %v1604
    %1864 = vmatprep.subr.bf16.mxu0 0
    %1865 = vmatpush1.bf16.msra.mxu0 %v1605
    %1866 = vmatprep.subr.bf16.mxu0 0
    %1867 = vmatpush1.bf16.msra.mxu0 %v1606
    %1868 = vmatprep.subr.bf16.mxu0 0
    %1869 = vmatpush1.bf16.msra.mxu0 %v1607
    %1870 = vmatprep.subr.bf16.mxu0 0
    %1871 = vmatpush1.bf16.msra.mxu0 %v1608
    %1872 = vmatprep.subr.bf16.mxu0 0
    %1873 = vmatpush1.bf16.msra.mxu0 %v1609
    %1874 = vmatprep.subr.bf16.mxu0 0
    %1875 = vmatpush1.bf16.msra.mxu0 %v1610
    %1876 = vmatprep.subr.bf16.mxu0 0
    %1877 = vmatpush1.bf16.msra.mxu0 %v1611
    %1878 = vmatprep.subr.bf16.mxu0 0
    %1879 = vmatpush1.bf16.msra.mxu0 %v1612
    %1880 = vmatprep.subr.bf16.mxu0 0
    %1881 = vmatpush1.bf16.msra.mxu0 %v1613
    %1882 = vmatprep.subr.bf16.mxu0 0
    %1883 = vmatpush1.bf16.msra.mxu0 %v1614
    %1884 = vmatprep.subr.bf16.mxu0 0
    %1885 = vmatpush1.bf16.msra.mxu0 %v1615
    %1886 = vmatprep.subr.bf16.mxu0 0
    %1887 = vmatpush1.bf16.msra.mxu0 %v1616
    %1888 = vmatprep.subr.bf16.mxu0 0
    %1889 = vmatpush1.bf16.msra.mxu0 %v1617
    %1890 = vmatprep.subr.bf16.mxu0 0
    %1891 = vmatpush1.bf16.msra.mxu0 %v1618
    %1892 = vmatprep.subr.bf16.mxu0 0
    %1893 = vmatpush1.bf16.msra.mxu0 %v1619
    %1894 = vmatprep.mubr.bf16.mxu0 %v1044
    %1895 = vmatmul.mubr.bf16.gmra.mrb[0].mxu0 %v997
    %v1896 = vpop.f32.mrb[0].mxu0
    %v1897 = vadd.f32 %v1857, %v1896
    %v1898 = vpop.f32.mrb[0].mxu0
    %v1899 = vpop.f32.mrb[0].mxu0
    %v1900 = vpop.f32.mrb[0].mxu0
    %1901 = vdwg.mxu0
    %v1902 = vmax.f32 %v1897, 0.0
    %v1903 = vadd.f32 %v1902, %v489
    %v1904 = vpack.c.bf16 %v1903, %v1903
    %1905 = vmatprep.subr.bf16.mxu0 0
    %1906 = vmatpush1.bf16.msra.mxu0 %v1588
    %1907 = vmatprep.subr.bf16.mxu0 0
    %1908 = vmatpush1.bf16.msra.mxu0 %v1589
    %1909 = vmatprep.subr.bf16.mxu0 0
    %1910 = vmatpush1.bf16.msra.mxu0 %v1590
    %1911 = vmatprep.subr.bf16.mxu0 0
    %1912 = vmatpush1.bf16.msra.mxu0 %v1591
    %1913 = vmatprep.subr.bf16.mxu0 0
    %1914 = vmatpush1.bf16.msra.mxu0 %v1592
    %1915 = vmatprep.subr.bf16.mxu0 0
    %1916 = vmatpush1.bf16.msra.mxu0 %v1593
    %1917 = vmatprep.subr.bf16.mxu0 0
    %1918 = vmatpush1.bf16.msra.mxu0 %v1594
    %1919 = vmatprep.subr.bf16.mxu0 0
    %1920 = vmatpush1.bf16.msra.mxu0 %v1595
    %1921 = vmatprep.subr.bf16.mxu0 0
    %1922 = vmatpush1.bf16.msra.mxu0 %v1596
    %1923 = vmatprep.subr.bf16.mxu0 0
    %1924 = vmatpush1.bf16.msra.mxu0 %v1597
    %1925 = vmatprep.subr.bf16.mxu0 0
    %1926 = vmatpush1.bf16.msra.mxu0 %v1598
    %1927 = vmatprep.subr.bf16.mxu0 0
    %1928 = vmatpush1.bf16.msra.mxu0 %v1599
    %1929 = vmatprep.subr.bf16.mxu0 0
    %1930 = vmatpush1.bf16.msra.mxu0 %v1600
    %1931 = vmatprep.subr.bf16.mxu0 0
    %1932 = vmatpush1.bf16.msra.mxu0 %v1601
    %1933 = vmatprep.subr.bf16.mxu0 0
    %1934 = vmatpush1.bf16.msra.mxu0 %v1602
    %1935 = vmatprep.subr.bf16.mxu0 0
    %1936 = vmatpush1.bf16.msra.mxu0 %v1603
    %1937 = vmatprep.mubr.bf16.mxu0 %v955
    %1938 = vmatmul.mubr.bf16.gmra.mrb[0].mxu0 %v905
    %v1939 = vpop.f32.mrb[0].mxu0
    %v1940 = vadd.f32 %v1458, %v1939
    %v1941 = vpop.f32.mrb[0].mxu0
    %v1942 = vpop.f32.mrb[0].mxu0
    %v1943 = vpop.f32.mrb[0].mxu0
    %1944 = vdwg.mxu0
    %1945 = vmatprep.subr.bf16.mxu0 0
    %1946 = vmatpush1.bf16.msra.mxu0 %v1604
    %1947 = vmatprep.subr.bf16.mxu0 0
    %1948 = vmatpush1.bf16.msra.mxu0 %v1605
    %1949 = vmatprep.subr.bf16.mxu0 0
    %1950 = vmatpush1.bf16.msra.mxu0 %v1606
    %1951 = vmatprep.subr.bf16.mxu0 0
    %1952 = vmatpush1.bf16.msra.mxu0 %v1607
    %1953 = vmatprep.subr.bf16.mxu0 0
    %1954 = vmatpush1.bf16.msra.mxu0 %v1608
    %1955 = vmatprep.subr.bf16.mxu0 0
    %1956 = vmatpush1.bf16.msra.mxu0 %v1609
    %1957 = vmatprep.subr.bf16.mxu0 0
    %1958 = vmatpush1.bf16.msra.mxu0 %v1610
    %1959 = vmatprep.subr.bf16.mxu0 0
    %1960 = vmatpush1.bf16.msra.mxu0 %v1611
    %1961 = vmatprep.subr.bf16.mxu0 0
    %1962 = vmatpush1.bf16.msra.mxu0 %v1612
    %1963 = vmatprep.subr.bf16.mxu0 0
    %1964 = vmatpush1.bf16.msra.mxu0 %v1613
    %1965 = vmatprep.subr.bf16.mxu0 0
    %1966 = vmatpush1.bf16.msra.mxu0 %v1614
    %1967 = vmatprep.subr.bf16.mxu0 0
    %1968 = vmatpush1.bf16.msra.mxu0 %v1615
    %1969 = vmatprep.subr.bf16.mxu0 0
    %1970 = vmatpush1.bf16.msra.mxu0 %v1616
    %1971 = vmatprep.subr.bf16.mxu0 0
    %1972 = vmatpush1.bf16.msra.mxu0 %v1617
    %1973 = vmatprep.subr.bf16.mxu0 0
    %1974 = vmatpush1.bf16.msra.mxu0 %v1618
    %1975 = vmatprep.subr.bf16.mxu0 0
    %1976 = vmatpush1.bf16.msra.mxu0 %v1619
    %1977 = vmatprep.mubr.bf16.mxu0 %v1132
    %1978 = vmatmul.mubr.bf16.gmra.mrb[0].mxu0 %v1090
    %v1979 = vpop.f32.mrb[0].mxu0
    %v1980 = vadd.f32 %v1940, %v1979
    %v1981 = vpop.f32.mrb[0].mxu0
    %v1982 = vpop.f32.mrb[0].mxu0
    %v1983 = vpop.f32.mrb[0].mxu0
    %1984 = vdwg.mxu0
    %v1985 = vmax.f32 %v1980, 0.0
    %1987 = vrot.lane.b32.xlu0 %v489, 64
    %v1988 = vpop.permute.xlu0 %1987
    %v1990 = vadd.f32 %v1985, %v1988
    %v1991 = vpack.c.bf16 %v1990, %v1990
    %1992 = vmatprep.subr.bf16.mxu0 0
    %1993 = vmatpush1.bf16.msra.mxu0 %v1588
    %1994 = vmatprep.subr.bf16.mxu0 0
    %1995 = vmatpush1.bf16.msra.mxu0 %v1589
    %1996 = vmatprep.subr.bf16.mxu0 0
    %1997 = vmatpush1.bf16.msra.mxu0 %v1590
    %1998 = vmatprep.subr.bf16.mxu0 0
    %1999 = vmatpush1.bf16.msra.mxu0 %v1591
    %2000 = vmatprep.subr.bf16.mxu0 0
    %2001 = vmatpush1.bf16.msra.mxu0 %v1592
    %2002 = vmatprep.subr.bf16.mxu0 0
    %2003 = vmatpush1.bf16.msra.mxu0 %v1593
    %2004 = vmatprep.subr.bf16.mxu0 0
    %2005 = vmatpush1.bf16.msra.mxu0 %v1594
    %2006 = vmatprep.subr.bf16.mxu0 0
    %2007 = vmatpush1.bf16.msra.mxu0 %v1595
    %2008 = vmatprep.subr.bf16.mxu0 0
    %2009 = vmatpush1.bf16.msra.mxu0 %v1596
    %2010 = vmatprep.subr.bf16.mxu0 0
    %2011 = vmatpush1.bf16.msra.mxu0 %v1597
    %2012 = vmatprep.subr.bf16.mxu0 0
    %2013 = vmatpush1.bf16.msra.mxu0 %v1598
    %2014 = vmatprep.subr.bf16.mxu0 0
    %2015 = vmatpush1.bf16.msra.mxu0 %v1599
    %2016 = vmatprep.subr.bf16.mxu0 0
    %2017 = vmatpush1.bf16.msra.mxu0 %v1600
    %2018 = vmatprep.subr.bf16.mxu0 0
    %2019 = vmatpush1.bf16.msra.mxu0 %v1601
    %2020 = vmatprep.subr.bf16.mxu0 0
    %2021 = vmatpush1.bf16.msra.mxu0 %v1602
    %2022 = vmatprep.subr.bf16.mxu0 0
    %2023 = vmatpush1.bf16.msra.mxu0 %v1603
    %2024 = vmatprep.mubr.bf16.mxu0 %v997
    %2025 = vmatmul.mubr.bf16.gmra.mrb[0].mxu0 %v955
    %v2026 = vpop.f32.mrb[0].mxu0
    %v2027 = vadd.f32 %v1458, %v2026
    %v2028 = vpop.f32.mrb[0].mxu0
    %v2029 = vpop.f32.mrb[0].mxu0
    %v2030 = vpop.f32.mrb[0].mxu0
    %2031 = vdwg.mxu0
    %2032 = vmatprep.subr.bf16.mxu0 0
    %2033 = vmatpush1.bf16.msra.mxu0 %v1604
    %2034 = vmatprep.subr.bf16.mxu0 0
    %2035 = vmatpush1.bf16.msra.mxu0 %v1605
    %2036 = vmatprep.subr.bf16.mxu0 0
    %2037 = vmatpush1.bf16.msra.mxu0 %v1606
    %2038 = vmatprep.subr.bf16.mxu0 0
    %2039 = vmatpush1.bf16.msra.mxu0 %v1607
    %2040 = vmatprep.subr.bf16.mxu0 0
    %2041 = vmatpush1.bf16.msra.mxu0 %v1608
    %2042 = vmatprep.subr.bf16.mxu0 0
    %2043 = vmatpush1.bf16.msra.mxu0 %v1609
    %2044 = vmatprep.subr.bf16.mxu0 0
    %2045 = vmatpush1.bf16.msra.mxu0 %v1610
    %2046 = vmatprep.subr.bf16.mxu0 0
    %2047 = vmatpush1.bf16.msra.mxu0 %v1611
    %2048 = vmatprep.subr.bf16.mxu0 0
    %2049 = vmatpush1.bf16.msra.mxu0 %v1612
    %2050 = vmatprep.subr.bf16.mxu0 0
    %2051 = vmatpush1.bf16.msra.mxu0 %v1613
    %2052 = vmatprep.subr.bf16.mxu0 0
    %2053 = vmatpush1.bf16.msra.mxu0 %v1614
    %2054 = vmatprep.subr.bf16.mxu0 0
    %2055 = vmatpush1.bf16.msra.mxu0 %v1615
    %2056 = vmatprep.subr.bf16.mxu0 0
    %2057 = vmatpush1.bf16.msra.mxu0 %v1616
    %2058 = vmatprep.subr.bf16.mxu0 0
    %2059 = vmatpush1.bf16.msra.mxu0 %v1617
    %2060 = vmatprep.subr.bf16.mxu0 0
    %2061 = vmatpush1.bf16.msra.mxu0 %v1618
    %2062 = vmatprep.subr.bf16.mxu0 0
    %2063 = vmatpush1.bf16.msra.mxu0 %v1619
    %2064 = vmatprep.mubr.bf16.mxu0 %v1178
    %2065 = vmatmul.mubr.bf16.gmra.mrb[0].mxu0 %v1132
    %v2066 = vpop.f32.mrb[0].mxu0
    %v2067 = vadd.f32 %v2027, %v2066
    %v2068 = vpop.f32.mrb[0].mxu0
    %v2069 = vpop.f32.mrb[0].mxu0
    %v2070 = vpop.f32.mrb[0].mxu0
    %2071 = vdwg.mxu0
    %v2072 = vmax.f32 %v2067, 0.0
    %v2073 = vadd.f32 %v2072, %v490
    %v2074 = vpack.c.bf16 %v2073, %v2073
    %2075 = vmatprep.subr.bf16.mxu0 0
    %2076 = vmatpush1.bf16.msra.mxu0 %v1588
    %2077 = vmatprep.subr.bf16.mxu0 0
    %2078 = vmatpush1.bf16.msra.mxu0 %v1589
    %2079 = vmatprep.subr.bf16.mxu0 0
    %2080 = vmatpush1.bf16.msra.mxu0 %v1590
    %2081 = vmatprep.subr.bf16.mxu0 0
    %2082 = vmatpush1.bf16.msra.mxu0 %v1591
    %2083 = vmatprep.subr.bf16.mxu0 0
    %2084 = vmatpush1.bf16.msra.mxu0 %v1592
    %2085 = vmatprep.subr.bf16.mxu0 0
    %2086 = vmatpush1.bf16.msra.mxu0 %v1593
    %2087 = vmatprep.subr.bf16.mxu0 0
    %2088 = vmatpush1.bf16.msra.mxu0 %v1594
    %2089 = vmatprep.subr.bf16.mxu0 0
    %2090 = vmatpush1.bf16.msra.mxu0 %v1595
    %2091 = vmatprep.subr.bf16.mxu0 0
    %2092 = vmatpush1.bf16.msra.mxu0 %v1596
    %2093 = vmatprep.subr.bf16.mxu0 0
    %2094 = vmatpush1.bf16.msra.mxu0 %v1597
    %2095 = vmatprep.subr.bf16.mxu0 0
    %2096 = vmatpush1.bf16.msra.mxu0 %v1598
    %2097 = vmatprep.subr.bf16.mxu0 0
    %2098 = vmatpush1.bf16.msra.mxu0 %v1599
    %2099 = vmatprep.subr.bf16.mxu0 0
    %2100 = vmatpush1.bf16.msra.mxu0 %v1600
    %2101 = vmatprep.subr.bf16.mxu0 0
    %2102 = vmatpush1.bf16.msra.mxu0 %v1601
    %2103 = vmatprep.subr.bf16.mxu0 0
    %2104 = vmatpush1.bf16.msra.mxu0 %v1602
    %2105 = vmatprep.subr.bf16.mxu0 0
    %2106 = vmatpush1.bf16.msra.mxu0 %v1603
    %2107 = vmatprep.mubr.bf16.mxu0 %v1044
    %2108 = vmatmul.mubr.bf16.gmra.mrb[0].mxu0 %v997
    %v2109 = vpop.f32.mrb[0].mxu0
    %v2110 = vadd.f32 %v1458, %v2109
    %v2111 = vpop.f32.mrb[0].mxu0
    %v2112 = vpop.f32.mrb[0].mxu0
    %v2113 = vpop.f32.mrb[0].mxu0
    %2114 = vdwg.mxu0
    %2115 = vmatprep.subr.bf16.mxu0 0
    %2116 = vmatpush1.bf16.msra.mxu0 %v1604
    %2117 = vmatprep.subr.bf16.mxu0 0
    %2118 = vmatpush1.bf16.msra.mxu0 %v1605
    %2119 = vmatprep.subr.bf16.mxu0 0
    %2120 = vmatpush1.bf16.msra.mxu0 %v1606
    %2121 = vmatprep.subr.bf16.mxu0 0
    %2122 = vmatpush1.bf16.msra.mxu0 %v1607
    %2123 = vmatprep.subr.bf16.mxu0 0
    %2124 = vmatpush1.bf16.msra.mxu0 %v1608
    %2125 = vmatprep.subr.bf16.mxu0 0
    %2126 = vmatpush1.bf16.msra.mxu0 %v1609
    %2127 = vmatprep.subr.bf16.mxu0 0
    %2128 = vmatpush1.bf16.msra.mxu0 %v1610
    %2129 = vmatprep.subr.bf16.mxu0 0
    %2130 = vmatpush1.bf16.msra.mxu0 %v1611
    %2131 = vmatprep.subr.bf16.mxu0 0
    %2132 = vmatpush1.bf16.msra.mxu0 %v1612
    %2133 = vmatprep.subr.bf16.mxu0 0
    %2134 = vmatpush1.bf16.msra.mxu0 %v1613
    %2135 = vmatprep.subr.bf16.mxu0 0
    %2136 = vmatpush1.bf16.msra.mxu0 %v1614
    %2137 = vmatprep.subr.bf16.mxu0 0
    %2138 = vmatpush1.bf16.msra.mxu0 %v1615
    %2139 = vmatprep.subr.bf16.mxu0 0
    %2140 = vmatpush1.bf16.msra.mxu0 %v1616
    %2141 = vmatprep.subr.bf16.mxu0 0
    %2142 = vmatpush1.bf16.msra.mxu0 %v1617
    %2143 = vmatprep.subr.bf16.mxu0 0
    %2144 = vmatpush1.bf16.msra.mxu0 %v1618
    %2145 = vmatprep.subr.bf16.mxu0 0
    %2146 = vmatpush1.bf16.msra.mxu0 %v1619
    %2147 = vmatprep.mubr.bf16.mxu0 %v1220
    %2148 = vmatmul.mubr.bf16.gmra.mrb[0].mxu0 %v1178
    %v2149 = vpop.f32.mrb[0].mxu0
    %v2150 = vadd.f32 %v2110, %v2149
    %v2151 = vpop.f32.mrb[0].mxu0
    %v2152 = vpop.f32.mrb[0].mxu0
    %v2153 = vpop.f32.mrb[0].mxu0
    %2154 = vdwg.mxu0
    %v2155 = vmax.f32 %v2150, 0.0
    %2157 = vrot.lane.b32.xlu0 %v490, 64
    %v2158 = vpop.permute.xlu0 %2157
    %v2160 = vadd.f32 %v2155, %v2158
    %v2161 = vpack.c.bf16 %v2160, %v2160
    %2162 = vmatprep.subr.bf16.mxu0 0
    %2163 = vmatpush1.bf16.msra.mxu0 %v1588
    %2164 = vmatprep.subr.bf16.mxu0 0
    %2165 = vmatpush1.bf16.msra.mxu0 %v1589
    %2166 = vmatprep.subr.bf16.mxu0 0
    %2167 = vmatpush1.bf16.msra.mxu0 %v1590
    %2168 = vmatprep.subr.bf16.mxu0 0
    %2169 = vmatpush1.bf16.msra.mxu0 %v1591
    %2170 = vmatprep.subr.bf16.mxu0 0
    %2171 = vmatpush1.bf16.msra.mxu0 %v1592
    %2172 = vmatprep.subr.bf16.mxu0 0
    %2173 = vmatpush1.bf16.msra.mxu0 %v1593
    %2174 = vmatprep.subr.bf16.mxu0 0
    %2175 = vmatpush1.bf16.msra.mxu0 %v1594
    %2176 = vmatprep.subr.bf16.mxu0 0
    %2177 = vmatpush1.bf16.msra.mxu0 %v1595
    %2178 = vmatprep.subr.bf16.mxu0 0
    %2179 = vmatpush1.bf16.msra.mxu0 %v1596
    %2180 = vmatprep.subr.bf16.mxu0 0
    %2181 = vmatpush1.bf16.msra.mxu0 %v1597
    %2182 = vmatprep.subr.bf16.mxu0 0
    %2183 = vmatpush1.bf16.msra.mxu0 %v1598
    %2184 = vmatprep.subr.bf16.mxu0 0
    %2185 = vmatpush1.bf16.msra.mxu0 %v1599
    %2186 = vmatprep.subr.bf16.mxu0 0
    %2187 = vmatpush1.bf16.msra.mxu0 %v1600
    %2188 = vmatprep.subr.bf16.mxu0 0
    %2189 = vmatpush1.bf16.msra.mxu0 %v1601
    %2190 = vmatprep.subr.bf16.mxu0 0
    %2191 = vmatpush1.bf16.msra.mxu0 %v1602
    %2192 = vmatprep.subr.bf16.mxu0 0
    %2193 = vmatpush1.bf16.msra.mxu0 %v1603
    %2194 = vmatprep.mubr.bf16.mxu0 %v1132
    %2195 = vmatmul.mubr.bf16.gmra.mrb[0].mxu0 %v1090
    %v2196 = vpop.f32.mrb[0].mxu0
    %v2197 = vadd.f32 %v1458, %v2196
    %v2198 = vpop.f32.mrb[0].mxu0
    %v2199 = vpop.f32.mrb[0].mxu0
    %v2200 = vpop.f32.mrb[0].mxu0
    %2201 = vdwg.mxu0
    %2202 = vmatprep.subr.bf16.mxu0 0
    %2203 = vmatpush1.bf16.msra.mxu0 %v1604
    %2204 = vmatprep.subr.bf16.mxu0 0
    %2205 = vmatpush1.bf16.msra.mxu0 %v1605
    %2206 = vmatprep.subr.bf16.mxu0 0
    %2207 = vmatpush1.bf16.msra.mxu0 %v1606
    %2208 = vmatprep.subr.bf16.mxu0 0
    %2209 = vmatpush1.bf16.msra.mxu0 %v1607
    %2210 = vmatprep.subr.bf16.mxu0 0
    %2211 = vmatpush1.bf16.msra.mxu0 %v1608
    %2212 = vmatprep.subr.bf16.mxu0 0
    %2213 = vmatpush1.bf16.msra.mxu0 %v1609
    %2214 = vmatprep.subr.bf16.mxu0 0
    %2215 = vmatpush1.bf16.msra.mxu0 %v1610
    %2216 = vmatprep.subr.bf16.mxu0 0
    %2217 = vmatpush1.bf16.msra.mxu0 %v1611
    %2218 = vmatprep.subr.bf16.mxu0 0
    %2219 = vmatpush1.bf16.msra.mxu0 %v1612
    %2220 = vmatprep.subr.bf16.mxu0 0
    %2221 = vmatpush1.bf16.msra.mxu0 %v1613
    %2222 = vmatprep.subr.bf16.mxu0 0
    %2223 = vmatpush1.bf16.msra.mxu0 %v1614
    %2224 = vmatprep.subr.bf16.mxu0 0
    %2225 = vmatpush1.bf16.msra.mxu0 %v1615
    %2226 = vmatprep.subr.bf16.mxu0 0
    %2227 = vmatpush1.bf16.msra.mxu0 %v1616
    %2228 = vmatprep.subr.bf16.mxu0 0
    %2229 = vmatpush1.bf16.msra.mxu0 %v1617
    %2230 = vmatprep.subr.bf16.mxu0 0
    %2231 = vmatpush1.bf16.msra.mxu0 %v1618
    %2232 = vmatprep.subr.bf16.mxu0 0
    %2233 = vmatpush1.bf16.msra.mxu0 %v1619
    %2234 = vmatprep.mubr.bf16.mxu0 %v1304
    %2235 = vmatmul.mubr.bf16.gmra.mrb[0].mxu0 %v1262
    %v2236 = vpop.f32.mrb[0].mxu0
    %v2237 = vadd.f32 %v2197, %v2236
    %v2238 = vpop.f32.mrb[0].mxu0
    %v2239 = vpop.f32.mrb[0].mxu0
    %v2240 = vpop.f32.mrb[0].mxu0
    %2241 = vdwg.mxu0
    %v2242 = vmax.f32 %v2237, 0.0
    %v2243 = vadd.f32 %v2242, %v491
    %v2244 = vpack.c.bf16 %v2243, %v2243
    %2245 = vmatprep.subr.bf16.mxu0 0
    %2246 = vmatpush1.bf16.msra.mxu0 %v1588
    %2247 = vmatprep.subr.bf16.mxu0 0
    %2248 = vmatpush1.bf16.msra.mxu0 %v1589
    %2249 = vmatprep.subr.bf16.mxu0 0
    %2250 = vmatpush1.bf16.msra.mxu0 %v1590
    %2251 = vmatprep.subr.bf16.mxu0 0
    %2252 = vmatpush1.bf16.msra.mxu0 %v1591
    %2253 = vmatprep.subr.bf16.mxu0 0
    %2254 = vmatpush1.bf16.msra.mxu0 %v1592
    %2255 = vmatprep.subr.bf16.mxu0 0
    %2256 = vmatpush1.bf16.msra.mxu0 %v1593
    %2257 = vmatprep.subr.bf16.mxu0 0
    %2258 = vmatpush1.bf16.msra.mxu0 %v1594
    %2259 = vmatprep.subr.bf16.mxu0 0
    %2260 = vmatpush1.bf16.msra.mxu0 %v1595
    %2261 = vmatprep.subr.bf16.mxu0 0
    %2262 = vmatpush1.bf16.msra.mxu0 %v1596
    %2263 = vmatprep.subr.bf16.mxu0 0
    %2264 = vmatpush1.bf16.msra.mxu0 %v1597
    %2265 = vmatprep.subr.bf16.mxu0 0
    %2266 = vmatpush1.bf16.msra.mxu0 %v1598
    %2267 = vmatprep.subr.bf16.mxu0 0
    %2268 = vmatpush1.bf16.msra.mxu0 %v1599
    %2269 = vmatprep.subr.bf16.mxu0 0
    %2270 = vmatpush1.bf16.msra.mxu0 %v1600
    %2271 = vmatprep.subr.bf16.mxu0 0
    %2272 = vmatpush1.bf16.msra.mxu0 %v1601
    %2273 = vmatprep.subr.bf16.mxu0 0
    %2274 = vmatpush1.bf16.msra.mxu0 %v1602
    %2275 = vmatprep.subr.bf16.mxu0 0
    %2276 = vmatpush1.bf16.msra.mxu0 %v1603
    %2277 = vmatprep.mubr.bf16.mxu0 %v1178
    %2278 = vmatmul.mubr.bf16.gmra.mrb[0].mxu0 %v1132
    %v2279 = vpop.f32.mrb[0].mxu0
    %v2280 = vadd.f32 %v1458, %v2279
    %v2281 = vpop.f32.mrb[0].mxu0
    %v2282 = vpop.f32.mrb[0].mxu0
    %v2283 = vpop.f32.mrb[0].mxu0
    %2284 = vdwg.mxu0
    %2285 = vmatprep.subr.bf16.mxu0 0
    %2286 = vmatpush1.bf16.msra.mxu0 %v1604
    %2287 = vmatprep.subr.bf16.mxu0 0
    %2288 = vmatpush1.bf16.msra.mxu0 %v1605
    %2289 = vmatprep.subr.bf16.mxu0 0
    %2290 = vmatpush1.bf16.msra.mxu0 %v1606
    %2291 = vmatprep.subr.bf16.mxu0 0
    %2292 = vmatpush1.bf16.msra.mxu0 %v1607
    %2293 = vmatprep.subr.bf16.mxu0 0
    %2294 = vmatpush1.bf16.msra.mxu0 %v1608
    %2295 = vmatprep.subr.bf16.mxu0 0
    %2296 = vmatpush1.bf16.msra.mxu0 %v1609
    %2297 = vmatprep.subr.bf16.mxu0 0
    %2298 = vmatpush1.bf16.msra.mxu0 %v1610
    %2299 = vmatprep.subr.bf16.mxu0 0
    %2300 = vmatpush1.bf16.msra.mxu0 %v1611
    %2301 = vmatprep.subr.bf16.mxu0 0
    %2302 = vmatpush1.bf16.msra.mxu0 %v1612
    %2303 = vmatprep.subr.bf16.mxu0 0
    %2304 = vmatpush1.bf16.msra.mxu0 %v1613
    %2305 = vmatprep.subr.bf16.mxu0 0
    %2306 = vmatpush1.bf16.msra.mxu0 %v1614
    %2307 = vmatprep.subr.bf16.mxu0 0
    %2308 = vmatpush1.bf16.msra.mxu0 %v1615
    %2309 = vmatprep.subr.bf16.mxu0 0
    %2310 = vmatpush1.bf16.msra.mxu0 %v1616
    %2311 = vmatprep.subr.bf16.mxu0 0
    %2312 = vmatpush1.bf16.msra.mxu0 %v1617
    %2313 = vmatprep.subr.bf16.mxu0 0
    %2314 = vmatpush1.bf16.msra.mxu0 %v1618
    %2315 = vmatprep.subr.bf16.mxu0 0
    %2316 = vmatpush1.bf16.msra.mxu0 %v1619
    %2317 = vmatprep.mubr.bf16.mxu0 %v1346
    %2318 = vmatmul.mubr.bf16.gmra.mrb[0].mxu0 %v1304
    %v2319 = vpop.f32.mrb[0].mxu0
    %v2320 = vadd.f32 %v2280, %v2319
    %v2321 = vpop.f32.mrb[0].mxu0
    %v2322 = vpop.f32.mrb[0].mxu0
    %v2323 = vpop.f32.mrb[0].mxu0
    %2324 = vdwg.mxu0
    %v2325 = vmax.f32 %v2320, 0.0
    %2327 = vrot.lane.b32.xlu0 %v491, 64
    %v2328 = vpop.permute.xlu0 %2327
    %v2330 = vadd.f32 %v2325, %v2328
    %v2331 = vpack.c.bf16 %v2330, %v2330
    %2332 = vmatprep.subr.bf16.mxu0 0
    %2333 = vmatpush1.bf16.msra.mxu0 %v1588
    %2334 = vmatprep.subr.bf16.mxu0 0
    %2335 = vmatpush1.bf16.msra.mxu0 %v1589
    %2336 = vmatprep.subr.bf16.mxu0 0
    %2337 = vmatpush1.bf16.msra.mxu0 %v1590
    %2338 = vmatprep.subr.bf16.mxu0 0
    %2339 = vmatpush1.bf16.msra.mxu0 %v1591
    %2340 = vmatprep.subr.bf16.mxu0 0
    %2341 = vmatpush1.bf16.msra.mxu0 %v1592
    %2342 = vmatprep.subr.bf16.mxu0 0
    %2343 = vmatpush1.bf16.msra.mxu0 %v1593
    %2344 = vmatprep.subr.bf16.mxu0 0
    %2345 = vmatpush1.bf16.msra.mxu0 %v1594
    %2346 = vmatprep.subr.bf16.mxu0 0
    %2347 = vmatpush1.bf16.msra.mxu0 %v1595
    %2348 = vmatprep.subr.bf16.mxu0 0
    %2349 = vmatpush1.bf16.msra.mxu0 %v1596
    %2350 = vmatprep.subr.bf16.mxu0 0
    %2351 = vmatpush1.bf16.msra.mxu0 %v1597
    %2352 = vmatprep.subr.bf16.mxu0 0
    %2353 = vmatpush1.bf16.msra.mxu0 %v1598
    %2354 = vmatprep.subr.bf16.mxu0 0
    %2355 = vmatpush1.bf16.msra.mxu0 %v1599
    %2356 = vmatprep.subr.bf16.mxu0 0
    %2357 = vmatpush1.bf16.msra.mxu0 %v1600
    %2358 = vmatprep.subr.bf16.mxu0 0
    %2359 = vmatpush1.bf16.msra.mxu0 %v1601
    %2360 = vmatprep.subr.bf16.mxu0 0
    %2361 = vmatpush1.bf16.msra.mxu0 %v1602
    %2362 = vmatprep.subr.bf16.mxu0 0
    %2363 = vmatpush1.bf16.msra.mxu0 %v1603
    %2364 = vmatprep.mubr.bf16.mxu0 %v1220
    %2365 = vmatmul.mubr.bf16.gmra.mrb[0].mxu0 %v1178
    %v2366 = vpop.f32.mrb[0].mxu0
    %v2367 = vadd.f32 %v1458, %v2366
    %v2368 = vpop.f32.mrb[0].mxu0
    %v2369 = vpop.f32.mrb[0].mxu0
    %v2370 = vpop.f32.mrb[0].mxu0
    %2371 = vdwg.mxu0
    %2372 = vmatprep.subr.bf16.mxu0 0
    %2373 = vmatpush1.bf16.msra.mxu0 %v1604
    %2374 = vmatprep.subr.bf16.mxu0 0
    %2375 = vmatpush1.bf16.msra.mxu0 %v1605
    %2376 = vmatprep.subr.bf16.mxu0 0
    %2377 = vmatpush1.bf16.msra.mxu0 %v1606
    %2378 = vmatprep.subr.bf16.mxu0 0
    %2379 = vmatpush1.bf16.msra.mxu0 %v1607
    %2380 = vmatprep.subr.bf16.mxu0 0
    %2381 = vmatpush1.bf16.msra.mxu0 %v1608
    %2382 = vmatprep.subr.bf16.mxu0 0
    %2383 = vmatpush1.bf16.msra.mxu0 %v1609
    %2384 = vmatprep.subr.bf16.mxu0 0
    %2385 = vmatpush1.bf16.msra.mxu0 %v1610
    %2386 = vmatprep.subr.bf16.mxu0 0
    %2387 = vmatpush1.bf16.msra.mxu0 %v1611
    %2388 = vmatprep.subr.bf16.mxu0 0
    %2389 = vmatpush1.bf16.msra.mxu0 %v1612
    %2390 = vmatprep.subr.bf16.mxu0 0
    %2391 = vmatpush1.bf16.msra.mxu0 %v1613
    %2392 = vmatprep.subr.bf16.mxu0 0
    %2393 = vmatpush1.bf16.msra.mxu0 %v1614
    %2394 = vmatprep.subr.bf16.mxu0 0
    %2395 = vmatpush1.bf16.msra.mxu0 %v1615
    %2396 = vmatprep.subr.bf16.mxu0 0
    %2397 = vmatpush1.bf16.msra.mxu0 %v1616
    %2398 = vmatprep.subr.bf16.mxu0 0
    %2399 = vmatpush1.bf16.msra.mxu0 %v1617
    %2400 = vmatprep.subr.bf16.mxu0 0
    %2401 = vmatpush1.bf16.msra.mxu0 %v1618
    %2402 = vmatprep.subr.bf16.mxu0 0
    %2403 = vmatpush1.bf16.msra.mxu0 %v1619
    %2404 = vmatprep.mubr.bf16.mxu0 %v1388
    %2405 = vmatmul.mubr.bf16.gmra.mrb[0].mxu0 %v1346
    %v2406 = vpop.f32.mrb[0].mxu0
    %v2407 = vadd.f32 %v2367, %v2406
    %v2408 = vpop.f32.mrb[0].mxu0
    %v2409 = vpop.f32.mrb[0].mxu0
    %v2410 = vpop.f32.mrb[0].mxu0
    %2411 = vdwg.mxu0
    %v2412 = vmax.f32 %v2407, 0.0
    %v2413 = vadd.f32 %v2412, %v492
    %v2414 = vpack.c.bf16 %v2413, %v2413
    %2416 = vrot.lane.b32.xlu0 %v1821, 64
    %v2417 = vpop.permute.xlu0 %2416
    %2419 = vrot.lane.b32.xlu0 %v1991, 64
    %v2420 = vpop.permute.xlu0 %2419
    %2422 = vrot.lane.b32.xlu0 %v2161, 64
    %v2423 = vpop.permute.xlu0 %2422
    %2425 = vrot.lane.b32.xlu0 %v2331, 64
    %v2426 = vpop.permute.xlu0 %2425
    %v2429 = vsel %vm506, %v1734, %v2417
    %v2433 = vsel %vm506, %v1904, %v2420
    %v2436 = vsel %vm506, %v2074, %v2423
    %v2440 = vsel %vm506, %v2244, %v2426
    %v2442 = vld [vmem:[%s7] sm:$0xff]
    %v2443 = vld [vmem:[%s7 + $0x8] sm:$0xff]
    %v2444 = vld [vmem:[%s7 + $0x10] sm:$0xff]
    %v2445 = vld [vmem:[%s7 + $0x18] sm:$0xff]
    %v2446 = vld [vmem:[%s7 + $0x20] sm:$0xff]
    %v2447 = vld [vmem:[%s7 + $0x28] sm:$0xff]
    %v2448 = vld [vmem:[%s7 + $0x30] sm:$0xff]
    %v2449 = vld [vmem:[%s7 + $0x38] sm:$0xff]
    %v2450 = vld [vmem:[%s7 + $0x40] sm:$0xff]
    %v2451 = vld [vmem:[%s7 + $0x48] sm:$0xff]
    %v2452 = vld [vmem:[%s7 + $0x50] sm:$0xff]
    %v2453 = vld [vmem:[%s7 + $0x58] sm:$0xff]
    %v2454 = vld [vmem:[%s7 + $0x60] sm:$0xff]
    %v2455 = vld [vmem:[%s7 + $0x68] sm:$0xff]
    %v2456 = vld [vmem:[%s7 + $0x70] sm:$0xff]
    %v2457 = vld [vmem:[%s7 + $0x78] sm:$0xff]
    %v2458 = vld [vmem:[%s7 + $0x80] sm:$0xff]
    %v2459 = vld [vmem:[%s7 + $0x88] sm:$0xff]
    %v2460 = vld [vmem:[%s7 + $0x90] sm:$0xff]
    %v2461 = vld [vmem:[%s7 + $0x98] sm:$0xff]
    %v2462 = vld [vmem:[%s7 + $0xa0] sm:$0xff]
    %v2463 = vld [vmem:[%s7 + $0xa8] sm:$0xff]
    %v2464 = vld [vmem:[%s7 + $0xb0] sm:$0xff]
    %v2465 = vld [vmem:[%s7 + $0xb8] sm:$0xff]
    %v2466 = vld [vmem:[%s7 + $0xc0] sm:$0xff]
    %v2467 = vld [vmem:[%s7 + $0xc8] sm:$0xff]
    %v2468 = vld [vmem:[%s7 + $0xd0] sm:$0xff]
    %v2469 = vld [vmem:[%s7 + $0xd8] sm:$0xff]
    %v2470 = vld [vmem:[%s7 + $0xe0] sm:$0xff]
    %v2471 = vld [vmem:[%s7 + $0xe8] sm:$0xff]
    %v2472 = vld [vmem:[%s7 + $0xf0] sm:$0xff]
    %v2473 = vld [vmem:[%s7 + $0xf8] sm:$0xff]
    %v2474 = vld [vmem:[%s8] sm:$0x3]
    %2477 = vrot.lane.b32.xlu0 %v2433, 64
    %v2478 = vpop.permute.xlu0 %2477
    %2479 = vrot.lane.b32.xlu0 %v2436, 64
    %v2480 = vpop.permute.xlu0 %2479
    %v2481 = vsel %vm504, %v2478, %v2480
    %v2484 = vlaneseq
    %v2485 = vshrl.u32 %v2484, 7
    %v2486 = vsub.s32 0, %v2485
    %v2487 = vrot.slane %v2474, %v2486
    %v2488 = vlaneseq
    %v2489 = vshrl.u32 %v2488, 7
    %v2490 = vsub.s32 1, %v2489
    %v2491 = vrot.slane %v2474, %v2490
    %v2526 = vunpack.c.l.b16 %v2442
    %v2527 = vunpack.c.h.b16 %v2442
    %v2528 = vunpack.c.l.b16 %v2443
    %v2529 = vunpack.c.h.b16 %v2443
    %v2530 = vunpack.c.l.b16 %v2444
    %v2531 = vunpack.c.h.b16 %v2444
    %v2532 = vunpack.c.l.b16 %v2445
    %v2533 = vunpack.c.h.b16 %v2445
    %v2534 = vunpack.c.l.b16 %v2446
    %v2535 = vunpack.c.h.b16 %v2446
    %v2536 = vunpack.c.l.b16 %v2447
    %v2537 = vunpack.c.h.b16 %v2447
    %v2538 = vunpack.c.l.b16 %v2448
    %v2539 = vunpack.c.h.b16 %v2448
    %v2540 = vunpack.c.l.b16 %v2449
    %v2541 = vunpack.c.h.b16 %v2449
    %v2542 = vunpack.c.l.b16 %v2450
    %v2543 = vunpack.c.h.b16 %v2450
    %v2544 = vunpack.c.l.b16 %v2451
    %v2545 = vunpack.c.h.b16 %v2451
    %v2546 = vunpack.c.l.b16 %v2452
    %v2547 = vunpack.c.h.b16 %v2452
    %v2548 = vunpack.c.l.b16 %v2453
    %v2549 = vunpack.c.h.b16 %v2453
    %v2550 = vunpack.c.l.b16 %v2454
    %v2551 = vunpack.c.h.b16 %v2454
    %v2552 = vunpack.c.l.b16 %v2455
    %v2553 = vunpack.c.h.b16 %v2455
    %v2554 = vunpack.c.l.b16 %v2456
    %v2555 = vunpack.c.h.b16 %v2456
    %v2556 = vunpack.c.l.b16 %v2457
    %v2557 = vunpack.c.h.b16 %v2457
    %v2558 = vunpack.c.l.b16 %v2458
    %v2559 = vunpack.c.h.b16 %v2458
    %v2560 = vunpack.c.l.b16 %v2459
    %v2561 = vunpack.c.h.b16 %v2459
    %v2562 = vunpack.c.l.b16 %v2460
    %v2563 = vunpack.c.h.b16 %v2460
    %v2564 = vunpack.c.l.b16 %v2461
    %v2565 = vunpack.c.h.b16 %v2461
    %v2566 = vunpack.c.l.b16 %v2462
    %v2567 = vunpack.c.h.b16 %v2462
    %v2568 = vunpack.c.l.b16 %v2463
    %v2569 = vunpack.c.h.b16 %v2463
    %v2570 = vunpack.c.l.b16 %v2464
    %v2571 = vunpack.c.h.b16 %v2464
    %v2572 = vunpack.c.l.b16 %v2465
    %v2573 = vunpack.c.h.b16 %v2465
    %v2574 = vunpack.c.l.b16 %v2466
    %v2575 = vunpack.c.h.b16 %v2466
    %v2576 = vunpack.c.l.b16 %v2467
    %v2577 = vunpack.c.h.b16 %v2467
    %v2578 = vunpack.c.l.b16 %v2468
    %v2579 = vunpack.c.h.b16 %v2468
    %v2580 = vunpack.c.l.b16 %v2469
    %v2581 = vunpack.c.h.b16 %v2469
    %v2582 = vunpack.c.l.b16 %v2470
    %v2583 = vunpack.c.h.b16 %v2470
    %v2584 = vunpack.c.l.b16 %v2471
    %v2585 = vunpack.c.h.b16 %v2471
    %v2586 = vunpack.c.l.b16 %v2472
    %v2587 = vunpack.c.h.b16 %v2472
    %v2588 = vunpack.c.l.b16 %v2473
    %v2589 = vunpack.c.h.b16 %v2473
    %v2590 = vpack.c.b16 %v2528, %v2526
    %v2591 = vpack.c.b16 %v2529, %v2527
    %v2592 = vpack.c.b16 %v2532, %v2530
    %v2593 = vpack.c.b16 %v2533, %v2531
    %v2594 = vpack.c.b16 %v2536, %v2534
    %v2595 = vpack.c.b16 %v2537, %v2535
    %v2596 = vpack.c.b16 %v2540, %v2538
    %v2597 = vpack.c.b16 %v2541, %v2539
    %v2598 = vpack.c.b16 %v2544, %v2542
    %v2599 = vpack.c.b16 %v2545, %v2543
    %v2600 = vpack.c.b16 %v2548, %v2546
    %v2601 = vpack.c.b16 %v2549, %v2547
    %v2602 = vpack.c.b16 %v2552, %v2550
    %v2603 = vpack.c.b16 %v2553, %v2551
    %v2604 = vpack.c.b16 %v2556, %v2554
    %v2605 = vpack.c.b16 %v2557, %v2555
    %v2606 = vpack.c.b16 %v2560, %v2558
    %v2607 = vpack.c.b16 %v2561, %v2559
    %v2608 = vpack.c.b16 %v2564, %v2562
    %v2609 = vpack.c.b16 %v2565, %v2563
    %v2610 = vpack.c.b16 %v2568, %v2566
    %v2611 = vpack.c.b16 %v2569, %v2567
    %v2612 = vpack.c.b16 %v2572, %v2570
    %v2613 = vpack.c.b16 %v2573, %v2571
    %v2614 = vpack.c.b16 %v2576, %v2574
    %v2615 = vpack.c.b16 %v2577, %v2575
    %v2616 = vpack.c.b16 %v2580, %v2578
    %v2617 = vpack.c.b16 %v2581, %v2579
    %v2618 = vpack.c.b16 %v2584, %v2582
    %v2619 = vpack.c.b16 %v2585, %v2583
    %v2620 = vpack.c.b16 %v2588, %v2586
    %v2621 = vpack.c.b16 %v2589, %v2587
    %2654 = vmatprep.subr.bf16.mxu0 %v2591
    %2655 = vmatpush1.bf16.msra.mxu0 %v2590
    %2656 = vmatprep.subr.bf16.mxu0 %v2593
    %2657 = vmatpush1.bf16.msra.mxu0 %v2592
    %2658 = vmatprep.subr.bf16.mxu0 %v2595
    %2659 = vmatpush1.bf16.msra.mxu0 %v2594
    %2660 = vmatprep.subr.bf16.mxu0 %v2597
    %2661 = vmatpush1.bf16.msra.mxu0 %v2596
    %2662 = vmatprep.subr.bf16.mxu0 %v2599
    %2663 = vmatpush1.bf16.msra.mxu0 %v2598
    %2664 = vmatprep.subr.bf16.mxu0 %v2601
    %2665 = vmatpush1.bf16.msra.mxu0 %v2600
    %2666 = vmatprep.subr.bf16.mxu0 %v2603
    %2667 = vmatpush1.bf16.msra.mxu0 %v2602
    %2668 = vmatprep.subr.bf16.mxu0 %v2605
    %2669 = vmatpush1.bf16.msra.mxu0 %v2604
    %2670 = vmatprep.subr.bf16.mxu0 %v2607
    %2671 = vmatpush1.bf16.msra.mxu0 %v2606
    %2672 = vmatprep.subr.bf16.mxu0 %v2609
    %2673 = vmatpush1.bf16.msra.mxu0 %v2608
    %2674 = vmatprep.subr.bf16.mxu0 %v2611
    %2675 = vmatpush1.bf16.msra.mxu0 %v2610
    %2676 = vmatprep.subr.bf16.mxu0 %v2613
    %2677 = vmatpush1.bf16.msra.mxu0 %v2612
    %2678 = vmatprep.subr.bf16.mxu0 %v2615
    %2679 = vmatpush1.bf16.msra.mxu0 %v2614
    %2680 = vmatprep.subr.bf16.mxu0 %v2617
    %2681 = vmatpush1.bf16.msra.mxu0 %v2616
    %2682 = vmatprep.subr.bf16.mxu0 %v2619
    %2683 = vmatpush1.bf16.msra.mxu0 %v2618
    %2684 = vmatprep.subr.bf16.mxu0 %v2621
    %2685 = vmatpush1.bf16.msra.mxu0 %v2620
    %2686 = vmatprep.mubr.bf16.mxu0 %v2481
    %2687 = vmatmul.mubr.bf16.gmra.mrb[0].mxu0 %v2429
    %v2688 = vpop.f32.mrb[0].mxu0
    %v2689 = vadd.f32 %v2487, %v2688
    %v2690 = vpop.f32.mrb[0].mxu0
    %v2691 = vadd.f32 %v2491, %v2690
    %v2692 = vpop.f32.mrb[0].mxu0
    %v2693 = vpop.f32.mrb[0].mxu0
    %2694 = vdwg.mxu0
    %v2695 = vmax.f32 %v2689, 0.0
    %v2696 = vmax.f32 %v2691, 0.0
    %v2697 = vpack.c.bf16 %v2695, %v2695
    %v2698 = vpack.c.bf16 %v2696, %v2696
    %2700 = vrot.lane.b32.xlu0 %v2429, 64
    %v2701 = vpop.permute.xlu0 %2700
    %v2702 = vsel %vm504, %v2701, %v2478
    %2704 = vmatprep.subr.bf16.mxu0 %v2591
    %2705 = vmatpush1.bf16.msra.mxu0 %v2590
    %2706 = vmatprep.subr.bf16.mxu0 %v2593
    %2707 = vmatpush1.bf16.msra.mxu0 %v2592
    %2708 = vmatprep.subr.bf16.mxu0 %v2595
    %2709 = vmatpush1.bf16.msra.mxu0 %v2594
    %2710 = vmatprep.subr.bf16.mxu0 %v2597
    %2711 = vmatpush1.bf16.msra.mxu0 %v2596
    %2712 = vmatprep.subr.bf16.mxu0 %v2599
    %2713 = vmatpush1.bf16.msra.mxu0 %v2598
    %2714 = vmatprep.subr.bf16.mxu0 %v2601
    %2715 = vmatpush1.bf16.msra.mxu0 %v2600
    %2716 = vmatprep.subr.bf16.mxu0 %v2603
    %2717 = vmatpush1.bf16.msra.mxu0 %v2602
    %2718 = vmatprep.subr.bf16.mxu0 %v2605
    %2719 = vmatpush1.bf16.msra.mxu0 %v2604
    %2720 = vmatprep.subr.bf16.mxu0 %v2607
    %2721 = vmatpush1.bf16.msra.mxu0 %v2606
    %2722 = vmatprep.subr.bf16.mxu0 %v2609
    %2723 = vmatpush1.bf16.msra.mxu0 %v2608
    %2724 = vmatprep.subr.bf16.mxu0 %v2611
    %2725 = vmatpush1.bf16.msra.mxu0 %v2610
    %2726 = vmatprep.subr.bf16.mxu0 %v2613
    %2727 = vmatpush1.bf16.msra.mxu0 %v2612
    %2728 = vmatprep.subr.bf16.mxu0 %v2615
    %2729 = vmatpush1.bf16.msra.mxu0 %v2614
    %2730 = vmatprep.subr.bf16.mxu0 %v2617
    %2731 = vmatpush1.bf16.msra.mxu0 %v2616
    %2732 = vmatprep.subr.bf16.mxu0 %v2619
    %2733 = vmatpush1.bf16.msra.mxu0 %v2618
    %2734 = vmatprep.subr.bf16.mxu0 %v2621
    %2735 = vmatpush1.bf16.msra.mxu0 %v2620
    %2736 = vmatprep.mubr.bf16.mxu0 %v2436
    %2737 = vmatmul.mubr.bf16.gmra.mrb[0].mxu0 %v2702
    %v2738 = vpop.f32.mrb[0].mxu0
    %v2739 = vadd.f32 %v2487, %v2738
    %v2740 = vpop.f32.mrb[0].mxu0
    %v2741 = vadd.f32 %v2491, %v2740
    %v2742 = vpop.f32.mrb[0].mxu0
    %v2743 = vpop.f32.mrb[0].mxu0
    %2744 = vdwg.mxu0
    %v2745 = vmax.f32 %v2739, 0.0
    %v2746 = vmax.f32 %v2741, 0.0
    %v2747 = vpack.c.bf16 %v2745, %v2745
    %v2748 = vpack.c.bf16 %v2746, %v2746
    %2749 = vmatprep.subr.bf16.mxu0 %v2591
    %2750 = vmatpush1.bf16.msra.mxu0 %v2590
    %2751 = vmatprep.subr.bf16.mxu0 %v2593
    %2752 = vmatpush1.bf16.msra.mxu0 %v2592
    %2753 = vmatprep.subr.bf16.mxu0 %v2595
    %2754 = vmatpush1.bf16.msra.mxu0 %v2594
    %2755 = vmatprep.subr.bf16.mxu0 %v2597
    %2756 = vmatpush1.bf16.msra.mxu0 %v2596
    %2757 = vmatprep.subr.bf16.mxu0 %v2599
    %2758 = vmatpush1.bf16.msra.mxu0 %v2598
    %2759 = vmatprep.subr.bf16.mxu0 %v2601
    %2760 = vmatpush1.bf16.msra.mxu0 %v2600
    %2761 = vmatprep.subr.bf16.mxu0 %v2603
    %2762 = vmatpush1.bf16.msra.mxu0 %v2602
    %2763 = vmatprep.subr.bf16.mxu0 %v2605
    %2764 = vmatpush1.bf16.msra.mxu0 %v2604
    %2765 = vmatprep.subr.bf16.mxu0 %v2607
    %2766 = vmatpush1.bf16.msra.mxu0 %v2606
    %2767 = vmatprep.subr.bf16.mxu0 %v2609
    %2768 = vmatpush1.bf16.msra.mxu0 %v2608
    %2769 = vmatprep.subr.bf16.mxu0 %v2611
    %2770 = vmatpush1.bf16.msra.mxu0 %v2610
    %2771 = vmatprep.subr.bf16.mxu0 %v2613
    %2772 = vmatpush1.bf16.msra.mxu0 %v2612
    %2773 = vmatprep.subr.bf16.mxu0 %v2615
    %2774 = vmatpush1.bf16.msra.mxu0 %v2614
    %2775 = vmatprep.subr.bf16.mxu0 %v2617
    %2776 = vmatpush1.bf16.msra.mxu0 %v2616
    %2777 = vmatprep.subr.bf16.mxu0 %v2619
    %2778 = vmatpush1.bf16.msra.mxu0 %v2618
    %2779 = vmatprep.subr.bf16.mxu0 %v2621
    %2780 = vmatpush1.bf16.msra.mxu0 %v2620
    %2781 = vmatprep.mubr.bf16.mxu0 %v2440
    %2782 = vmatmul.mubr.bf16.gmra.mrb[0].mxu0 %v2481
    %v2783 = vpop.f32.mrb[0].mxu0
    %v2784 = vadd.f32 %v2487, %v2783
    %v2785 = vpop.f32.mrb[0].mxu0
    %v2786 = vadd.f32 %v2491, %v2785
    %v2787 = vpop.f32.mrb[0].mxu0
    %v2788 = vpop.f32.mrb[0].mxu0
    %2789 = vdwg.mxu0
    %v2790 = vmax.f32 %v2784, 0.0
    %v2791 = vmax.f32 %v2786, 0.0
    %v2792 = vpack.c.bf16 %v2790, %v2790
    %v2793 = vpack.c.bf16 %v2791, %v2791
    %2796 = vrot.lane.b32.xlu0 %v2440, 64
    %v2797 = vpop.permute.xlu0 %2796
    %2798 = vrot.lane.b32.xlu0 %v2414, 64
    %v2799 = vpop.permute.xlu0 %2798
    %v2800 = vsel %vm504, %v2797, %v2799
    %2802 = vmatprep.subr.bf16.mxu0 %v2591
    %2803 = vmatpush1.bf16.msra.mxu0 %v2590
    %2804 = vmatprep.subr.bf16.mxu0 %v2593
    %2805 = vmatpush1.bf16.msra.mxu0 %v2592
    %2806 = vmatprep.subr.bf16.mxu0 %v2595
    %2807 = vmatpush1.bf16.msra.mxu0 %v2594
    %2808 = vmatprep.subr.bf16.mxu0 %v2597
    %2809 = vmatpush1.bf16.msra.mxu0 %v2596
    %2810 = vmatprep.subr.bf16.mxu0 %v2599
    %2811 = vmatpush1.bf16.msra.mxu0 %v2598
    %2812 = vmatprep.subr.bf16.mxu0 %v2601
    %2813 = vmatpush1.bf16.msra.mxu0 %v2600
    %2814 = vmatprep.subr.bf16.mxu0 %v2603
    %2815 = vmatpush1.bf16.msra.mxu0 %v2602
    %2816 = vmatprep.subr.bf16.mxu0 %v2605
    %2817 = vmatpush1.bf16.msra.mxu0 %v2604
    %2818 = vmatprep.subr.bf16.mxu0 %v2607
    %2819 = vmatpush1.bf16.msra.mxu0 %v2606
    %2820 = vmatprep.subr.bf16.mxu0 %v2609
    %2821 = vmatpush1.bf16.msra.mxu0 %v2608
    %2822 = vmatprep.subr.bf16.mxu0 %v2611
    %2823 = vmatpush1.bf16.msra.mxu0 %v2610
    %2824 = vmatprep.subr.bf16.mxu0 %v2613
    %2825 = vmatpush1.bf16.msra.mxu0 %v2612
    %2826 = vmatprep.subr.bf16.mxu0 %v2615
    %2827 = vmatpush1.bf16.msra.mxu0 %v2614
    %2828 = vmatprep.subr.bf16.mxu0 %v2617
    %2829 = vmatpush1.bf16.msra.mxu0 %v2616
    %2830 = vmatprep.subr.bf16.mxu0 %v2619
    %2831 = vmatpush1.bf16.msra.mxu0 %v2618
    %2832 = vmatprep.subr.bf16.mxu0 %v2621
    %2833 = vmatpush1.bf16.msra.mxu0 %v2620
    %2834 = vmatprep.mubr.bf16.mxu0 %v2800
    %2835 = vmatmul.mubr.bf16.gmra.mrb[0].mxu0 %v2436
    %v2836 = vpop.f32.mrb[0].mxu0
    %v2837 = vadd.f32 %v2487, %v2836
    %v2838 = vpop.f32.mrb[0].mxu0
    %v2839 = vadd.f32 %v2491, %v2838
    %v2840 = vpop.f32.mrb[0].mxu0
    %v2841 = vpop.f32.mrb[0].mxu0
    %2842 = vdwg.mxu0
    %v2843 = vmax.f32 %v2837, 0.0
    %v2844 = vmax.f32 %v2839, 0.0
    %v2845 = vpack.c.bf16 %v2843, %v2843
    %v2846 = vpack.c.bf16 %v2844, %v2844
    %v2847 = vld [vmem:[#allocation5] sm:$0xff]
    %v2848 = vld [vmem:[#allocation5 + $0x8] sm:$0xff]
    %v2849 = vld [vmem:[#allocation5 + $0x10] sm:$0xff]
    %v2850 = vld [vmem:[#allocation5 + $0x18] sm:$0xff]
    %v2851 = vld [vmem:[#allocation5 + $0x20] sm:$0xff]
    %v2852 = vld [vmem:[#allocation5 + $0x28] sm:$0xff]
    %v2853 = vld [vmem:[#allocation5 + $0x30] sm:$0xff]
    %v2854 = vld [vmem:[#allocation5 + $0x38] sm:$0xff]
    %v2855 = vld [vmem:[#allocation5 + $0x40] sm:$0xff]
    %v2856 = vld [vmem:[#allocation5 + $0x48] sm:$0xff]
    %v2857 = vld [vmem:[#allocation5 + $0x50] sm:$0xff]
    %v2858 = vld [vmem:[#allocation5 + $0x58] sm:$0xff]
    %v2859 = vld [vmem:[#allocation5 + $0x60] sm:$0xff]
    %v2860 = vld [vmem:[#allocation5 + $0x68] sm:$0xff]
    %v2861 = vld [vmem:[#allocation5 + $0x70] sm:$0xff]
    %v2862 = vld [vmem:[#allocation5 + $0x78] sm:$0xff]
    %v2863 = vld [vmem:[#allocation5 + $0x80] sm:$0xff]
    %v2864 = vld [vmem:[#allocation5 + $0x88] sm:$0xff]
    %v2865 = vld [vmem:[#allocation5 + $0x90] sm:$0xff]
    %v2866 = vld [vmem:[#allocation5 + $0x98] sm:$0xff]
    %v2867 = vld [vmem:[#allocation5 + $0xa0] sm:$0xff]
    %v2868 = vld [vmem:[#allocation5 + $0xa8] sm:$0xff]
    %v2869 = vld [vmem:[#allocation5 + $0xb0] sm:$0xff]
    %v2870 = vld [vmem:[#allocation5 + $0xb8] sm:$0xff]
    %v2871 = vld [vmem:[#allocation5 + $0xc0] sm:$0xff]
    %v2872 = vld [vmem:[#allocation5 + $0xc8] sm:$0xff]
    %v2873 = vld [vmem:[#allocation5 + $0xd0] sm:$0xff]
    %v2874 = vld [vmem:[#allocation5 + $0xd8] sm:$0xff]
    %v2875 = vld [vmem:[#allocation5 + $0xe0] sm:$0xff]
    %v2876 = vld [vmem:[#allocation5 + $0xe8] sm:$0xff]
    %v2877 = vld [vmem:[#allocation5 + $0xf0] sm:$0xff]
    %v2878 = vld [vmem:[#allocation5 + $0xf8] sm:$0xff]
    %v2879 = vld [vmem:[#allocation5 + $0x100] sm:$0xff]
    %v2880 = vld [vmem:[#allocation5 + $0x108] sm:$0xff]
    %v2881 = vld [vmem:[#allocation5 + $0x110] sm:$0xff]
    %v2882 = vld [vmem:[#allocation5 + $0x118] sm:$0xff]
    %v2883 = vld [vmem:[#allocation5 + $0x120] sm:$0xff]
    %v2884 = vld [vmem:[#allocation5 + $0x128] sm:$0xff]
    %v2885 = vld [vmem:[#allocation5 + $0x130] sm:$0xff]
    %v2886 = vld [vmem:[#allocation5 + $0x138] sm:$0xff]
    %v2887 = vld [vmem:[#allocation5 + $0x140] sm:$0xff]
    %v2888 = vld [vmem:[#allocation5 + $0x148] sm:$0xff]
    %v2889 = vld [vmem:[#allocation5 + $0x150] sm:$0xff]
    %v2890 = vld [vmem:[#allocation5 + $0x158] sm:$0xff]
    %v2891 = vld [vmem:[#allocation5 + $0x160] sm:$0xff]
    %v2892 = vld [vmem:[#allocation5 + $0x168] sm:$0xff]
    %v2893 = vld [vmem:[#allocation5 + $0x170] sm:$0xff]
    %v2894 = vld [vmem:[#allocation5 + $0x178] sm:$0xff]
    %v2895 = vld [vmem:[#allocation5 + $0x180] sm:$0xff]
    %v2896 = vld [vmem:[#allocation5 + $0x188] sm:$0xff]
    %v2897 = vld [vmem:[#allocation5 + $0x190] sm:$0xff]
    %v2898 = vld [vmem:[#allocation5 + $0x198] sm:$0xff]
    %v2899 = vld [vmem:[#allocation5 + $0x1a0] sm:$0xff]
    %v2900 = vld [vmem:[#allocation5 + $0x1a8] sm:$0xff]
    %v2901 = vld [vmem:[#allocation5 + $0x1b0] sm:$0xff]
    %v2902 = vld [vmem:[#allocation5 + $0x1b8] sm:$0xff]
    %v2903 = vld [vmem:[#allocation5 + $0x1c0] sm:$0xff]
    %v2904 = vld [vmem:[#allocation5 + $0x1c8] sm:$0xff]
    %v2905 = vld [vmem:[#allocation5 + $0x1d0] sm:$0xff]
    %v2906 = vld [vmem:[#allocation5 + $0x1d8] sm:$0xff]
    %v2907 = vld [vmem:[#allocation5 + $0x1e0] sm:$0xff]
    %v2908 = vld [vmem:[#allocation5 + $0x1e8] sm:$0xff]
    %v2909 = vld [vmem:[#allocation5 + $0x1f0] sm:$0xff]
    %v2910 = vld [vmem:[#allocation5 + $0x1f8] sm:$0xff]
    %v2911 = vld [vmem:[#allocation5 + $0x200] sm:$0xff]
    %v2912 = vld [vmem:[#allocation5 + $0x208] sm:$0xff]
    %v2913 = vld [vmem:[#allocation5 + $0x210] sm:$0xff]
    %v2914 = vld [vmem:[#allocation5 + $0x218] sm:$0xff]
    %v2915 = vld [vmem:[#allocation5 + $0x220] sm:$0xff]
    %v2916 = vld [vmem:[#allocation5 + $0x228] sm:$0xff]
    %v2917 = vld [vmem:[#allocation5 + $0x230] sm:$0xff]
    %v2918 = vld [vmem:[#allocation5 + $0x238] sm:$0xff]
    %v2919 = vld [vmem:[#allocation5 + $0x240] sm:$0xff]
    %v2920 = vld [vmem:[#allocation5 + $0x248] sm:$0xff]
    %v2921 = vld [vmem:[#allocation5 + $0x250] sm:$0xff]
    %v2922 = vld [vmem:[#allocation5 + $0x258] sm:$0xff]
    %v2923 = vld [vmem:[#allocation5 + $0x260] sm:$0xff]
    %v2924 = vld [vmem:[#allocation5 + $0x268] sm:$0xff]
    %v2925 = vld [vmem:[#allocation5 + $0x270] sm:$0xff]
    %v2926 = vld [vmem:[#allocation5 + $0x278] sm:$0xff]
    %v2927 = vld [vmem:[#allocation5 + $0x280] sm:$0xff]
    %v2928 = vld [vmem:[#allocation5 + $0x288] sm:$0xff]
    %v2929 = vld [vmem:[#allocation5 + $0x290] sm:$0xff]
    %v2930 = vld [vmem:[#allocation5 + $0x298] sm:$0xff]
    %v2931 = vld [vmem:[#allocation5 + $0x2a0] sm:$0xff]
    %v2932 = vld [vmem:[#allocation5 + $0x2a8] sm:$0xff]
    %v2933 = vld [vmem:[#allocation5 + $0x2b0] sm:$0xff]
    %v2934 = vld [vmem:[#allocation5 + $0x2b8] sm:$0xff]
    %v2935 = vld [vmem:[#allocation5 + $0x2c0] sm:$0xff]
    %v2936 = vld [vmem:[#allocation5 + $0x2c8] sm:$0xff]
    %v2937 = vld [vmem:[#allocation5 + $0x2d0] sm:$0xff]
    %v2938 = vld [vmem:[#allocation5 + $0x2d8] sm:$0xff]
    %v2939 = vld [vmem:[#allocation5 + $0x2e0] sm:$0xff]
    %v2940 = vld [vmem:[#allocation5 + $0x2e8] sm:$0xff]
    %v2941 = vld [vmem:[#allocation5 + $0x2f0] sm:$0xff]
    %v2942 = vld [vmem:[#allocation5 + $0x2f8] sm:$0xff]
    %v2943 = vld [vmem:[#allocation5 + $0x300] sm:$0xff]
    %v2944 = vld [vmem:[#allocation5 + $0x308] sm:$0xff]
    %v2945 = vld [vmem:[#allocation5 + $0x310] sm:$0xff]
    %v2946 = vld [vmem:[#allocation5 + $0x318] sm:$0xff]
    %v2947 = vld [vmem:[#allocation5 + $0x320] sm:$0xff]
    %v2948 = vld [vmem:[#allocation5 + $0x328] sm:$0xff]
    %v2949 = vld [vmem:[#allocation5 + $0x330] sm:$0xff]
    %v2950 = vld [vmem:[#allocation5 + $0x338] sm:$0xff]
    %v2951 = vld [vmem:[#allocation5 + $0x340] sm:$0xff]
    %v2952 = vld [vmem:[#allocation5 + $0x348] sm:$0xff]
    %v2953 = vld [vmem:[#allocation5 + $0x350] sm:$0xff]
    %v2954 = vld [vmem:[#allocation5 + $0x358] sm:$0xff]
    %v2955 = vld [vmem:[#allocation5 + $0x360] sm:$0xff]
    %v2956 = vld [vmem:[#allocation5 + $0x368] sm:$0xff]
    %v2957 = vld [vmem:[#allocation5 + $0x370] sm:$0xff]
    %v2958 = vld [vmem:[#allocation5 + $0x378] sm:$0xff]
    %v2959 = vld [vmem:[#allocation5 + $0x380] sm:$0xff]
    %v2960 = vld [vmem:[#allocation5 + $0x388] sm:$0xff]
    %v2961 = vld [vmem:[#allocation5 + $0x390] sm:$0xff]
    %v2962 = vld [vmem:[#allocation5 + $0x398] sm:$0xff]
    %v2963 = vld [vmem:[#allocation5 + $0x3a0] sm:$0xff]
    %v2964 = vld [vmem:[#allocation5 + $0x3a8] sm:$0xff]
    %v2965 = vld [vmem:[#allocation5 + $0x3b0] sm:$0xff]
    %v2966 = vld [vmem:[#allocation5 + $0x3b8] sm:$0xff]
    %v2967 = vld [vmem:[#allocation5 + $0x3c0] sm:$0xff]
    %v2968 = vld [vmem:[#allocation5 + $0x3c8] sm:$0xff]
    %v2969 = vld [vmem:[#allocation5 + $0x3d0] sm:$0xff]
    %v2970 = vld [vmem:[#allocation5 + $0x3d8] sm:$0xff]
    %v2971 = vld [vmem:[#allocation5 + $0x3e0] sm:$0xff]
    %v2972 = vld [vmem:[#allocation5 + $0x3e8] sm:$0xff]
    %v2973 = vld [vmem:[#allocation5 + $0x3f0] sm:$0xff]
    %v2974 = vld [vmem:[#allocation5 + $0x3f8] sm:$0xff]
    %v2975 = vld [vmem:[#allocation5 + $0x400] sm:$0xff]
    %v2976 = vld [vmem:[#allocation5 + $0x408] sm:$0xff]
    %v2977 = vld [vmem:[#allocation5 + $0x410] sm:$0xff]
    %v2978 = vld [vmem:[#allocation5 + $0x418] sm:$0xff]
    %v2979 = vld [vmem:[#allocation5 + $0x420] sm:$0xff]
    %v2980 = vld [vmem:[#allocation5 + $0x428] sm:$0xff]
    %v2981 = vld [vmem:[#allocation5 + $0x430] sm:$0xff]
    %v2982 = vld [vmem:[#allocation5 + $0x438] sm:$0xff]
    %v2983 = vld [vmem:[#allocation5 + $0x440] sm:$0xff]
    %v2984 = vld [vmem:[#allocation5 + $0x448] sm:$0xff]
    %v2985 = vld [vmem:[#allocation5 + $0x450] sm:$0xff]
    %v2986 = vld [vmem:[#allocation5 + $0x458] sm:$0xff]
    %v2987 = vld [vmem:[#allocation5 + $0x460] sm:$0xff]
    %v2988 = vld [vmem:[#allocation5 + $0x468] sm:$0xff]
    %v2989 = vld [vmem:[#allocation5 + $0x470] sm:$0xff]
    %v2990 = vld [vmem:[#allocation5 + $0x478] sm:$0xff]
    %v2991 = vld [vmem:[#allocation5 + $0x480] sm:$0xff]
    %v2992 = vld [vmem:[#allocation5 + $0x488] sm:$0xff]
    %v2993 = vld [vmem:[#allocation5 + $0x490] sm:$0xff]
    %v2994 = vld [vmem:[#allocation5 + $0x498] sm:$0xff]
    %v2995 = vld [vmem:[#allocation5 + $0x4a0] sm:$0xff]
    %v2996 = vld [vmem:[#allocation5 + $0x4a8] sm:$0xff]
    %v2997 = vld [vmem:[#allocation5 + $0x4b0] sm:$0xff]
    %v2998 = vld [vmem:[#allocation5 + $0x4b8] sm:$0xff]
    %v2999 = vld [vmem:[#allocation5 + $0x4c0] sm:$0xff]
    %v3000 = vld [vmem:[#allocation5 + $0x4c8] sm:$0xff]
    %v3001 = vld [vmem:[#allocation5 + $0x4d0] sm:$0xff]
    %v3002 = vld [vmem:[#allocation5 + $0x4d8] sm:$0xff]
    %v3003 = vld [vmem:[#allocation5 + $0x4e0] sm:$0xff]
    %v3004 = vld [vmem:[#allocation5 + $0x4e8] sm:$0xff]
    %v3005 = vld [vmem:[#allocation5 + $0x4f0] sm:$0xff]
    %v3006 = vld [vmem:[#allocation5 + $0x4f8] sm:$0xff]
    %v3007 = vld [vmem:[#allocation5 + $0x500] sm:$0xff]
    %v3008 = vld [vmem:[#allocation5 + $0x508] sm:$0xff]
    %v3009 = vld [vmem:[#allocation5 + $0x510] sm:$0xff]
    %v3010 = vld [vmem:[#allocation5 + $0x518] sm:$0xff]
    %v3011 = vld [vmem:[#allocation5 + $0x520] sm:$0xff]
    %v3012 = vld [vmem:[#allocation5 + $0x528] sm:$0xff]
    %v3013 = vld [vmem:[#allocation5 + $0x530] sm:$0xff]
    %v3014 = vld [vmem:[#allocation5 + $0x538] sm:$0xff]
    %v3015 = vld [vmem:[#allocation5 + $0x540] sm:$0xff]
    %v3016 = vld [vmem:[#allocation5 + $0x548] sm:$0xff]
    %v3017 = vld [vmem:[#allocation5 + $0x550] sm:$0xff]
    %v3018 = vld [vmem:[#allocation5 + $0x558] sm:$0xff]
    %v3019 = vld [vmem:[#allocation5 + $0x560] sm:$0xff]
    %v3020 = vld [vmem:[#allocation5 + $0x568] sm:$0xff]
    %v3021 = vld [vmem:[#allocation5 + $0x570] sm:$0xff]
    %v3022 = vld [vmem:[#allocation5 + $0x578] sm:$0xff]
    %v3023 = vld [vmem:[#allocation5 + $0x580] sm:$0xff]
    %v3024 = vld [vmem:[#allocation5 + $0x588] sm:$0xff]
    %v3025 = vld [vmem:[#allocation5 + $0x590] sm:$0xff]
    %v3026 = vld [vmem:[#allocation5 + $0x598] sm:$0xff]
    %v3027 = vld [vmem:[#allocation5 + $0x5a0] sm:$0xff]
    %v3028 = vld [vmem:[#allocation5 + $0x5a8] sm:$0xff]
    %v3029 = vld [vmem:[#allocation5 + $0x5b0] sm:$0xff]
    %v3030 = vld [vmem:[#allocation5 + $0x5b8] sm:$0xff]
    %v3031 = vld [vmem:[#allocation5 + $0x5c0] sm:$0xff]
    %v3032 = vld [vmem:[#allocation5 + $0x5c8] sm:$0xff]
    %v3033 = vld [vmem:[#allocation5 + $0x5d0] sm:$0xff]
    %v3034 = vld [vmem:[#allocation5 + $0x5d8] sm:$0xff]
    %v3035 = vld [vmem:[#allocation5 + $0x5e0] sm:$0xff]
    %v3036 = vld [vmem:[#allocation5 + $0x5e8] sm:$0xff]
    %v3037 = vld [vmem:[#allocation5 + $0x5f0] sm:$0xff]
    %v3038 = vld [vmem:[#allocation5 + $0x5f8] sm:$0xff]
    %v3039 = vld [vmem:[#allocation5 + $0x600] sm:$0xff]
    %v3040 = vld [vmem:[#allocation5 + $0x608] sm:$0xff]
    %v3041 = vld [vmem:[#allocation5 + $0x610] sm:$0xff]
    %v3042 = vld [vmem:[#allocation5 + $0x618] sm:$0xff]
    %v3043 = vld [vmem:[#allocation5 + $0x620] sm:$0xff]
    %v3044 = vld [vmem:[#allocation5 + $0x628] sm:$0xff]
    %v3045 = vld [vmem:[#allocation5 + $0x630] sm:$0xff]
    %v3046 = vld [vmem:[#allocation5 + $0x638] sm:$0xff]
    %v3047 = vld [vmem:[#allocation5 + $0x640] sm:$0xff]
    %v3048 = vld [vmem:[#allocation5 + $0x648] sm:$0xff]
    %v3049 = vld [vmem:[#allocation5 + $0x650] sm:$0xff]
    %v3050 = vld [vmem:[#allocation5 + $0x658] sm:$0xff]
    %v3051 = vld [vmem:[#allocation5 + $0x660] sm:$0xff]
    %v3052 = vld [vmem:[#allocation5 + $0x668] sm:$0xff]
    %v3053 = vld [vmem:[#allocation5 + $0x670] sm:$0xff]
    %v3054 = vld [vmem:[#allocation5 + $0x678] sm:$0xff]
    %v3055 = vld [vmem:[#allocation5 + $0x680] sm:$0xff]
    %v3056 = vld [vmem:[#allocation5 + $0x688] sm:$0xff]
    %v3057 = vld [vmem:[#allocation5 + $0x690] sm:$0xff]
    %v3058 = vld [vmem:[#allocation5 + $0x698] sm:$0xff]
    %v3059 = vld [vmem:[#allocation5 + $0x6a0] sm:$0xff]
    %v3060 = vld [vmem:[#allocation5 + $0x6a8] sm:$0xff]
    %v3061 = vld [vmem:[#allocation5 + $0x6b0] sm:$0xff]
    %v3062 = vld [vmem:[#allocation5 + $0x6b8] sm:$0xff]
    %v3063 = vld [vmem:[#allocation5 + $0x6c0] sm:$0xff]
    %v3064 = vld [vmem:[#allocation5 + $0x6c8] sm:$0xff]
    %v3065 = vld [vmem:[#allocation5 + $0x6d0] sm:$0xff]
    %v3066 = vld [vmem:[#allocation5 + $0x6d8] sm:$0xff]
    %v3067 = vld [vmem:[#allocation5 + $0x6e0] sm:$0xff]
    %v3068 = vld [vmem:[#allocation5 + $0x6e8] sm:$0xff]
    %v3069 = vld [vmem:[#allocation5 + $0x6f0] sm:$0xff]
    %v3070 = vld [vmem:[#allocation5 + $0x6f8] sm:$0xff]
    %v3071 = vld [vmem:[#allocation5 + $0x700] sm:$0xff]
    %v3072 = vld [vmem:[#allocation5 + $0x708] sm:$0xff]
    %v3073 = vld [vmem:[#allocation5 + $0x710] sm:$0xff]
    %v3074 = vld [vmem:[#allocation5 + $0x718] sm:$0xff]
    %v3075 = vld [vmem:[#allocation5 + $0x720] sm:$0xff]
    %v3076 = vld [vmem:[#allocation5 + $0x728] sm:$0xff]
    %v3077 = vld [vmem:[#allocation5 + $0x730] sm:$0xff]
    %v3078 = vld [vmem:[#allocation5 + $0x738] sm:$0xff]
    %v3079 = vld [vmem:[#allocation5 + $0x740] sm:$0xff]
    %v3080 = vld [vmem:[#allocation5 + $0x748] sm:$0xff]
    %v3081 = vld [vmem:[#allocation5 + $0x750] sm:$0xff]
    %v3082 = vld [vmem:[#allocation5 + $0x758] sm:$0xff]
    %v3083 = vld [vmem:[#allocation5 + $0x760] sm:$0xff]
    %v3084 = vld [vmem:[#allocation5 + $0x768] sm:$0xff]
    %v3085 = vld [vmem:[#allocation5 + $0x770] sm:$0xff]
    %v3086 = vld [vmem:[#allocation5 + $0x778] sm:$0xff]
    %v3087 = vld [vmem:[#allocation5 + $0x780] sm:$0xff]
    %v3088 = vld [vmem:[#allocation5 + $0x788] sm:$0xff]
    %v3089 = vld [vmem:[#allocation5 + $0x790] sm:$0xff]
    %v3090 = vld [vmem:[#allocation5 + $0x798] sm:$0xff]
    %v3091 = vld [vmem:[#allocation5 + $0x7a0] sm:$0xff]
    %v3092 = vld [vmem:[#allocation5 + $0x7a8] sm:$0xff]
    %v3093 = vld [vmem:[#allocation5 + $0x7b0] sm:$0xff]
    %v3094 = vld [vmem:[#allocation5 + $0x7b8] sm:$0xff]
    %v3095 = vld [vmem:[#allocation5 + $0x7c0] sm:$0xff]
    %v3096 = vld [vmem:[#allocation5 + $0x7c8] sm:$0xff]
    %v3097 = vld [vmem:[#allocation5 + $0x7d0] sm:$0xff]
    %v3098 = vld [vmem:[#allocation5 + $0x7d8] sm:$0xff]
    %v3099 = vld [vmem:[#allocation5 + $0x7e0] sm:$0xff]
    %v3100 = vld [vmem:[#allocation5 + $0x7e8] sm:$0xff]
    %v3101 = vld [vmem:[#allocation5 + $0x7f0] sm:$0xff]
    %v3102 = vld [vmem:[#allocation5 + $0x7f8] sm:$0xff]
    %v3103 = vld [vmem:[%s10] sm:$0xf]
    %v3105 = vlaneseq
    %v3106 = vshrl.u32 %v3105, 7
    %v3107 = vsub.s32 0, %v3106
    %v3108 = vrot.slane %v3103, %v3107
    %v3109 = vlaneseq
    %v3110 = vshrl.u32 %v3109, 7
    %v3111 = vsub.s32 1, %v3110
    %v3112 = vrot.slane %v3103, %v3111
    %v3113 = vlaneseq
    %v3114 = vshrl.u32 %v3113, 7
    %v3115 = vsub.s32 2, %v3114
    %v3116 = vrot.slane %v3103, %v3115
    %v3117 = vlaneseq
    %v3118 = vshrl.u32 %v3117, 7
    %v3119 = vsub.s32 3, %v3118
    %v3120 = vrot.slane %v3103, %v3119
    %v3381 = vunpack.c.l.b16 %v2847
    %v3382 = vunpack.c.h.b16 %v2847
    %v3383 = vunpack.c.l.b16 %v2848
    %v3384 = vunpack.c.h.b16 %v2848
    %v3385 = vunpack.c.l.b16 %v2849
    %v3386 = vunpack.c.h.b16 %v2849
    %v3387 = vunpack.c.l.b16 %v2850
    %v3388 = vunpack.c.h.b16 %v2850
    %v3389 = vunpack.c.l.b16 %v2851
    %v3390 = vunpack.c.h.b16 %v2851
    %v3391 = vunpack.c.l.b16 %v2852
    %v3392 = vunpack.c.h.b16 %v2852
    %v3393 = vunpack.c.l.b16 %v2853
    %v3394 = vunpack.c.h.b16 %v2853
    %v3395 = vunpack.c.l.b16 %v2854
    %v3396 = vunpack.c.h.b16 %v2854
    %v3397 = vunpack.c.l.b16 %v2855
    %v3398 = vunpack.c.h.b16 %v2855
    %v3399 = vunpack.c.l.b16 %v2856
    %v3400 = vunpack.c.h.b16 %v2856
    %v3401 = vunpack.c.l.b16 %v2857
    %v3402 = vunpack.c.h.b16 %v2857
    %v3403 = vunpack.c.l.b16 %v2858
    %v3404 = vunpack.c.h.b16 %v2858
    %v3405 = vunpack.c.l.b16 %v2859
    %v3406 = vunpack.c.h.b16 %v2859
    %v3407 = vunpack.c.l.b16 %v2860
    %v3408 = vunpack.c.h.b16 %v2860
    %v3409 = vunpack.c.l.b16 %v2861
    %v3410 = vunpack.c.h.b16 %v2861
    %v3411 = vunpack.c.l.b16 %v2862
    %v3412 = vunpack.c.h.b16 %v2862
    %v3413 = vunpack.c.l.b16 %v2863
    %v3414 = vunpack.c.h.b16 %v2863
    %v3415 = vunpack.c.l.b16 %v2864
    %v3416 = vunpack.c.h.b16 %v2864
    %v3417 = vunpack.c.l.b16 %v2865
    %v3418 = vunpack.c.h.b16 %v2865
    %v3419 = vunpack.c.l.b16 %v2866
    %v3420 = vunpack.c.h.b16 %v2866
    %v3421 = vunpack.c.l.b16 %v2867
    %v3422 = vunpack.c.h.b16 %v2867
    %v3423 = vunpack.c.l.b16 %v2868
    %v3424 = vunpack.c.h.b16 %v2868
    %v3425 = vunpack.c.l.b16 %v2869
    %v3426 = vunpack.c.h.b16 %v2869
    %v3427 = vunpack.c.l.b16 %v2870
    %v3428 = vunpack.c.h.b16 %v2870
    %v3429 = vunpack.c.l.b16 %v2871
    %v3430 = vunpack.c.h.b16 %v2871
    %v3431 = vunpack.c.l.b16 %v2872
    %v3432 = vunpack.c.h.b16 %v2872
    %v3433 = vunpack.c.l.b16 %v2873
    %v3434 = vunpack.c.h.b16 %v2873
    %v3435 = vunpack.c.l.b16 %v2874
    %v3436 = vunpack.c.h.b16 %v2874
    %v3437 = vunpack.c.l.b16 %v2875
    %v3438 = vunpack.c.h.b16 %v2875
    %v3439 = vunpack.c.l.b16 %v2876
    %v3440 = vunpack.c.h.b16 %v2876
    %v3441 = vunpack.c.l.b16 %v2877
    %v3442 = vunpack.c.h.b16 %v2877
    %v3443 = vunpack.c.l.b16 %v2878
    %v3444 = vunpack.c.h.b16 %v2878
    %v3445 = vunpack.c.l.b16 %v2879
    %v3446 = vunpack.c.h.b16 %v2879
    %v3447 = vunpack.c.l.b16 %v2880
    %v3448 = vunpack.c.h.b16 %v2880
    %v3449 = vunpack.c.l.b16 %v2881
    %v3450 = vunpack.c.h.b16 %v2881
    %v3451 = vunpack.c.l.b16 %v2882
    %v3452 = vunpack.c.h.b16 %v2882
    %v3453 = vunpack.c.l.b16 %v2883
    %v3454 = vunpack.c.h.b16 %v2883
    %v3455 = vunpack.c.l.b16 %v2884
    %v3456 = vunpack.c.h.b16 %v2884
    %v3457 = vunpack.c.l.b16 %v2885
    %v3458 = vunpack.c.h.b16 %v2885
    %v3459 = vunpack.c.l.b16 %v2886
    %v3460 = vunpack.c.h.b16 %v2886
    %v3461 = vunpack.c.l.b16 %v2887
    %v3462 = vunpack.c.h.b16 %v2887
    %v3463 = vunpack.c.l.b16 %v2888
    %v3464 = vunpack.c.h.b16 %v2888
    %v3465 = vunpack.c.l.b16 %v2889
    %v3466 = vunpack.c.h.b16 %v2889
    %v3467 = vunpack.c.l.b16 %v2890
    %v3468 = vunpack.c.h.b16 %v2890
    %v3469 = vunpack.c.l.b16 %v2891
    %v3470 = vunpack.c.h.b16 %v2891
    %v3471 = vunpack.c.l.b16 %v2892
    %v3472 = vunpack.c.h.b16 %v2892
    %v3473 = vunpack.c.l.b16 %v2893
    %v3474 = vunpack.c.h.b16 %v2893
    %v3475 = vunpack.c.l.b16 %v2894
    %v3476 = vunpack.c.h.b16 %v2894
    %v3477 = vunpack.c.l.b16 %v2895
    %v3478 = vunpack.c.h.b16 %v2895
    %v3479 = vunpack.c.l.b16 %v2896
    %v3480 = vunpack.c.h.b16 %v2896
    %v3481 = vunpack.c.l.b16 %v2897
    %v3482 = vunpack.c.h.b16 %v2897
    %v3483 = vunpack.c.l.b16 %v2898
    %v3484 = vunpack.c.h.b16 %v2898
    %v3485 = vunpack.c.l.b16 %v2899
    %v3486 = vunpack.c.h.b16 %v2899
    %v3487 = vunpack.c.l.b16 %v2900
    %v3488 = vunpack.c.h.b16 %v2900
    %v3489 = vunpack.c.l.b16 %v2901
    %v3490 = vunpack.c.h.b16 %v2901
    %v3491 = vunpack.c.l.b16 %v2902
    %v3492 = vunpack.c.h.b16 %v2902
    %v3493 = vunpack.c.l.b16 %v2903
    %v3494 = vunpack.c.h.b16 %v2903
    %v3495 = vunpack.c.l.b16 %v2904
    %v3496 = vunpack.c.h.b16 %v2904
    %v3497 = vunpack.c.l.b16 %v2905
    %v3498 = vunpack.c.h.b16 %v2905
    %v3499 = vunpack.c.l.b16 %v2906
    %v3500 = vunpack.c.h.b16 %v2906
    %v3501 = vunpack.c.l.b16 %v2907
    %v3502 = vunpack.c.h.b16 %v2907
    %v3503 = vunpack.c.l.b16 %v2908
    %v3504 = vunpack.c.h.b16 %v2908
    %v3505 = vunpack.c.l.b16 %v2909
    %v3506 = vunpack.c.h.b16 %v2909
    %v3507 = vunpack.c.l.b16 %v2910
    %v3508 = vunpack.c.h.b16 %v2910
    %v3509 = vunpack.c.l.b16 %v2911
    %v3510 = vunpack.c.h.b16 %v2911
    %v3511 = vunpack.c.l.b16 %v2912
    %v3512 = vunpack.c.h.b16 %v2912
    %v3513 = vunpack.c.l.b16 %v2913
    %v3514 = vunpack.c.h.b16 %v2913
    %v3515 = vunpack.c.l.b16 %v2914
    %v3516 = vunpack.c.h.b16 %v2914
    %v3517 = vunpack.c.l.b16 %v2915
    %v3518 = vunpack.c.h.b16 %v2915
    %v3519 = vunpack.c.l.b16 %v2916
    %v3520 = vunpack.c.h.b16 %v2916
    %v3521 = vunpack.c.l.b16 %v2917
    %v3522 = vunpack.c.h.b16 %v2917
    %v3523 = vunpack.c.l.b16 %v2918
    %v3524 = vunpack.c.h.b16 %v2918
    %v3525 = vunpack.c.l.b16 %v2919
    %v3526 = vunpack.c.h.b16 %v2919
    %v3527 = vunpack.c.l.b16 %v2920
    %v3528 = vunpack.c.h.b16 %v2920
    %v3529 = vunpack.c.l.b16 %v2921
    %v3530 = vunpack.c.h.b16 %v2921
    %v3531 = vunpack.c.l.b16 %v2922
    %v3532 = vunpack.c.h.b16 %v2922
    %v3533 = vunpack.c.l.b16 %v2923
    %v3534 = vunpack.c.h.b16 %v2923
    %v3535 = vunpack.c.l.b16 %v2924
    %v3536 = vunpack.c.h.b16 %v2924
    %v3537 = vunpack.c.l.b16 %v2925
    %v3538 = vunpack.c.h.b16 %v2925
    %v3539 = vunpack.c.l.b16 %v2926
    %v3540 = vunpack.c.h.b16 %v2926
    %v3541 = vunpack.c.l.b16 %v2927
    %v3542 = vunpack.c.h.b16 %v2927
    %v3543 = vunpack.c.l.b16 %v2928
    %v3544 = vunpack.c.h.b16 %v2928
    %v3545 = vunpack.c.l.b16 %v2929
    %v3546 = vunpack.c.h.b16 %v2929
    %v3547 = vunpack.c.l.b16 %v2930
    %v3548 = vunpack.c.h.b16 %v2930
    %v3549 = vunpack.c.l.b16 %v2931
    %v3550 = vunpack.c.h.b16 %v2931
    %v3551 = vunpack.c.l.b16 %v2932
    %v3552 = vunpack.c.h.b16 %v2932
    %v3553 = vunpack.c.l.b16 %v2933
    %v3554 = vunpack.c.h.b16 %v2933
    %v3555 = vunpack.c.l.b16 %v2934
    %v3556 = vunpack.c.h.b16 %v2934
    %v3557 = vunpack.c.l.b16 %v2935
    %v3558 = vunpack.c.h.b16 %v2935
    %v3559 = vunpack.c.l.b16 %v2936
    %v3560 = vunpack.c.h.b16 %v2936
    %v3561 = vunpack.c.l.b16 %v2937
    %v3562 = vunpack.c.h.b16 %v2937
    %v3563 = vunpack.c.l.b16 %v2938
    %v3564 = vunpack.c.h.b16 %v2938
    %v3565 = vunpack.c.l.b16 %v2939
    %v3566 = vunpack.c.h.b16 %v2939
    %v3567 = vunpack.c.l.b16 %v2940
    %v3568 = vunpack.c.h.b16 %v2940
    %v3569 = vunpack.c.l.b16 %v2941
    %v3570 = vunpack.c.h.b16 %v2941
    %v3571 = vunpack.c.l.b16 %v2942
    %v3572 = vunpack.c.h.b16 %v2942
    %v3573 = vunpack.c.l.b16 %v2943
    %v3574 = vunpack.c.h.b16 %v2943
    %v3575 = vunpack.c.l.b16 %v2944
    %v3576 = vunpack.c.h.b16 %v2944
    %v3577 = vunpack.c.l.b16 %v2945
    %v3578 = vunpack.c.h.b16 %v2945
    %v3579 = vunpack.c.l.b16 %v2946
    %v3580 = vunpack.c.h.b16 %v2946
    %v3581 = vunpack.c.l.b16 %v2947
    %v3582 = vunpack.c.h.b16 %v2947
    %v3583 = vunpack.c.l.b16 %v2948
    %v3584 = vunpack.c.h.b16 %v2948
    %v3585 = vunpack.c.l.b16 %v2949
    %v3586 = vunpack.c.h.b16 %v2949
    %v3587 = vunpack.c.l.b16 %v2950
    %v3588 = vunpack.c.h.b16 %v2950
    %v3589 = vunpack.c.l.b16 %v2951
    %v3590 = vunpack.c.h.b16 %v2951
    %v3591 = vunpack.c.l.b16 %v2952
    %v3592 = vunpack.c.h.b16 %v2952
    %v3593 = vunpack.c.l.b16 %v2953
    %v3594 = vunpack.c.h.b16 %v2953
    %v3595 = vunpack.c.l.b16 %v2954
    %v3596 = vunpack.c.h.b16 %v2954
    %v3597 = vunpack.c.l.b16 %v2955
    %v3598 = vunpack.c.h.b16 %v2955
    %v3599 = vunpack.c.l.b16 %v2956
    %v3600 = vunpack.c.h.b16 %v2956
    %v3601 = vunpack.c.l.b16 %v2957
    %v3602 = vunpack.c.h.b16 %v2957
    %v3603 = vunpack.c.l.b16 %v2958
    %v3604 = vunpack.c.h.b16 %v2958
    %v3605 = vunpack.c.l.b16 %v2959
    %v3606 = vunpack.c.h.b16 %v2959
    %v3607 = vunpack.c.l.b16 %v2960
    %v3608 = vunpack.c.h.b16 %v2960
    %v3609 = vunpack.c.l.b16 %v2961
    %v3610 = vunpack.c.h.b16 %v2961
    %v3611 = vunpack.c.l.b16 %v2962
    %v3612 = vunpack.c.h.b16 %v2962
    %v3613 = vunpack.c.l.b16 %v2963
    %v3614 = vunpack.c.h.b16 %v2963
    %v3615 = vunpack.c.l.b16 %v2964
    %v3616 = vunpack.c.h.b16 %v2964
    %v3617 = vunpack.c.l.b16 %v2965
    %v3618 = vunpack.c.h.b16 %v2965
    %v3619 = vunpack.c.l.b16 %v2966
    %v3620 = vunpack.c.h.b16 %v2966
    %v3621 = vunpack.c.l.b16 %v2967
    %v3622 = vunpack.c.h.b16 %v2967
    %v3623 = vunpack.c.l.b16 %v2968
    %v3624 = vunpack.c.h.b16 %v2968
    %v3625 = vunpack.c.l.b16 %v2969
    %v3626 = vunpack.c.h.b16 %v2969
    %v3627 = vunpack.c.l.b16 %v2970
    %v3628 = vunpack.c.h.b16 %v2970
    %v3629 = vunpack.c.l.b16 %v2971
    %v3630 = vunpack.c.h.b16 %v2971
    %v3631 = vunpack.c.l.b16 %v2972
    %v3632 = vunpack.c.h.b16 %v2972
    %v3633 = vunpack.c.l.b16 %v2973
    %v3634 = vunpack.c.h.b16 %v2973
    %v3635 = vunpack.c.l.b16 %v2974
    %v3636 = vunpack.c.h.b16 %v2974
    %v3637 = vunpack.c.l.b16 %v2975
    %v3638 = vunpack.c.h.b16 %v2975
    %v3639 = vunpack.c.l.b16 %v2976
    %v3640 = vunpack.c.h.b16 %v2976
    %v3641 = vunpack.c.l.b16 %v2977
    %v3642 = vunpack.c.h.b16 %v2977
    %v3643 = vunpack.c.l.b16 %v2978
    %v3644 = vunpack.c.h.b16 %v2978
    %v3645 = vunpack.c.l.b16 %v2979
    %v3646 = vunpack.c.h.b16 %v2979
    %v3647 = vunpack.c.l.b16 %v2980
    %v3648 = vunpack.c.h.b16 %v2980
    %v3649 = vunpack.c.l.b16 %v2981
    %v3650 = vunpack.c.h.b16 %v2981
    %v3651 = vunpack.c.l.b16 %v2982
    %v3652 = vunpack.c.h.b16 %v2982
    %v3653 = vunpack.c.l.b16 %v2983
    %v3654 = vunpack.c.h.b16 %v2983
    %v3655 = vunpack.c.l.b16 %v2984
    %v3656 = vunpack.c.h.b16 %v2984
    %v3657 = vunpack.c.l.b16 %v2985
    %v3658 = vunpack.c.h.b16 %v2985
    %v3659 = vunpack.c.l.b16 %v2986
    %v3660 = vunpack.c.h.b16 %v2986
    %v3661 = vunpack.c.l.b16 %v2987
    %v3662 = vunpack.c.h.b16 %v2987
    %v3663 = vunpack.c.l.b16 %v2988
    %v3664 = vunpack.c.h.b16 %v2988
    %v3665 = vunpack.c.l.b16 %v2989
    %v3666 = vunpack.c.h.b16 %v2989
    %v3667 = vunpack.c.l.b16 %v2990
    %v3668 = vunpack.c.h.b16 %v2990
    %v3669 = vunpack.c.l.b16 %v2991
    %v3670 = vunpack.c.h.b16 %v2991
    %v3671 = vunpack.c.l.b16 %v2992
    %v3672 = vunpack.c.h.b16 %v2992
    %v3673 = vunpack.c.l.b16 %v2993
    %v3674 = vunpack.c.h.b16 %v2993
    %v3675 = vunpack.c.l.b16 %v2994
    %v3676 = vunpack.c.h.b16 %v2994
    %v3677 = vunpack.c.l.b16 %v2995
    %v3678 = vunpack.c.h.b16 %v2995
    %v3679 = vunpack.c.l.b16 %v2996
    %v3680 = vunpack.c.h.b16 %v2996
    %v3681 = vunpack.c.l.b16 %v2997
    %v3682 = vunpack.c.h.b16 %v2997
    %v3683 = vunpack.c.l.b16 %v2998
    %v3684 = vunpack.c.h.b16 %v2998
    %v3685 = vunpack.c.l.b16 %v2999
    %v3686 = vunpack.c.h.b16 %v2999
    %v3687 = vunpack.c.l.b16 %v3000
    %v3688 = vunpack.c.h.b16 %v3000
    %v3689 = vunpack.c.l.b16 %v3001
    %v3690 = vunpack.c.h.b16 %v3001
    %v3691 = vunpack.c.l.b16 %v3002
    %v3692 = vunpack.c.h.b16 %v3002
    %v3693 = vunpack.c.l.b16 %v3003
    %v3694 = vunpack.c.h.b16 %v3003
    %v3695 = vunpack.c.l.b16 %v3004
    %v3696 = vunpack.c.h.b16 %v3004
    %v3697 = vunpack.c.l.b16 %v3005
    %v3698 = vunpack.c.h.b16 %v3005
    %v3699 = vunpack.c.l.b16 %v3006
    %v3700 = vunpack.c.h.b16 %v3006
    %v3701 = vunpack.c.l.b16 %v3007
    %v3702 = vunpack.c.h.b16 %v3007
    %v3703 = vunpack.c.l.b16 %v3008
    %v3704 = vunpack.c.h.b16 %v3008
    %v3705 = vunpack.c.l.b16 %v3009
    %v3706 = vunpack.c.h.b16 %v3009
    %v3707 = vunpack.c.l.b16 %v3010
    %v3708 = vunpack.c.h.b16 %v3010
    %v3709 = vunpack.c.l.b16 %v3011
    %v3710 = vunpack.c.h.b16 %v3011
    %v3711 = vunpack.c.l.b16 %v3012
    %v3712 = vunpack.c.h.b16 %v3012
    %v3713 = vunpack.c.l.b16 %v3013
    %v3714 = vunpack.c.h.b16 %v3013
    %v3715 = vunpack.c.l.b16 %v3014
    %v3716 = vunpack.c.h.b16 %v3014
    %v3717 = vunpack.c.l.b16 %v3015
    %v3718 = vunpack.c.h.b16 %v3015
    %v3719 = vunpack.c.l.b16 %v3016
    %v3720 = vunpack.c.h.b16 %v3016
    %v3721 = vunpack.c.l.b16 %v3017
    %v3722 = vunpack.c.h.b16 %v3017
    %v3723 = vunpack.c.l.b16 %v3018
    %v3724 = vunpack.c.h.b16 %v3018
    %v3725 = vunpack.c.l.b16 %v3019
    %v3726 = vunpack.c.h.b16 %v3019
    %v3727 = vunpack.c.l.b16 %v3020
    %v3728 = vunpack.c.h.b16 %v3020
    %v3729 = vunpack.c.l.b16 %v3021
    %v3730 = vunpack.c.h.b16 %v3021
    %v3731 = vunpack.c.l.b16 %v3022
    %v3732 = vunpack.c.h.b16 %v3022
    %v3733 = vunpack.c.l.b16 %v3023
    %v3734 = vunpack.c.h.b16 %v3023
    %v3735 = vunpack.c.l.b16 %v3024
    %v3736 = vunpack.c.h.b16 %v3024
    %v3737 = vunpack.c.l.b16 %v3025
    %v3738 = vunpack.c.h.b16 %v3025
    %v3739 = vunpack.c.l.b16 %v3026
    %v3740 = vunpack.c.h.b16 %v3026
    %v3741 = vunpack.c.l.b16 %v3027
    %v3742 = vunpack.c.h.b16 %v3027
    %v3743 = vunpack.c.l.b16 %v3028
    %v3744 = vunpack.c.h.b16 %v3028
    %v3745 = vunpack.c.l.b16 %v3029
    %v3746 = vunpack.c.h.b16 %v3029
    %v3747 = vunpack.c.l.b16 %v3030
    %v3748 = vunpack.c.h.b16 %v3030
    %v3749 = vunpack.c.l.b16 %v3031
    %v3750 = vunpack.c.h.b16 %v3031
    %v3751 = vunpack.c.l.b16 %v3032
    %v3752 = vunpack.c.h.b16 %v3032
    %v3753 = vunpack.c.l.b16 %v3033
    %v3754 = vunpack.c.h.b16 %v3033
    %v3755 = vunpack.c.l.b16 %v3034
    %v3756 = vunpack.c.h.b16 %v3034
    %v3757 = vunpack.c.l.b16 %v3035
    %v3758 = vunpack.c.h.b16 %v3035
    %v3759 = vunpack.c.l.b16 %v3036
    %v3760 = vunpack.c.h.b16 %v3036
    %v3761 = vunpack.c.l.b16 %v3037
    %v3762 = vunpack.c.h.b16 %v3037
    %v3763 = vunpack.c.l.b16 %v3038
    %v3764 = vunpack.c.h.b16 %v3038
    %v3765 = vunpack.c.l.b16 %v3039
    %v3766 = vunpack.c.h.b16 %v3039
    %v3767 = vunpack.c.l.b16 %v3040
    %v3768 = vunpack.c.h.b16 %v3040
    %v3769 = vunpack.c.l.b16 %v3041
    %v3770 = vunpack.c.h.b16 %v3041
    %v3771 = vunpack.c.l.b16 %v3042
    %v3772 = vunpack.c.h.b16 %v3042
    %v3773 = vunpack.c.l.b16 %v3043
    %v3774 = vunpack.c.h.b16 %v3043
    %v3775 = vunpack.c.l.b16 %v3044
    %v3776 = vunpack.c.h.b16 %v3044
    %v3777 = vunpack.c.l.b16 %v3045
    %v3778 = vunpack.c.h.b16 %v3045
    %v3779 = vunpack.c.l.b16 %v3046
    %v3780 = vunpack.c.h.b16 %v3046
    %v3781 = vunpack.c.l.b16 %v3047
    %v3782 = vunpack.c.h.b16 %v3047
    %v3783 = vunpack.c.l.b16 %v3048
    %v3784 = vunpack.c.h.b16 %v3048
    %v3785 = vunpack.c.l.b16 %v3049
    %v3786 = vunpack.c.h.b16 %v3049
    %v3787 = vunpack.c.l.b16 %v3050
    %v3788 = vunpack.c.h.b16 %v3050
    %v3789 = vunpack.c.l.b16 %v3051
    %v3790 = vunpack.c.h.b16 %v3051
    %v3791 = vunpack.c.l.b16 %v3052
    %v3792 = vunpack.c.h.b16 %v3052
    %v3793 = vunpack.c.l.b16 %v3053
    %v3794 = vunpack.c.h.b16 %v3053
    %v3795 = vunpack.c.l.b16 %v3054
    %v3796 = vunpack.c.h.b16 %v3054
    %v3797 = vunpack.c.l.b16 %v3055
    %v3798 = vunpack.c.h.b16 %v3055
    %v3799 = vunpack.c.l.b16 %v3056
    %v3800 = vunpack.c.h.b16 %v3056
    %v3801 = vunpack.c.l.b16 %v3057
    %v3802 = vunpack.c.h.b16 %v3057
    %v3803 = vunpack.c.l.b16 %v3058
    %v3804 = vunpack.c.h.b16 %v3058
    %v3805 = vunpack.c.l.b16 %v3059
    %v3806 = vunpack.c.h.b16 %v3059
    %v3807 = vunpack.c.l.b16 %v3060
    %v3808 = vunpack.c.h.b16 %v3060
    %v3809 = vunpack.c.l.b16 %v3061
    %v3810 = vunpack.c.h.b16 %v3061
    %v3811 = vunpack.c.l.b16 %v3062
    %v3812 = vunpack.c.h.b16 %v3062
    %v3813 = vunpack.c.l.b16 %v3063
    %v3814 = vunpack.c.h.b16 %v3063
    %v3815 = vunpack.c.l.b16 %v3064
    %v3816 = vunpack.c.h.b16 %v3064
    %v3817 = vunpack.c.l.b16 %v3065
    %v3818 = vunpack.c.h.b16 %v3065
    %v3819 = vunpack.c.l.b16 %v3066
    %v3820 = vunpack.c.h.b16 %v3066
    %v3821 = vunpack.c.l.b16 %v3067
    %v3822 = vunpack.c.h.b16 %v3067
    %v3823 = vunpack.c.l.b16 %v3068
    %v3824 = vunpack.c.h.b16 %v3068
    %v3825 = vunpack.c.l.b16 %v3069
    %v3826 = vunpack.c.h.b16 %v3069
    %v3827 = vunpack.c.l.b16 %v3070
    %v3828 = vunpack.c.h.b16 %v3070
    %v3829 = vunpack.c.l.b16 %v3071
    %v3830 = vunpack.c.h.b16 %v3071
    %v3831 = vunpack.c.l.b16 %v3072
    %v3832 = vunpack.c.h.b16 %v3072
    %v3833 = vunpack.c.l.b16 %v3073
    %v3834 = vunpack.c.h.b16 %v3073
    %v3835 = vunpack.c.l.b16 %v3074
    %v3836 = vunpack.c.h.b16 %v3074
    %v3837 = vunpack.c.l.b16 %v3075
    %v3838 = vunpack.c.h.b16 %v3075
    %v3839 = vunpack.c.l.b16 %v3076
    %v3840 = vunpack.c.h.b16 %v3076
    %v3841 = vunpack.c.l.b16 %v3077
    %v3842 = vunpack.c.h.b16 %v3077
    %v3843 = vunpack.c.l.b16 %v3078
    %v3844 = vunpack.c.h.b16 %v3078
    %v3845 = vunpack.c.l.b16 %v3079
    %v3846 = vunpack.c.h.b16 %v3079
    %v3847 = vunpack.c.l.b16 %v3080
    %v3848 = vunpack.c.h.b16 %v3080
    %v3849 = vunpack.c.l.b16 %v3081
    %v3850 = vunpack.c.h.b16 %v3081
    %v3851 = vunpack.c.l.b16 %v3082
    %v3852 = vunpack.c.h.b16 %v3082
    %v3853 = vunpack.c.l.b16 %v3083
    %v3854 = vunpack.c.h.b16 %v3083
    %v3855 = vunpack.c.l.b16 %v3084
    %v3856 = vunpack.c.h.b16 %v3084
    %v3857 = vunpack.c.l.b16 %v3085
    %v3858 = vunpack.c.h.b16 %v3085
    %v3859 = vunpack.c.l.b16 %v3086
    %v3860 = vunpack.c.h.b16 %v3086
    %v3861 = vunpack.c.l.b16 %v3087
    %v3862 = vunpack.c.h.b16 %v3087
    %v3863 = vunpack.c.l.b16 %v3088
    %v3864 = vunpack.c.h.b16 %v3088
    %v3865 = vunpack.c.l.b16 %v3089
    %v3866 = vunpack.c.h.b16 %v3089
    %v3867 = vunpack.c.l.b16 %v3090
    %v3868 = vunpack.c.h.b16 %v3090
    %v3869 = vunpack.c.l.b16 %v3091
    %v3870 = vunpack.c.h.b16 %v3091
    %v3871 = vunpack.c.l.b16 %v3092
    %v3872 = vunpack.c.h.b16 %v3092
    %v3873 = vunpack.c.l.b16 %v3093
    %v3874 = vunpack.c.h.b16 %v3093
    %v3875 = vunpack.c.l.b16 %v3094
    %v3876 = vunpack.c.h.b16 %v3094
    %v3877 = vunpack.c.l.b16 %v3095
    %v3878 = vunpack.c.h.b16 %v3095
    %v3879 = vunpack.c.l.b16 %v3096
    %v3880 = vunpack.c.h.b16 %v3096
    %v3881 = vunpack.c.l.b16 %v3097
    %v3882 = vunpack.c.h.b16 %v3097
    %v3883 = vunpack.c.l.b16 %v3098
    %v3884 = vunpack.c.h.b16 %v3098
    %v3885 = vunpack.c.l.b16 %v3099
    %v3886 = vunpack.c.h.b16 %v3099
    %v3887 = vunpack.c.l.b16 %v3100
    %v3888 = vunpack.c.h.b16 %v3100
    %v3889 = vunpack.c.l.b16 %v3101
    %v3890 = vunpack.c.h.b16 %v3101
    %v3891 = vunpack.c.l.b16 %v3102
    %v3892 = vunpack.c.h.b16 %v3102
    %v3893 = vpack.c.b16 %v3385, %v3381
    %v3894 = vpack.c.b16 %v3386, %v3382
    %v3895 = vpack.c.b16 %v3387, %v3383
    %v3896 = vpack.c.b16 %v3388, %v3384
    %v3897 = vpack.c.b16 %v3393, %v3389
    %v3898 = vpack.c.b16 %v3394, %v3390
    %v3899 = vpack.c.b16 %v3395, %v3391
    %v3900 = vpack.c.b16 %v3396, %v3392
    %v3901 = vpack.c.b16 %v3401, %v3397
    %v3902 = vpack.c.b16 %v3402, %v3398
    %v3903 = vpack.c.b16 %v3403, %v3399
    %v3904 = vpack.c.b16 %v3404, %v3400
    %v3905 = vpack.c.b16 %v3409, %v3405
    %v3906 = vpack.c.b16 %v3410, %v3406
    %v3907 = vpack.c.b16 %v3411, %v3407
    %v3908 = vpack.c.b16 %v3412, %v3408
    %v3909 = vpack.c.b16 %v3417, %v3413
    %v3910 = vpack.c.b16 %v3418, %v3414
    %v3911 = vpack.c.b16 %v3419, %v3415
    %v3912 = vpack.c.b16 %v3420, %v3416
    %v3913 = vpack.c.b16 %v3425, %v3421
    %v3914 = vpack.c.b16 %v3426, %v3422
    %v3915 = vpack.c.b16 %v3427, %v3423
    %v3916 = vpack.c.b16 %v3428, %v3424
    %v3917 = vpack.c.b16 %v3433, %v3429
    %v3918 = vpack.c.b16 %v3434, %v3430
    %v3919 = vpack.c.b16 %v3435, %v3431
    %v3920 = vpack.c.b16 %v3436, %v3432
    %v3921 = vpack.c.b16 %v3441, %v3437
    %v3922 = vpack.c.b16 %v3442, %v3438
    %v3923 = vpack.c.b16 %v3443, %v3439
    %v3924 = vpack.c.b16 %v3444, %v3440
    %v3925 = vpack.c.b16 %v3449, %v3445
    %v3926 = vpack.c.b16 %v3450, %v3446
    %v3927 = vpack.c.b16 %v3451, %v3447
    %v3928 = vpack.c.b16 %v3452, %v3448
    %v3929 = vpack.c.b16 %v3457, %v3453
    %v3930 = vpack.c.b16 %v3458, %v3454
    %v3931 = vpack.c.b16 %v3459, %v3455
    %v3932 = vpack.c.b16 %v3460, %v3456
    %v3933 = vpack.c.b16 %v3465, %v3461
    %v3934 = vpack.c.b16 %v3466, %v3462
    %v3935 = vpack.c.b16 %v3467, %v3463
    %v3936 = vpack.c.b16 %v3468, %v3464
    %v3937 = vpack.c.b16 %v3473, %v3469
    %v3938 = vpack.c.b16 %v3474, %v3470
    %v3939 = vpack.c.b16 %v3475, %v3471
    %v3940 = vpack.c.b16 %v3476, %v3472
    %v3941 = vpack.c.b16 %v3481, %v3477
    %v3942 = vpack.c.b16 %v3482, %v3478
    %v3943 = vpack.c.b16 %v3483, %v3479
    %v3944 = vpack.c.b16 %v3484, %v3480
    %v3945 = vpack.c.b16 %v3489, %v3485
    %v3946 = vpack.c.b16 %v3490, %v3486
    %v3947 = vpack.c.b16 %v3491, %v3487
    %v3948 = vpack.c.b16 %v3492, %v3488
    %v3949 = vpack.c.b16 %v3497, %v3493
    %v3950 = vpack.c.b16 %v3498, %v3494
    %v3951 = vpack.c.b16 %v3499, %v3495
    %v3952 = vpack.c.b16 %v3500, %v3496
    %v3953 = vpack.c.b16 %v3505, %v3501
    %v3954 = vpack.c.b16 %v3506, %v3502
    %v3955 = vpack.c.b16 %v3507, %v3503
    %v3956 = vpack.c.b16 %v3508, %v3504
    %v3957 = vpack.c.b16 %v3513, %v3509
    %v3958 = vpack.c.b16 %v3514, %v3510
    %v3959 = vpack.c.b16 %v3515, %v3511
    %v3960 = vpack.c.b16 %v3516, %v3512
    %v3961 = vpack.c.b16 %v3521, %v3517
    %v3962 = vpack.c.b16 %v3522, %v3518
    %v3963 = vpack.c.b16 %v3523, %v3519
    %v3964 = vpack.c.b16 %v3524, %v3520
    %v3965 = vpack.c.b16 %v3529, %v3525
    %v3966 = vpack.c.b16 %v3530, %v3526
    %v3967 = vpack.c.b16 %v3531, %v3527
    %v3968 = vpack.c.b16 %v3532, %v3528
    %v3969 = vpack.c.b16 %v3537, %v3533
    %v3970 = vpack.c.b16 %v3538, %v3534
    %v3971 = vpack.c.b16 %v3539, %v3535
    %v3972 = vpack.c.b16 %v3540, %v3536
    %v3973 = vpack.c.b16 %v3545, %v3541
    %v3974 = vpack.c.b16 %v3546, %v3542
    %v3975 = vpack.c.b16 %v3547, %v3543
    %v3976 = vpack.c.b16 %v3548, %v3544
    %v3977 = vpack.c.b16 %v3553, %v3549
    %v3978 = vpack.c.b16 %v3554, %v3550
    %v3979 = vpack.c.b16 %v3555, %v3551
    %v3980 = vpack.c.b16 %v3556, %v3552
    %v3981 = vpack.c.b16 %v3561, %v3557
    %v3982 = vpack.c.b16 %v3562, %v3558
    %v3983 = vpack.c.b16 %v3563, %v3559
    %v3984 = vpack.c.b16 %v3564, %v3560
    %v3985 = vpack.c.b16 %v3569, %v3565
    %v3986 = vpack.c.b16 %v3570, %v3566
    %v3987 = vpack.c.b16 %v3571, %v3567
    %v3988 = vpack.c.b16 %v3572, %v3568
    %v3989 = vpack.c.b16 %v3577, %v3573
    %v3990 = vpack.c.b16 %v3578, %v3574
    %v3991 = vpack.c.b16 %v3579, %v3575
    %v3992 = vpack.c.b16 %v3580, %v3576
    %v3993 = vpack.c.b16 %v3585, %v3581
    %v3994 = vpack.c.b16 %v3586, %v3582
    %v3995 = vpack.c.b16 %v3587, %v3583
    %v3996 = vpack.c.b16 %v3588, %v3584
    %v3997 = vpack.c.b16 %v3593, %v3589
    %v3998 = vpack.c.b16 %v3594, %v3590
    %v3999 = vpack.c.b16 %v3595, %v3591
    %v4000 = vpack.c.b16 %v3596, %v3592
    %v4001 = vpack.c.b16 %v3601, %v3597
    %v4002 = vpack.c.b16 %v3602, %v3598
    %v4003 = vpack.c.b16 %v3603, %v3599
    %v4004 = vpack.c.b16 %v3604, %v3600
    %v4005 = vpack.c.b16 %v3609, %v3605
    %v4006 = vpack.c.b16 %v3610, %v3606
    %v4007 = vpack.c.b16 %v3611, %v3607
    %v4008 = vpack.c.b16 %v3612, %v3608
    %v4009 = vpack.c.b16 %v3617, %v3613
    %v4010 = vpack.c.b16 %v3618, %v3614
    %v4011 = vpack.c.b16 %v3619, %v3615
    %v4012 = vpack.c.b16 %v3620, %v3616
    %v4013 = vpack.c.b16 %v3625, %v3621
    %v4014 = vpack.c.b16 %v3626, %v3622
    %v4015 = vpack.c.b16 %v3627, %v3623
    %v4016 = vpack.c.b16 %v3628, %v3624
    %v4017 = vpack.c.b16 %v3633, %v3629
    %v4018 = vpack.c.b16 %v3634, %v3630
    %v4019 = vpack.c.b16 %v3635, %v3631
    %v4020 = vpack.c.b16 %v3636, %v3632
    %v4021 = vpack.c.b16 %v3641, %v3637
    %v4022 = vpack.c.b16 %v3642, %v3638
    %v4023 = vpack.c.b16 %v3643, %v3639
    %v4024 = vpack.c.b16 %v3644, %v3640
    %v4025 = vpack.c.b16 %v3649, %v3645
    %v4026 = vpack.c.b16 %v3650, %v3646
    %v4027 = vpack.c.b16 %v3651, %v3647
    %v4028 = vpack.c.b16 %v3652, %v3648
    %v4029 = vpack.c.b16 %v3657, %v3653
    %v4030 = vpack.c.b16 %v3658, %v3654
    %v4031 = vpack.c.b16 %v3659, %v3655
    %v4032 = vpack.c.b16 %v3660, %v3656
    %v4033 = vpack.c.b16 %v3665, %v3661
    %v4034 = vpack.c.b16 %v3666, %v3662
    %v4035 = vpack.c.b16 %v3667, %v3663
    %v4036 = vpack.c.b16 %v3668, %v3664
    %v4037 = vpack.c.b16 %v3673, %v3669
    %v4038 = vpack.c.b16 %v3674, %v3670
    %v4039 = vpack.c.b16 %v3675, %v3671
    %v4040 = vpack.c.b16 %v3676, %v3672
    %v4041 = vpack.c.b16 %v3681, %v3677
    %v4042 = vpack.c.b16 %v3682, %v3678
    %v4043 = vpack.c.b16 %v3683, %v3679
    %v4044 = vpack.c.b16 %v3684, %v3680
    %v4045 = vpack.c.b16 %v3689, %v3685
    %v4046 = vpack.c.b16 %v3690, %v3686
    %v4047 = vpack.c.b16 %v3691, %v3687
    %v4048 = vpack.c.b16 %v3692, %v3688
    %v4049 = vpack.c.b16 %v3697, %v3693
    %v4050 = vpack.c.b16 %v3698, %v3694
    %v4051 = vpack.c.b16 %v3699, %v3695
    %v4052 = vpack.c.b16 %v3700, %v3696
    %v4053 = vpack.c.b16 %v3705, %v3701
    %v4054 = vpack.c.b16 %v3706, %v3702
    %v4055 = vpack.c.b16 %v3707, %v3703
    %v4056 = vpack.c.b16 %v3708, %v3704
    %v4057 = vpack.c.b16 %v3713, %v3709
    %v4058 = vpack.c.b16 %v3714, %v3710
    %v4059 = vpack.c.b16 %v3715, %v3711
    %v4060 = vpack.c.b16 %v3716, %v3712
    %v4061 = vpack.c.b16 %v3721, %v3717
    %v4062 = vpack.c.b16 %v3722, %v3718
    %v4063 = vpack.c.b16 %v3723, %v3719
    %v4064 = vpack.c.b16 %v3724, %v3720
    %v4065 = vpack.c.b16 %v3729, %v3725
    %v4066 = vpack.c.b16 %v3730, %v3726
    %v4067 = vpack.c.b16 %v3731, %v3727
    %v4068 = vpack.c.b16 %v3732, %v3728
    %v4069 = vpack.c.b16 %v3737, %v3733
    %v4070 = vpack.c.b16 %v3738, %v3734
    %v4071 = vpack.c.b16 %v3739, %v3735
    %v4072 = vpack.c.b16 %v3740, %v3736
    %v4073 = vpack.c.b16 %v3745, %v3741
    %v4074 = vpack.c.b16 %v3746, %v3742
    %v4075 = vpack.c.b16 %v3747, %v3743
    %v4076 = vpack.c.b16 %v3748, %v3744
    %v4077 = vpack.c.b16 %v3753, %v3749
    %v4078 = vpack.c.b16 %v3754, %v3750
    %v4079 = vpack.c.b16 %v3755, %v3751
    %v4080 = vpack.c.b16 %v3756, %v3752
    %v4081 = vpack.c.b16 %v3761, %v3757
    %v4082 = vpack.c.b16 %v3762, %v3758
    %v4083 = vpack.c.b16 %v3763, %v3759
    %v4084 = vpack.c.b16 %v3764, %v3760
    %v4085 = vpack.c.b16 %v3769, %v3765
    %v4086 = vpack.c.b16 %v3770, %v3766
    %v4087 = vpack.c.b16 %v3771, %v3767
    %v4088 = vpack.c.b16 %v3772, %v3768
    %v4089 = vpack.c.b16 %v3777, %v3773
    %v4090 = vpack.c.b16 %v3778, %v3774
    %v4091 = vpack.c.b16 %v3779, %v3775
    %v4092 = vpack.c.b16 %v3780, %v3776
    %v4093 = vpack.c.b16 %v3785, %v3781
    %v4094 = vpack.c.b16 %v3786, %v3782
    %v4095 = vpack.c.b16 %v3787, %v3783
    %v4096 = vpack.c.b16 %v3788, %v3784
    %v4097 = vpack.c.b16 %v3793, %v3789
    %v4098 = vpack.c.b16 %v3794, %v3790
    %v4099 = vpack.c.b16 %v3795, %v3791
    %v4100 = vpack.c.b16 %v3796, %v3792
    %v4101 = vpack.c.b16 %v3801, %v3797
    %v4102 = vpack.c.b16 %v3802, %v3798
    %v4103 = vpack.c.b16 %v3803, %v3799
    %v4104 = vpack.c.b16 %v3804, %v3800
    %v4105 = vpack.c.b16 %v3809, %v3805
    %v4106 = vpack.c.b16 %v3810, %v3806
    %v4107 = vpack.c.b16 %v3811, %v3807
    %v4108 = vpack.c.b16 %v3812, %v3808
    %v4109 = vpack.c.b16 %v3817, %v3813
    %v4110 = vpack.c.b16 %v3818, %v3814
    %v4111 = vpack.c.b16 %v3819, %v3815
    %v4112 = vpack.c.b16 %v3820, %v3816
    %v4113 = vpack.c.b16 %v3825, %v3821
    %v4114 = vpack.c.b16 %v3826, %v3822
    %v4115 = vpack.c.b16 %v3827, %v3823
    %v4116 = vpack.c.b16 %v3828, %v3824
    %v4117 = vpack.c.b16 %v3833, %v3829
    %v4118 = vpack.c.b16 %v3834, %v3830
    %v4119 = vpack.c.b16 %v3835, %v3831
    %v4120 = vpack.c.b16 %v3836, %v3832
    %v4121 = vpack.c.b16 %v3841, %v3837
    %v4122 = vpack.c.b16 %v3842, %v3838
    %v4123 = vpack.c.b16 %v3843, %v3839
    %v4124 = vpack.c.b16 %v3844, %v3840
    %v4125 = vpack.c.b16 %v3849, %v3845
    %v4126 = vpack.c.b16 %v3850, %v3846
    %v4127 = vpack.c.b16 %v3851, %v3847
    %v4128 = vpack.c.b16 %v3852, %v3848
    %v4129 = vpack.c.b16 %v3857, %v3853
    %v4130 = vpack.c.b16 %v3858, %v3854
    %v4131 = vpack.c.b16 %v3859, %v3855
    %v4132 = vpack.c.b16 %v3860, %v3856
    %v4133 = vpack.c.b16 %v3865, %v3861
    %v4134 = vpack.c.b16 %v3866, %v3862
    %v4135 = vpack.c.b16 %v3867, %v3863
    %v4136 = vpack.c.b16 %v3868, %v3864
    %v4137 = vpack.c.b16 %v3873, %v3869
    %v4138 = vpack.c.b16 %v3874, %v3870
    %v4139 = vpack.c.b16 %v3875, %v3871
    %v4140 = vpack.c.b16 %v3876, %v3872
    %v4141 = vpack.c.b16 %v3881, %v3877
    %v4142 = vpack.c.b16 %v3882, %v3878
    %v4143 = vpack.c.b16 %v3883, %v3879
    %v4144 = vpack.c.b16 %v3884, %v3880
    %v4145 = vpack.c.b16 %v3889, %v3885
    %v4146 = vpack.c.b16 %v3890, %v3886
    %v4147 = vpack.c.b16 %v3891, %v3887
    %v4148 = vpack.c.b16 %v3892, %v3888
    %4405 = vmatprep.subr.bf16.mxu0 %v3894
    %4406 = vmatpush1.bf16.msra.mxu0 %v3893
    %4407 = vmatprep.subr.bf16.mxu0 %v3898
    %4408 = vmatpush1.bf16.msra.mxu0 %v3897
    %4409 = vmatprep.subr.bf16.mxu0 %v3902
    %4410 = vmatpush1.bf16.msra.mxu0 %v3901
    %4411 = vmatprep.subr.bf16.mxu0 %v3906
    %4412 = vmatpush1.bf16.msra.mxu0 %v3905
    %4413 = vmatprep.subr.bf16.mxu0 %v3910
    %4414 = vmatpush1.bf16.msra.mxu0 %v3909
    %4415 = vmatprep.subr.bf16.mxu0 %v3914
    %4416 = vmatpush1.bf16.msra.mxu0 %v3913
    %4417 = vmatprep.subr.bf16.mxu0 %v3918
    %4418 = vmatpush1.bf16.msra.mxu0 %v3917
    %4419 = vmatprep.subr.bf16.mxu0 %v3922
    %4420 = vmatpush1.bf16.msra.mxu0 %v3921
    %4421 = vmatprep.subr.bf16.mxu0 %v3926
    %4422 = vmatpush1.bf16.msra.mxu0 %v3925
    %4423 = vmatprep.subr.bf16.mxu0 %v3930
    %4424 = vmatpush1.bf16.msra.mxu0 %v3929
    %4425 = vmatprep.subr.bf16.mxu0 %v3934
    %4426 = vmatpush1.bf16.msra.mxu0 %v3933
    %4427 = vmatprep.subr.bf16.mxu0 %v3938
    %4428 = vmatpush1.bf16.msra.mxu0 %v3937
    %4429 = vmatprep.subr.bf16.mxu0 %v3942
    %4430 = vmatpush1.bf16.msra.mxu0 %v3941
    %4431 = vmatprep.subr.bf16.mxu0 %v3946
    %4432 = vmatpush1.bf16.msra.mxu0 %v3945
    %4433 = vmatprep.subr.bf16.mxu0 %v3950
    %4434 = vmatpush1.bf16.msra.mxu0 %v3949
    %4435 = vmatprep.subr.bf16.mxu0 %v3954
    %4436 = vmatpush1.bf16.msra.mxu0 %v3953
    %4437 = vmatprep.mubr.bf16.mxu0 %v2698
    %4438 = vmatmul.mubr.bf16.gmra.mrb[0].mxu0 %v2697
    %v4439 = vpop.f32.mrb[0].mxu0
    %v4440 = vadd.f32 %v3108, %v4439
    %v4441 = vpop.f32.mrb[0].mxu0
    %v4442 = vadd.f32 %v3112, %v4441
    %v4443 = vpop.f32.mrb[0].mxu0
    %v4444 = vpop.f32.mrb[0].mxu0
    %4445 = vdwg.mxu0
    %4446 = vmatprep.subr.bf16.mxu0 %v3958
    %4447 = vmatpush1.bf16.msra.mxu0 %v3957
    %4448 = vmatprep.subr.bf16.mxu0 %v3962
    %4449 = vmatpush1.bf16.msra.mxu0 %v3961
    %4450 = vmatprep.subr.bf16.mxu0 %v3966
    %4451 = vmatpush1.bf16.msra.mxu0 %v3965
    %4452 = vmatprep.subr.bf16.mxu0 %v3970
    %4453 = vmatpush1.bf16.msra.mxu0 %v3969
    %4454 = vmatprep.subr.bf16.mxu0 %v3974
    %4455 = vmatpush1.bf16.msra.mxu0 %v3973
    %4456 = vmatprep.subr.bf16.mxu0 %v3978
    %4457 = vmatpush1.bf16.msra.mxu0 %v3977
    %4458 = vmatprep.subr.bf16.mxu0 %v3982
    %4459 = vmatpush1.bf16.msra.mxu0 %v3981
    %4460 = vmatprep.subr.bf16.mxu0 %v3986
    %4461 = vmatpush1.bf16.msra.mxu0 %v3985
    %4462 = vmatprep.subr.bf16.mxu0 %v3990
    %4463 = vmatpush1.bf16.msra.mxu0 %v3989
    %4464 = vmatprep.subr.bf16.mxu0 %v3994
    %4465 = vmatpush1.bf16.msra.mxu0 %v3993
    %4466 = vmatprep.subr.bf16.mxu0 %v3998
    %4467 = vmatpush1.bf16.msra.mxu0 %v3997
    %4468 = vmatprep.subr.bf16.mxu0 %v4002
    %4469 = vmatpush1.bf16.msra.mxu0 %v4001
    %4470 = vmatprep.subr.bf16.mxu0 %v4006
    %4471 = vmatpush1.bf16.msra.mxu0 %v4005
    %4472 = vmatprep.subr.bf16.mxu0 %v4010
    %4473 = vmatpush1.bf16.msra.mxu0 %v4009
    %4474 = vmatprep.subr.bf16.mxu0 %v4014
    %4475 = vmatpush1.bf16.msra.mxu0 %v4013
    %4476 = vmatprep.subr.bf16.mxu0 %v4018
    %4477 = vmatpush1.bf16.msra.mxu0 %v4017
    %4478 = vmatprep.mubr.bf16.mxu0 %v2748
    %4479 = vmatmul.mubr.bf16.gmra.mrb[0].mxu0 %v2747
    %v4480 = vpop.f32.mrb[0].mxu0
    %v4481 = vadd.f32 %v4440, %v4480
    %v4482 = vpop.f32.mrb[0].mxu0
    %v4483 = vadd.f32 %v4442, %v4482
    %v4484 = vpop.f32.mrb[0].mxu0
    %v4485 = vpop.f32.mrb[0].mxu0
    %4486 = vdwg.mxu0
    %4487 = vmatprep.subr.bf16.mxu0 %v4022
    %4488 = vmatpush1.bf16.msra.mxu0 %v4021
    %4489 = vmatprep.subr.bf16.mxu0 %v4026
    %4490 = vmatpush1.bf16.msra.mxu0 %v4025
    %4491 = vmatprep.subr.bf16.mxu0 %v4030
    %4492 = vmatpush1.bf16.msra.mxu0 %v4029
    %4493 = vmatprep.subr.bf16.mxu0 %v4034
    %4494 = vmatpush1.bf16.msra.mxu0 %v4033
    %4495 = vmatprep.subr.bf16.mxu0 %v4038
    %4496 = vmatpush1.bf16.msra.mxu0 %v4037
    %4497 = vmatprep.subr.bf16.mxu0 %v4042
    %4498 = vmatpush1.bf16.msra.mxu0 %v4041
    %4499 = vmatprep.subr.bf16.mxu0 %v4046
    %4500 = vmatpush1.bf16.msra.mxu0 %v4045
    %4501 = vmatprep.subr.bf16.mxu0 %v4050
    %4502 = vmatpush1.bf16.msra.mxu0 %v4049
    %4503 = vmatprep.subr.bf16.mxu0 %v4054
    %4504 = vmatpush1.bf16.msra.mxu0 %v4053
    %4505 = vmatprep.subr.bf16.mxu0 %v4058
    %4506 = vmatpush1.bf16.msra.mxu0 %v4057
    %4507 = vmatprep.subr.bf16.mxu0 %v4062
    %4508 = vmatpush1.bf16.msra.mxu0 %v4061
    %4509 = vmatprep.subr.bf16.mxu0 %v4066
    %4510 = vmatpush1.bf16.msra.mxu0 %v4065
    %4511 = vmatprep.subr.bf16.mxu0 %v4070
    %4512 = vmatpush1.bf16.msra.mxu0 %v4069
    %4513 = vmatprep.subr.bf16.mxu0 %v4074
    %4514 = vmatpush1.bf16.msra.mxu0 %v4073
    %4515 = vmatprep.subr.bf16.mxu0 %v4078
    %4516 = vmatpush1.bf16.msra.mxu0 %v4077
    %4517 = vmatprep.subr.bf16.mxu0 %v4082
    %4518 = vmatpush1.bf16.msra.mxu0 %v4081
    %4519 = vmatprep.mubr.bf16.mxu0 %v2793
    %4520 = vmatmul.mubr.bf16.gmra.mrb[0].mxu0 %v2792
    %v4521 = vpop.f32.mrb[0].mxu0
    %v4522 = vadd.f32 %v4481, %v4521
    %v4523 = vpop.f32.mrb[0].mxu0
    %v4524 = vadd.f32 %v4483, %v4523
    %v4525 = vpop.f32.mrb[0].mxu0
    %v4526 = vpop.f32.mrb[0].mxu0
    %4527 = vdwg.mxu0
    %4528 = vmatprep.subr.bf16.mxu0 %v4086
    %4529 = vmatpush1.bf16.msra.mxu0 %v4085
    %4530 = vmatprep.subr.bf16.mxu0 %v4090
    %4531 = vmatpush1.bf16.msra.mxu0 %v4089
    %4532 = vmatprep.subr.bf16.mxu0 %v4094
    %4533 = vmatpush1.bf16.msra.mxu0 %v4093
    %4534 = vmatprep.subr.bf16.mxu0 %v4098
    %4535 = vmatpush1.bf16.msra.mxu0 %v4097
    %4536 = vmatprep.subr.bf16.mxu0 %v4102
    %4537 = vmatpush1.bf16.msra.mxu0 %v4101
    %4538 = vmatprep.subr.bf16.mxu0 %v4106
    %4539 = vmatpush1.bf16.msra.mxu0 %v4105
    %4540 = vmatprep.subr.bf16.mxu0 %v4110
    %4541 = vmatpush1.bf16.msra.mxu0 %v4109
    %4542 = vmatprep.subr.bf16.mxu0 %v4114
    %4543 = vmatpush1.bf16.msra.mxu0 %v4113
    %4544 = vmatprep.subr.bf16.mxu0 %v4118
    %4545 = vmatpush1.bf16.msra.mxu0 %v4117
    %4546 = vmatprep.subr.bf16.mxu0 %v4122
    %4547 = vmatpush1.bf16.msra.mxu0 %v4121
    %4548 = vmatprep.subr.bf16.mxu0 %v4126
    %4549 = vmatpush1.bf16.msra.mxu0 %v4125
    %4550 = vmatprep.subr.bf16.mxu0 %v4130
    %4551 = vmatpush1.bf16.msra.mxu0 %v4129
    %4552 = vmatprep.subr.bf16.mxu0 %v4134
    %4553 = vmatpush1.bf16.msra.mxu0 %v4133
    %4554 = vmatprep.subr.bf16.mxu0 %v4138
    %4555 = vmatpush1.bf16.msra.mxu0 %v4137
    %4556 = vmatprep.subr.bf16.mxu0 %v4142
    %4557 = vmatpush1.bf16.msra.mxu0 %v4141
    %4558 = vmatprep.subr.bf16.mxu0 %v4146
    %4559 = vmatpush1.bf16.msra.mxu0 %v4145
    %4560 = vmatprep.mubr.bf16.mxu0 %v2846
    %4561 = vmatmul.mubr.bf16.gmra.mrb[0].mxu0 %v2845
    %v4562 = vpop.f32.mrb[0].mxu0
    %v4563 = vadd.f32 %v4522, %v4562
    %v4564 = vpop.f32.mrb[0].mxu0
    %v4565 = vadd.f32 %v4524, %v4564
    %v4566 = vpop.f32.mrb[0].mxu0
    %v4567 = vpop.f32.mrb[0].mxu0
    %4568 = vdwg.mxu0
    %4569 = vmatprep.subr.bf16.mxu0 %v3896
    %4570 = vmatpush1.bf16.msra.mxu0 %v3895
    %4571 = vmatprep.subr.bf16.mxu0 %v3900
    %4572 = vmatpush1.bf16.msra.mxu0 %v3899
    %4573 = vmatprep.subr.bf16.mxu0 %v3904
    %4574 = vmatpush1.bf16.msra.mxu0 %v3903
    %4575 = vmatprep.subr.bf16.mxu0 %v3908
    %4576 = vmatpush1.bf16.msra.mxu0 %v3907
    %4577 = vmatprep.subr.bf16.mxu0 %v3912
    %4578 = vmatpush1.bf16.msra.mxu0 %v3911
    %4579 = vmatprep.subr.bf16.mxu0 %v3916
    %4580 = vmatpush1.bf16.msra.mxu0 %v3915
    %4581 = vmatprep.subr.bf16.mxu0 %v3920
    %4582 = vmatpush1.bf16.msra.mxu0 %v3919
    %4583 = vmatprep.subr.bf16.mxu0 %v3924
    %4584 = vmatpush1.bf16.msra.mxu0 %v3923
    %4585 = vmatprep.subr.bf16.mxu0 %v3928
    %4586 = vmatpush1.bf16.msra.mxu0 %v3927
    %4587 = vmatprep.subr.bf16.mxu0 %v3932
    %4588 = vmatpush1.bf16.msra.mxu0 %v3931
    %4589 = vmatprep.subr.bf16.mxu0 %v3936
    %4590 = vmatpush1.bf16.msra.mxu0 %v3935
    %4591 = vmatprep.subr.bf16.mxu0 %v3940
    %4592 = vmatpush1.bf16.msra.mxu0 %v3939
    %4593 = vmatprep.subr.bf16.mxu0 %v3944
    %4594 = vmatpush1.bf16.msra.mxu0 %v3943
    %4595 = vmatprep.subr.bf16.mxu0 %v3948
    %4596 = vmatpush1.bf16.msra.mxu0 %v3947
    %4597 = vmatprep.subr.bf16.mxu0 %v3952
    %4598 = vmatpush1.bf16.msra.mxu0 %v3951
    %4599 = vmatprep.subr.bf16.mxu0 %v3956
    %4600 = vmatpush1.bf16.msra.mxu0 %v3955
    %4601 = vmatprep.mubr.bf16.mxu0 %v2698
    %4602 = vmatmul.mubr.bf16.gmra.mrb[0].mxu0 %v2697
    %v4603 = vpop.f32.mrb[0].mxu0
    %v4604 = vadd.f32 %v3116, %v4603
    %v4605 = vpop.f32.mrb[0].mxu0
    %v4606 = vadd.f32 %v3120, %v4605
    %v4607 = vpop.f32.mrb[0].mxu0
    %v4608 = vpop.f32.mrb[0].mxu0
    %4609 = vdwg.mxu0
    %4610 = vmatprep.subr.bf16.mxu0 %v3960
    %4611 = vmatpush1.bf16.msra.mxu0 %v3959
    %4612 = vmatprep.subr.bf16.mxu0 %v3964
    %4613 = vmatpush1.bf16.msra.mxu0 %v3963
    %4614 = vmatprep.subr.bf16.mxu0 %v3968
    %4615 = vmatpush1.bf16.msra.mxu0 %v3967
    %4616 = vmatprep.subr.bf16.mxu0 %v3972
    %4617 = vmatpush1.bf16.msra.mxu0 %v3971
    %4618 = vmatprep.subr.bf16.mxu0 %v3976
    %4619 = vmatpush1.bf16.msra.mxu0 %v3975
    %4620 = vmatprep.subr.bf16.mxu0 %v3980
    %4621 = vmatpush1.bf16.msra.mxu0 %v3979
    %4622 = vmatprep.subr.bf16.mxu0 %v3984
    %4623 = vmatpush1.bf16.msra.mxu0 %v3983
    %4624 = vmatprep.subr.bf16.mxu0 %v3988
    %4625 = vmatpush1.bf16.msra.mxu0 %v3987
    %4626 = vmatprep.subr.bf16.mxu0 %v3992
    %4627 = vmatpush1.bf16.msra.mxu0 %v3991
    %4628 = vmatprep.subr.bf16.mxu0 %v3996
    %4629 = vmatpush1.bf16.msra.mxu0 %v3995
    %4630 = vmatprep.subr.bf16.mxu0 %v4000
    %4631 = vmatpush1.bf16.msra.mxu0 %v3999
    %4632 = vmatprep.subr.bf16.mxu0 %v4004
    %4633 = vmatpush1.bf16.msra.mxu0 %v4003
    %4634 = vmatprep.subr.bf16.mxu0 %v4008
    %4635 = vmatpush1.bf16.msra.mxu0 %v4007
    %4636 = vmatprep.subr.bf16.mxu0 %v4012
    %4637 = vmatpush1.bf16.msra.mxu0 %v4011
    %4638 = vmatprep.subr.bf16.mxu0 %v4016
    %4639 = vmatpush1.bf16.msra.mxu0 %v4015
    %4640 = vmatprep.subr.bf16.mxu0 %v4020
    %4641 = vmatpush1.bf16.msra.mxu0 %v4019
    %4642 = vmatprep.mubr.bf16.mxu0 %v2748
    %4643 = vmatmul.mubr.bf16.gmra.mrb[0].mxu0 %v2747
    %v4644 = vpop.f32.mrb[0].mxu0
    %v4645 = vadd.f32 %v4604, %v4644
    %v4646 = vpop.f32.mrb[0].mxu0
    %v4647 = vadd.f32 %v4606, %v4646
    %v4648 = vpop.f32.mrb[0].mxu0
    %v4649 = vpop.f32.mrb[0].mxu0
    %4650 = vdwg.mxu0
    %4651 = vmatprep.subr.bf16.mxu0 %v4024
    %4652 = vmatpush1.bf16.msra.mxu0 %v4023
    %4653 = vmatprep.subr.bf16.mxu0 %v4028
    %4654 = vmatpush1.bf16.msra.mxu0 %v4027
    %4655 = vmatprep.subr.bf16.mxu0 %v4032
    %4656 = vmatpush1.bf16.msra.mxu0 %v4031
    %4657 = vmatprep.subr.bf16.mxu0 %v4036
    %4658 = vmatpush1.bf16.msra.mxu0 %v4035
    %4659 = vmatprep.subr.bf16.mxu0 %v4040
    %4660 = vmatpush1.bf16.msra.mxu0 %v4039
    %4661 = vmatprep.subr.bf16.mxu0 %v4044
    %4662 = vmatpush1.bf16.msra.mxu0 %v4043
    %4663 = vmatprep.subr.bf16.mxu0 %v4048
    %4664 = vmatpush1.bf16.msra.mxu0 %v4047
    %4665 = vmatprep.subr.bf16.mxu0 %v4052
    %4666 = vmatpush1.bf16.msra.mxu0 %v4051
    %4667 = vmatprep.subr.bf16.mxu0 %v4056
    %4668 = vmatpush1.bf16.msra.mxu0 %v4055
    %4669 = vmatprep.subr.bf16.mxu0 %v4060
    %4670 = vmatpush1.bf16.msra.mxu0 %v4059
    %4671 = vmatprep.subr.bf16.mxu0 %v4064
    %4672 = vmatpush1.bf16.msra.mxu0 %v4063
    %4673 = vmatprep.subr.bf16.mxu0 %v4068
    %4674 = vmatpush1.bf16.msra.mxu0 %v4067
    %4675 = vmatprep.subr.bf16.mxu0 %v4072
    %4676 = vmatpush1.bf16.msra.mxu0 %v4071
    %4677 = vmatprep.subr.bf16.mxu0 %v4076
    %4678 = vmatpush1.bf16.msra.mxu0 %v4075
    %4679 = vmatprep.subr.bf16.mxu0 %v4080
    %4680 = vmatpush1.bf16.msra.mxu0 %v4079
    %4681 = vmatprep.subr.bf16.mxu0 %v4084
    %4682 = vmatpush1.bf16.msra.mxu0 %v4083
    %4683 = vmatprep.mubr.bf16.mxu0 %v2793
    %4684 = vmatmul.mubr.bf16.gmra.mrb[0].mxu0 %v2792
    %v4685 = vpop.f32.mrb[0].mxu0
    %v4686 = vadd.f32 %v4645, %v4685
    %v4687 = vpop.f32.mrb[0].mxu0
    %v4688 = vadd.f32 %v4647, %v4687
    %v4689 = vpop.f32.mrb[0].mxu0
    %v4690 = vpop.f32.mrb[0].mxu0
    %4691 = vdwg.mxu0
    %4692 = vmatprep.subr.bf16.mxu0 %v4088
    %4693 = vmatpush1.bf16.msra.mxu0 %v4087
    %4694 = vmatprep.subr.bf16.mxu0 %v4092
    %4695 = vmatpush1.bf16.msra.mxu0 %v4091
    %4696 = vmatprep.subr.bf16.mxu0 %v4096
    %4697 = vmatpush1.bf16.msra.mxu0 %v4095
    %4698 = vmatprep.subr.bf16.mxu0 %v4100
    %4699 = vmatpush1.bf16.msra.mxu0 %v4099
    %4700 = vmatprep.subr.bf16.mxu0 %v4104
    %4701 = vmatpush1.bf16.msra.mxu0 %v4103
    %4702 = vmatprep.subr.bf16.mxu0 %v4108
    %4703 = vmatpush1.bf16.msra.mxu0 %v4107
    %4704 = vmatprep.subr.bf16.mxu0 %v4112
    %4705 = vmatpush1.bf16.msra.mxu0 %v4111
    %4706 = vmatprep.subr.bf16.mxu0 %v4116
    %4707 = vmatpush1.bf16.msra.mxu0 %v4115
    %4708 = vmatprep.subr.bf16.mxu0 %v4120
    %4709 = vmatpush1.bf16.msra.mxu0 %v4119
    %4710 = vmatprep.subr.bf16.mxu0 %v4124
    %4711 = vmatpush1.bf16.msra.mxu0 %v4123
    %4712 = vmatprep.subr.bf16.mxu0 %v4128
    %4713 = vmatpush1.bf16.msra.mxu0 %v4127
    %4714 = vmatprep.subr.bf16.mxu0 %v4132
    %4715 = vmatpush1.bf16.msra.mxu0 %v4131
    %4716 = vmatprep.subr.bf16.mxu0 %v4136
    %4717 = vmatpush1.bf16.msra.mxu0 %v4135
    %4718 = vmatprep.subr.bf16.mxu0 %v4140
    %4719 = vmatpush1.bf16.msra.mxu0 %v4139
    %4720 = vmatprep.subr.bf16.mxu0 %v4144
    %4721 = vmatpush1.bf16.msra.mxu0 %v4143
    %4722 = vmatprep.subr.bf16.mxu0 %v4148
    %4723 = vmatpush1.bf16.msra.mxu0 %v4147
    %4724 = vmatprep.mubr.bf16.mxu0 %v2846
    %4725 = vmatmul.mubr.bf16.gmra.mrb[0].mxu0 %v2845
    %v4726 = vpop.f32.mrb[0].mxu0
    %v4727 = vadd.f32 %v4686, %v4726
    %v4728 = vpop.f32.mrb[0].mxu0
    %v4729 = vadd.f32 %v4688, %v4728
    %v4730 = vpop.f32.mrb[0].mxu0
    %v4731 = vpop.f32.mrb[0].mxu0
    %4732 = vdwg.mxu0
    %v4733 = vmax.f32 %v4563, 0.0
    %v4734 = vmax.f32 %v4565, 0.0
    %v4735 = vmax.f32 %v4727, 0.0
    %v4736 = vmax.f32 %v4729, 0.0
    %v4737 = vpack.c.bf16 %v4733, %v4733
    %v4738 = vpack.c.bf16 %v4734, %v4734
    %v4739 = vpack.c.bf16 %v4735, %v4735
    %v4740 = vpack.c.bf16 %v4736, %v4736
    %v4741 = vld [vmem:[%s11] sm:$0xff]
    %v4742 = vld [vmem:[%s11 + $0x8] sm:$0xff]
    %v4743 = vld [vmem:[%s11 + $0x10] sm:$0xff]
    %v4744 = vld [vmem:[%s11 + $0x18] sm:$0xff]
    %v4745 = vld [vmem:[%s11 + $0x20] sm:$0xff]
    %v4746 = vld [vmem:[%s11 + $0x28] sm:$0xff]
    %v4747 = vld [vmem:[%s11 + $0x30] sm:$0xff]
    %v4748 = vld [vmem:[%s11 + $0x38] sm:$0xff]
    %v4749 = vld [vmem:[%s11 + $0x40] sm:$0xff]
    %v4750 = vld [vmem:[%s11 + $0x48] sm:$0xff]
    %v4751 = vld [vmem:[%s11 + $0x50] sm:$0xff]
    %v4752 = vld [vmem:[%s11 + $0x58] sm:$0xff]
    %v4753 = vld [vmem:[%s11 + $0x60] sm:$0xff]
    %v4754 = vld [vmem:[%s11 + $0x68] sm:$0xff]
    %v4755 = vld [vmem:[%s11 + $0x70] sm:$0xff]
    %v4756 = vld [vmem:[%s11 + $0x78] sm:$0xff]
    %v4757 = vld [vmem:[%s11 + $0x80] sm:$0xff]
    %v4758 = vld [vmem:[%s11 + $0x88] sm:$0xff]
    %v4759 = vld [vmem:[%s11 + $0x90] sm:$0xff]
    %v4760 = vld [vmem:[%s11 + $0x98] sm:$0xff]
    %v4761 = vld [vmem:[%s11 + $0xa0] sm:$0xff]
    %v4762 = vld [vmem:[%s11 + $0xa8] sm:$0xff]
    %v4763 = vld [vmem:[%s11 + $0xb0] sm:$0xff]
    %v4764 = vld [vmem:[%s11 + $0xb8] sm:$0xff]
    %v4765 = vld [vmem:[%s11 + $0xc0] sm:$0xff]
    %v4766 = vld [vmem:[%s11 + $0xc8] sm:$0xff]
    %v4767 = vld [vmem:[%s11 + $0xd0] sm:$0xff]
    %v4768 = vld [vmem:[%s11 + $0xd8] sm:$0xff]
    %v4769 = vld [vmem:[%s11 + $0xe0] sm:$0xff]
    %v4770 = vld [vmem:[%s11 + $0xe8] sm:$0xff]
    %v4771 = vld [vmem:[%s11 + $0xf0] sm:$0xff]
    %v4772 = vld [vmem:[%s11 + $0xf8] sm:$0xff]
    %v4773 = vld [vmem:[%s11 + $0x100] sm:$0xff]
    %v4774 = vld [vmem:[%s11 + $0x108] sm:$0xff]
    %v4775 = vld [vmem:[%s11 + $0x110] sm:$0xff]
    %v4776 = vld [vmem:[%s11 + $0x118] sm:$0xff]
    %v4777 = vld [vmem:[%s11 + $0x120] sm:$0xff]
    %v4778 = vld [vmem:[%s11 + $0x128] sm:$0xff]
    %v4779 = vld [vmem:[%s11 + $0x130] sm:$0xff]
    %v4780 = vld [vmem:[%s11 + $0x138] sm:$0xff]
    %v4781 = vld [vmem:[%s11 + $0x140] sm:$0xff]
    %v4782 = vld [vmem:[%s11 + $0x148] sm:$0xff]
    %v4783 = vld [vmem:[%s11 + $0x150] sm:$0xff]
    %v4784 = vld [vmem:[%s11 + $0x158] sm:$0xff]
    %v4785 = vld [vmem:[%s11 + $0x160] sm:$0xff]
    %v4786 = vld [vmem:[%s11 + $0x168] sm:$0xff]
    %v4787 = vld [vmem:[%s11 + $0x170] sm:$0xff]
    %v4788 = vld [vmem:[%s11 + $0x178] sm:$0xff]
    %v4789 = vld [vmem:[%s11 + $0x180] sm:$0xff]
    %v4790 = vld [vmem:[%s11 + $0x188] sm:$0xff]
    %v4791 = vld [vmem:[%s11 + $0x190] sm:$0xff]
    %v4792 = vld [vmem:[%s11 + $0x198] sm:$0xff]
    %v4793 = vld [vmem:[%s11 + $0x1a0] sm:$0xff]
    %v4794 = vld [vmem:[%s11 + $0x1a8] sm:$0xff]
    %v4795 = vld [vmem:[%s11 + $0x1b0] sm:$0xff]
    %v4796 = vld [vmem:[%s11 + $0x1b8] sm:$0xff]
    %v4797 = vld [vmem:[%s11 + $0x1c0] sm:$0xff]
    %v4798 = vld [vmem:[%s11 + $0x1c8] sm:$0xff]
    %v4799 = vld [vmem:[%s11 + $0x1d0] sm:$0xff]
    %v4800 = vld [vmem:[%s11 + $0x1d8] sm:$0xff]
    %v4801 = vld [vmem:[%s11 + $0x1e0] sm:$0xff]
    %v4802 = vld [vmem:[%s11 + $0x1e8] sm:$0xff]
    %v4803 = vld [vmem:[%s11 + $0x1f0] sm:$0xff]
    %v4804 = vld [vmem:[%s11 + $0x1f8] sm:$0xff]
    %v4805 = vld [vmem:[%s12] sm:$0x3]
    %v4807 = vlaneseq
    %v4808 = vshrl.u32 %v4807, 7
    %v4809 = vsub.s32 0, %v4808
    %v4810 = vrot.slane %v4805, %v4809
    %v4811 = vlaneseq
    %v4812 = vshrl.u32 %v4811, 7
    %v4813 = vsub.s32 1, %v4812
    %v4814 = vrot.slane %v4805, %v4813
    %v4881 = vunpack.c.l.b16 %v4741
    %v4882 = vunpack.c.h.b16 %v4741
    %v4883 = vunpack.c.l.b16 %v4742
    %v4884 = vunpack.c.h.b16 %v4742
    %v4885 = vunpack.c.l.b16 %v4743
    %v4886 = vunpack.c.h.b16 %v4743
    %v4887 = vunpack.c.l.b16 %v4744
    %v4888 = vunpack.c.h.b16 %v4744
    %v4889 = vunpack.c.l.b16 %v4745
    %v4890 = vunpack.c.h.b16 %v4745
    %v4891 = vunpack.c.l.b16 %v4746
    %v4892 = vunpack.c.h.b16 %v4746
    %v4893 = vunpack.c.l.b16 %v4747
    %v4894 = vunpack.c.h.b16 %v4747
    %v4895 = vunpack.c.l.b16 %v4748
    %v4896 = vunpack.c.h.b16 %v4748
    %v4897 = vunpack.c.l.b16 %v4749
    %v4898 = vunpack.c.h.b16 %v4749
    %v4899 = vunpack.c.l.b16 %v4750
    %v4900 = vunpack.c.h.b16 %v4750
    %v4901 = vunpack.c.l.b16 %v4751
    %v4902 = vunpack.c.h.b16 %v4751
    %v4903 = vunpack.c.l.b16 %v4752
    %v4904 = vunpack.c.h.b16 %v4752
    %v4905 = vunpack.c.l.b16 %v4753
    %v4906 = vunpack.c.h.b16 %v4753
    %v4907 = vunpack.c.l.b16 %v4754
    %v4908 = vunpack.c.h.b16 %v4754
    %v4909 = vunpack.c.l.b16 %v4755
    %v4910 = vunpack.c.h.b16 %v4755
    %v4911 = vunpack.c.l.b16 %v4756
    %v4912 = vunpack.c.h.b16 %v4756
    %v4913 = vunpack.c.l.b16 %v4757
    %v4914 = vunpack.c.h.b16 %v4757
    %v4915 = vunpack.c.l.b16 %v4758
    %v4916 = vunpack.c.h.b16 %v4758
    %v4917 = vunpack.c.l.b16 %v4759
    %v4918 = vunpack.c.h.b16 %v4759
    %v4919 = vunpack.c.l.b16 %v4760
    %v4920 = vunpack.c.h.b16 %v4760
    %v4921 = vunpack.c.l.b16 %v4761
    %v4922 = vunpack.c.h.b16 %v4761
    %v4923 = vunpack.c.l.b16 %v4762
    %v4924 = vunpack.c.h.b16 %v4762
    %v4925 = vunpack.c.l.b16 %v4763
    %v4926 = vunpack.c.h.b16 %v4763
    %v4927 = vunpack.c.l.b16 %v4764
    %v4928 = vunpack.c.h.b16 %v4764
    %v4929 = vunpack.c.l.b16 %v4765
    %v4930 = vunpack.c.h.b16 %v4765
    %v4931 = vunpack.c.l.b16 %v4766
    %v4932 = vunpack.c.h.b16 %v4766
    %v4933 = vunpack.c.l.b16 %v4767
    %v4934 = vunpack.c.h.b16 %v4767
    %v4935 = vunpack.c.l.b16 %v4768
    %v4936 = vunpack.c.h.b16 %v4768
    %v4937 = vunpack.c.l.b16 %v4769
    %v4938 = vunpack.c.h.b16 %v4769
    %v4939 = vunpack.c.l.b16 %v4770
    %v4940 = vunpack.c.h.b16 %v4770
    %v4941 = vunpack.c.l.b16 %v4771
    %v4942 = vunpack.c.h.b16 %v4771
    %v4943 = vunpack.c.l.b16 %v4772
    %v4944 = vunpack.c.h.b16 %v4772
    %v4945 = vunpack.c.l.b16 %v4773
    %v4946 = vunpack.c.h.b16 %v4773
    %v4947 = vunpack.c.l.b16 %v4774
    %v4948 = vunpack.c.h.b16 %v4774
    %v4949 = vunpack.c.l.b16 %v4775
    %v4950 = vunpack.c.h.b16 %v4775
    %v4951 = vunpack.c.l.b16 %v4776
    %v4952 = vunpack.c.h.b16 %v4776
    %v4953 = vunpack.c.l.b16 %v4777
    %v4954 = vunpack.c.h.b16 %v4777
    %v4955 = vunpack.c.l.b16 %v4778
    %v4956 = vunpack.c.h.b16 %v4778
    %v4957 = vunpack.c.l.b16 %v4779
    %v4958 = vunpack.c.h.b16 %v4779
    %v4959 = vunpack.c.l.b16 %v4780
    %v4960 = vunpack.c.h.b16 %v4780
    %v4961 = vunpack.c.l.b16 %v4781
    %v4962 = vunpack.c.h.b16 %v4781
    %v4963 = vunpack.c.l.b16 %v4782
    %v4964 = vunpack.c.h.b16 %v4782
    %v4965 = vunpack.c.l.b16 %v4783
    %v4966 = vunpack.c.h.b16 %v4783
    %v4967 = vunpack.c.l.b16 %v4784
    %v4968 = vunpack.c.h.b16 %v4784
    %v4969 = vunpack.c.l.b16 %v4785
    %v4970 = vunpack.c.h.b16 %v4785
    %v4971 = vunpack.c.l.b16 %v4786
    %v4972 = vunpack.c.h.b16 %v4786
    %v4973 = vunpack.c.l.b16 %v4787
    %v4974 = vunpack.c.h.b16 %v4787
    %v4975 = vunpack.c.l.b16 %v4788
    %v4976 = vunpack.c.h.b16 %v4788
    %v4977 = vunpack.c.l.b16 %v4789
    %v4978 = vunpack.c.h.b16 %v4789
    %v4979 = vunpack.c.l.b16 %v4790
    %v4980 = vunpack.c.h.b16 %v4790
    %v4981 = vunpack.c.l.b16 %v4791
    %v4982 = vunpack.c.h.b16 %v4791
    %v4983 = vunpack.c.l.b16 %v4792
    %v4984 = vunpack.c.h.b16 %v4792
    %v4985 = vunpack.c.l.b16 %v4793
    %v4986 = vunpack.c.h.b16 %v4793
    %v4987 = vunpack.c.l.b16 %v4794
    %v4988 = vunpack.c.h.b16 %v4794
    %v4989 = vunpack.c.l.b16 %v4795
    %v4990 = vunpack.c.h.b16 %v4795
    %v4991 = vunpack.c.l.b16 %v4796
    %v4992 = vunpack.c.h.b16 %v4796
    %v4993 = vunpack.c.l.b16 %v4797
    %v4994 = vunpack.c.h.b16 %v4797
    %v4995 = vunpack.c.l.b16 %v4798
    %v4996 = vunpack.c.h.b16 %v4798
    %v4997 = vunpack.c.l.b16 %v4799
    %v4998 = vunpack.c.h.b16 %v4799
    %v4999 = vunpack.c.l.b16 %v4800
    %v5000 = vunpack.c.h.b16 %v4800
    %v5001 = vunpack.c.l.b16 %v4801
    %v5002 = vunpack.c.h.b16 %v4801
    %v5003 = vunpack.c.l.b16 %v4802
    %v5004 = vunpack.c.h.b16 %v4802
    %v5005 = vunpack.c.l.b16 %v4803
    %v5006 = vunpack.c.h.b16 %v4803
    %v5007 = vunpack.c.l.b16 %v4804
    %v5008 = vunpack.c.h.b16 %v4804
    %v5009 = vpack.c.b16 %v4883, %v4881
    %v5010 = vpack.c.b16 %v4884, %v4882
    %v5011 = vpack.c.b16 %v4887, %v4885
    %v5012 = vpack.c.b16 %v4888, %v4886
    %v5013 = vpack.c.b16 %v4891, %v4889
    %v5014 = vpack.c.b16 %v4892, %v4890
    %v5015 = vpack.c.b16 %v4895, %v4893
    %v5016 = vpack.c.b16 %v4896, %v4894
    %v5017 = vpack.c.b16 %v4899, %v4897
    %v5018 = vpack.c.b16 %v4900, %v4898
    %v5019 = vpack.c.b16 %v4903, %v4901
    %v5020 = vpack.c.b16 %v4904, %v4902
    %v5021 = vpack.c.b16 %v4907, %v4905
    %v5022 = vpack.c.b16 %v4908, %v4906
    %v5023 = vpack.c.b16 %v4911, %v4909
    %v5024 = vpack.c.b16 %v4912, %v4910
    %v5025 = vpack.c.b16 %v4915, %v4913
    %v5026 = vpack.c.b16 %v4916, %v4914
    %v5027 = vpack.c.b16 %v4919, %v4917
    %v5028 = vpack.c.b16 %v4920, %v4918
    %v5029 = vpack.c.b16 %v4923, %v4921
    %v5030 = vpack.c.b16 %v4924, %v4922
    %v5031 = vpack.c.b16 %v4927, %v4925
    %v5032 = vpack.c.b16 %v4928, %v4926
    %v5033 = vpack.c.b16 %v4931, %v4929
    %v5034 = vpack.c.b16 %v4932, %v4930
    %v5035 = vpack.c.b16 %v4935, %v4933
    %v5036 = vpack.c.b16 %v4936, %v4934
    %v5037 = vpack.c.b16 %v4939, %v4937
    %v5038 = vpack.c.b16 %v4940, %v4938
    %v5039 = vpack.c.b16 %v4943, %v4941
    %v5040 = vpack.c.b16 %v4944, %v4942
    %v5041 = vpack.c.b16 %v4947, %v4945
    %v5042 = vpack.c.b16 %v4948, %v4946
    %v5043 = vpack.c.b16 %v4951, %v4949
    %v5044 = vpack.c.b16 %v4952, %v4950
    %v5045 = vpack.c.b16 %v4955, %v4953
    %v5046 = vpack.c.b16 %v4956, %v4954
    %v5047 = vpack.c.b16 %v4959, %v4957
    %v5048 = vpack.c.b16 %v4960, %v4958
    %v5049 = vpack.c.b16 %v4963, %v4961
    %v5050 = vpack.c.b16 %v4964, %v4962
    %v5051 = vpack.c.b16 %v4967, %v4965
    %v5052 = vpack.c.b16 %v4968, %v4966
    %v5053 = vpack.c.b16 %v4971, %v4969
    %v5054 = vpack.c.b16 %v4972, %v4970
    %v5055 = vpack.c.b16 %v4975, %v4973
    %v5056 = vpack.c.b16 %v4976, %v4974
    %v5057 = vpack.c.b16 %v4979, %v4977
    %v5058 = vpack.c.b16 %v4980, %v4978
    %v5059 = vpack.c.b16 %v4983, %v4981
    %v5060 = vpack.c.b16 %v4984, %v4982
    %v5061 = vpack.c.b16 %v4987, %v4985
    %v5062 = vpack.c.b16 %v4988, %v4986
    %v5063 = vpack.c.b16 %v4991, %v4989
    %v5064 = vpack.c.b16 %v4992, %v4990
    %v5065 = vpack.c.b16 %v4995, %v4993
    %v5066 = vpack.c.b16 %v4996, %v4994
    %v5067 = vpack.c.b16 %v4999, %v4997
    %v5068 = vpack.c.b16 %v5000, %v4998
    %v5069 = vpack.c.b16 %v5003, %v5001
    %v5070 = vpack.c.b16 %v5004, %v5002
    %v5071 = vpack.c.b16 %v5007, %v5005
    %v5072 = vpack.c.b16 %v5008, %v5006
    %5137 = vmatprep.subr.bf16.mxu0 %v5010
    %5138 = vmatpush1.bf16.msra.mxu0 %v5009
    %5139 = vmatprep.subr.bf16.mxu0 %v5012
    %5140 = vmatpush1.bf16.msra.mxu0 %v5011
    %5141 = vmatprep.subr.bf16.mxu0 %v5014
    %5142 = vmatpush1.bf16.msra.mxu0 %v5013
    %5143 = vmatprep.subr.bf16.mxu0 %v5016
    %5144 = vmatpush1.bf16.msra.mxu0 %v5015
    %5145 = vmatprep.subr.bf16.mxu0 %v5018
    %5146 = vmatpush1.bf16.msra.mxu0 %v5017
    %5147 = vmatprep.subr.bf16.mxu0 %v5020
    %5148 = vmatpush1.bf16.msra.mxu0 %v5019
    %5149 = vmatprep.subr.bf16.mxu0 %v5022
    %5150 = vmatpush1.bf16.msra.mxu0 %v5021
    %5151 = vmatprep.subr.bf16.mxu0 %v5024
    %5152 = vmatpush1.bf16.msra.mxu0 %v5023
    %5153 = vmatprep.subr.bf16.mxu0 %v5026
    %5154 = vmatpush1.bf16.msra.mxu0 %v5025
    %5155 = vmatprep.subr.bf16.mxu0 %v5028
    %5156 = vmatpush1.bf16.msra.mxu0 %v5027
    %5157 = vmatprep.subr.bf16.mxu0 %v5030
    %5158 = vmatpush1.bf16.msra.mxu0 %v5029
    %5159 = vmatprep.subr.bf16.mxu0 %v5032
    %5160 = vmatpush1.bf16.msra.mxu0 %v5031
    %5161 = vmatprep.subr.bf16.mxu0 %v5034
    %5162 = vmatpush1.bf16.msra.mxu0 %v5033
    %5163 = vmatprep.subr.bf16.mxu0 %v5036
    %5164 = vmatpush1.bf16.msra.mxu0 %v5035
    %5165 = vmatprep.subr.bf16.mxu0 %v5038
    %5166 = vmatpush1.bf16.msra.mxu0 %v5037
    %5167 = vmatprep.subr.bf16.mxu0 %v5040
    %5168 = vmatpush1.bf16.msra.mxu0 %v5039
    %5169 = vmatprep.mubr.bf16.mxu0 %v4738
    %5170 = vmatmul.mubr.bf16.gmra.mrb[0].mxu0 %v4737
    %v5171 = vpop.f32.mrb[0].mxu0
    %v5172 = vadd.f32 %v4810, %v5171
    %v5173 = vpop.f32.mrb[0].mxu0
    %v5174 = vadd.f32 %v4814, %v5173
    %v5175 = vpop.f32.mrb[0].mxu0
    %v5176 = vpop.f32.mrb[0].mxu0
    %5177 = vdwg.mxu0
    %5178 = vmatprep.subr.bf16.mxu0 %v5042
    %5179 = vmatpush1.bf16.msra.mxu0 %v5041
    %5180 = vmatprep.subr.bf16.mxu0 %v5044
    %5181 = vmatpush1.bf16.msra.mxu0 %v5043
    %5182 = vmatprep.subr.bf16.mxu0 %v5046
    %5183 = vmatpush1.bf16.msra.mxu0 %v5045
    %5184 = vmatprep.subr.bf16.mxu0 %v5048
    %5185 = vmatpush1.bf16.msra.mxu0 %v5047
    %5186 = vmatprep.subr.bf16.mxu0 %v5050
    %5187 = vmatpush1.bf16.msra.mxu0 %v5049
    %5188 = vmatprep.subr.bf16.mxu0 %v5052
    %5189 = vmatpush1.bf16.msra.mxu0 %v5051
    %5190 = vmatprep.subr.bf16.mxu0 %v5054
    %5191 = vmatpush1.bf16.msra.mxu0 %v5053
    %5192 = vmatprep.subr.bf16.mxu0 %v5056
    %5193 = vmatpush1.bf16.msra.mxu0 %v5055
    %5194 = vmatprep.subr.bf16.mxu0 %v5058
    %5195 = vmatpush1.bf16.msra.mxu0 %v5057
    %5196 = vmatprep.subr.bf16.mxu0 %v5060
    %5197 = vmatpush1.bf16.msra.mxu0 %v5059
    %5198 = vmatprep.subr.bf16.mxu0 %v5062
    %5199 = vmatpush1.bf16.msra.mxu0 %v5061
    %5200 = vmatprep.subr.bf16.mxu0 %v5064
    %5201 = vmatpush1.bf16.msra.mxu0 %v5063
    %5202 = vmatprep.subr.bf16.mxu0 %v5066
    %5203 = vmatpush1.bf16.msra.mxu0 %v5065
    %5204 = vmatprep.subr.bf16.mxu0 %v5068
    %5205 = vmatpush1.bf16.msra.mxu0 %v5067
    %5206 = vmatprep.subr.bf16.mxu0 %v5070
    %5207 = vmatpush1.bf16.msra.mxu0 %v5069
    %5208 = vmatprep.subr.bf16.mxu0 %v5072
    %5209 = vmatpush1.bf16.msra.mxu0 %v5071
    %5210 = vmatprep.mubr.bf16.mxu0 %v4740
    %5211 = vmatmul.mubr.bf16.gmra.mrb[0].mxu0 %v4739
    %v5212 = vpop.f32.mrb[0].mxu0
    %v5213 = vadd.f32 %v5172, %v5212
    %v5214 = vpop.f32.mrb[0].mxu0
    %v5215 = vadd.f32 %v5174, %v5214
    %v5216 = vpop.f32.mrb[0].mxu0
    %v5217 = vpop.f32.mrb[0].mxu0
    %5218 = vdwg.mxu0
    %v5219 = vmax.f32 %v5213, 0.0
    %v5220 = vmax.f32 %v5215, 0.0
    %v5221 = vld [vmem:[%s13] sm:$0x3]
    %v5223 = vlaneseq
    %v5224 = vshrl.u32 %v5223, 7
    %v5225 = vsub.s32 0, %v5224
    %v5226 = vrot.slane %v5221, %v5225
    %v5227 = vlaneseq
    %v5228 = vshrl.u32 %v5227, 7
    %v5229 = vsub.s32 1, %v5228
    %v5230 = vrot.slane %v5221, %v5229
    %v5233 = vmul.f32 %v5219, %v5226
    %v5234 = vmul.f32 %v5220, %v5230
    %v5235 = vadd.f32 %v5233, %v5234
    %5236 = vadd.xlane.f32.xlu0 %v5235
    %v5237 = vpop.xlane.xlu0 %5236
    %v5238 = vld [vmem:[#allocation2] sm:$0x1]
    %v5240 = vlaneseq
    %v5241 = vshrl.u32 %v5240, 7
    %v5242 = vsub.s32 0, %v5241
    %v5243 = vrot.slane %v5238, %v5242
    %v5245 = vadd.f32 %v5237, %v5243
    %vm5246 = vcmask 7168
    %5247 = vst.msk [vmem:[%s15] sm:$0xff] %vm5246, %v5245
    // Predicated region
    $region70: #{forward.1} parent=1 // pred_check
      _
    $region71: #{forward.1} parent=1 // pred_check_branch
      %5249 = sbr.rel (0) target = $region73
    $region72: #{forward.1} parent=1 // pred_region
      _
    $region73: #{forward.1} parent=1 // pred_fallthru
      _
    // Predicated region
    $region74: #{forward.1} parent=1 // pred_check
      _
    $region75: #{forward.1} parent=1 // pred_check_branch
      %5251 = sbr.rel (0) target = $region77
    $region76: #{forward.1} parent=1 // pred_region
      _
    $region77: #{forward.1} parent=1 // pred_fallthru
      _
    %5252 = vsyncpa [#allocation4], 1
    %5253 = vsyncpa [#allocation6], 1

</llo_original>
